<compile_context>
chip_gen: v6e
topology: v6e:2x2x1
jax: 0.10.0
libtpu: 0.0.40
codegen_flags: <defaults>
</compile_context>

<pallas_src>
import jax
import jax.numpy as jnp
import numpy as np
from jax.experimental import pallas as pl
from jax.experimental.pallas import tpu as pltpu

BN_EPS = 1e-5
LRELU_SLOPE = 0.1
LANES = 128
FOLD = 8                       # 8 rows x 16 channels = 128 lanes
ROW_ALIGN = 16                 # bf16 sublane packing: row tiles are multiples of 16
CONV1_TILE_CAP = 2048          # folded rows per tile (K=200  bf16 -> ~0.8 MiB/tile)
CONV2_TILE_CAP = 512           # folded rows per tile (K=3200 bf16 -> ~3.1 MiB/tile)
MLP_TILE_CAP = 256
VMEM_LIMIT = 32 * 1024 * 1024  # safe on v5e/v6e/v7x; >= every scoped default


def _round_up(x, m):
    return ((x + m - 1) // m) * m


def _pick_tile(rows, cap):
    """Largest <=cap row tile (multiple of ROW_ALIGN) so padding < one tile."""
    nt = -(-rows // cap)
    return _round_up(-(-rows // nt), ROW_ALIGN)


# --------------------------------------------------------------------------
# Pallas kernels
# --------------------------------------------------------------------------
def _conv_stage_kernel(p_ref, w_ref, b_ref, y_ref, sum_ref, sq_ref):
    """Folded conv stage: (tm, 8K)@(8K,128) + bias -> LeakyReLU (stored bf16),
    plus per-tile per-lane sum / sum-of-squares partials (for BatchNorm)."""
    y = jnp.dot(p_ref[...], w_ref[...], preferred_element_type=jnp.float32)
    y = y + b_ref[...]
    y = jnp.where(y > 0.0, y, LRELU_SLOPE * y)
    y_ref[...] = y.astype(y_ref.dtype)
    sum_ref[...] = jnp.sum(y, axis=0, keepdims=True).reshape(1, 1, LANES)
    sq_ref[...] = jnp.sum(y * y, axis=0, keepdims=True).reshape(1, 1, LANES)


def conv_stage(patches_f, w_fold, bias128, *, tile_rows):
    """patches_f: (Mp8, 8K) bf16 (folded+padded). Returns y (Mp8,128) bf16 and
    per-tile sum / sumsq partials (num_tiles,1,128) f32."""
    mp8, kf = patches_f.shape
    nt = mp8 // tile_rows
    return pl.pallas_call(
        _conv_stage_kernel,
        out_shape=(jax.ShapeDtypeStruct((mp8, LANES), jnp.bfloat16),
                   jax.ShapeDtypeStruct((nt, 1, LANES), jnp.float32),
                   jax.ShapeDtypeStruct((nt, 1, LANES), jnp.float32)),
        grid_spec=pltpu.PrefetchScalarGridSpec(
            num_scalar_prefetch=0,
            grid=(nt,),
            in_specs=[pl.BlockSpec((tile_rows, kf), lambda i: (i, 0)),
                      pl.BlockSpec((kf, LANES), lambda i: (0, 0)),
                      pl.BlockSpec((1, LANES), lambda i: (0, 0))],
            out_specs=[pl.BlockSpec((tile_rows, LANES), lambda i: (i, 0)),
                       pl.BlockSpec((1, 1, LANES), lambda i: (i, 0, 0)),
                       pl.BlockSpec((1, 1, LANES), lambda i: (i, 0, 0))]),
        compiler_params=pltpu.CompilerParams(
            dimension_semantics=("parallel",),     # per-tile stats -> no accumulator
            vmem_limit_bytes=VMEM_LIMIT),
    )(patches_f, w_fold, bias128)


def _mlp_kernel(x_ref, w1_ref, b1_ref, wo_ref, bo_ref, o_ref):
    """(BN2-folded) Linear(576,256)+Sigmoid -> Linear(256,1)+Sigmoid.
    The 1-wide output matmul is a VPU reduction instead of an MXU op."""
    h = jnp.dot(x_ref[...], w1_ref[...],
                preferred_element_type=jnp.float32) + b1_ref[...]
    h = jax.nn.sigmoid(h)
    o = jnp.sum(h * wo_ref[...], axis=1, keepdims=True) + bo_ref[...]
    o_ref[...] = jax.nn.sigmoid(o)


def mlp_head(flat, w1, b1, wo, bo, *, tile_cap=MLP_TILE_CAP):
    n, d = flat.shape
    t = _pick_tile(n, tile_cap)
    npad = _round_up(n, t)
    flat = jnp.pad(flat, ((0, npad - n), (0, 0)))
    out = pl.pallas_call(
        _mlp_kernel,
        out_shape=jax.ShapeDtypeStruct((npad, 1), jnp.float32),
        grid_spec=pltpu.PrefetchScalarGridSpec(
            num_scalar_prefetch=0,
            grid=(npad // t,),
            in_specs=[pl.BlockSpec((t, d), lambda i: (i, 0)),
                      pl.BlockSpec((d, 256), lambda i: (0, 0)),
                      pl.BlockSpec((1, 256), lambda i: (0, 0)),
                      pl.BlockSpec((1, 256), lambda i: (0, 0)),
                      pl.BlockSpec((1, 1), lambda i: (0, 0))],
            out_specs=pl.BlockSpec((t, 1), lambda i: (i, 0))),
        compiler_params=pltpu.CompilerParams(
            dimension_semantics=("parallel",)),
    )(flat, w1, b1, wo, bo)
    return out[:n]


# --------------------------------------------------------------------------
# JAX glue
# --------------------------------------------------------------------------
def im2col_nhwc(x, k, stride, pad):
    """x: (N,H,W,C) -> (N*OH*OW, k*k*C); rows ordered (n,oh,ow), cols (kh,kw,c)."""
    n, h, w, c = x.shape
    xp = jnp.pad(x, ((0, 0), (pad, pad), (pad, pad), (0, 0)))
    oh = (h + 2 * pad - k) // stride + 1
    ow = (w + 2 * pad - k) // stride + 1
    cols = []
    for i in range(k):
        for j in range(k):
            cols.append(xp[:, i:i + stride * oh:stride, j:j + stride * ow:stride, :])
    p = jnp.stack(cols, axis=3)                      # (N, OH, OW, k*k, C)
    return p.reshape(n * oh * ow, k * k * c), oh, ow


def _fold_pad(patches, tile_cap):
    """(M, K) -> bf16 (Mp8, 8K): 8 consecutive rows folded into lanes,
    zero row-padded so the folded row count is a multiple of the tile."""
    m, k = patches.shape
    m8 = -(-m // FOLD)
    t = _pick_tile(m8, tile_cap)
    mp8 = _round_up(m8, t)
    pf = jnp.pad(patches, ((0, mp8 * FOLD - m), (0, 0)))
    return pf.reshape(mp8, FOLD * k).astype(jnp.bfloat16), t


def _finish_stats(sum_t, sq_t, n_pad, bias16, m_true):
    """Reduce per-tile partials, combine the 8 lane-groups, subtract the (exact)
    contribution of the zero-padded rows (output = LeakyReLU(bias)), return
    mean / biased var (PyTorch BN normalization)."""
    s = sum_t.reshape(-1, FOLD, 16).sum(axis=(0, 1))
    q = sq_t.reshape(-1, FOLD, 16).sum(axis=(0, 1))
    pad_val = jnp.where(bias16 > 0.0, bias16, LRELU_SLOPE * bias16)
    s = s - n_pad * pad_val
    q = q - n_pad * (pad_val * pad_val)
    mean = s / m_true
    var = q / m_true - mean * mean
    return mean, var


def init_params(key):
    ks = jax.random.split(key, 8)

    def unif(k, shape, fan_in):
        bound = 1.0 / np.sqrt(fan_in)
        return jax.random.uniform(k, shape, jnp.float32, -bound, bound)

    w1_4d = unif(ks[0], (16, 1, 5, 5), 25)            # OIHW (PyTorch layout)
    b1 = unif(ks[1], (16,), 25)
    w2_4d = unif(ks[2], (16, 16, 5, 5), 400)
    b2 = unif(ks[3], (16,), 400)
    wh = unif(ks[4], (256, 576), 576)                 # Linear (out, in); in-index = c*36+h*6+w
    bh = unif(ks[5], (256,), 576)
    wo = unif(ks[6], (1, 256), 256)
    bo = unif(ks[7], (1,), 256)

    g1 = 1.0 + 0.1 * jnp.cos(jnp.arange(16, dtype=jnp.float32))
    be1 = 0.05 * jnp.sin(jnp.arange(16, dtype=jnp.float32))
    g2 = 1.0 - 0.1 * jnp.sin(jnp.arange(16, dtype=jnp.float32))
    be2 = 0.05 * jnp.cos(jnp.arange(16, dtype=jnp.float32))

    def conv_mat(w4):                                 # OIHW -> ((kh,kw,cin), cout)
        return jnp.transpose(w4, (2, 3, 1, 0)).reshape(-1, w4.shape[0])

    def fold_block_diag(wmat):                        # (K,16) -> block-diag (8K,128) bf16
        k = wmat.shape[0]
        wf = jnp.zeros((FOLD * k, LANES), jnp.float32)
        for j in range(FOLD):
            wf = wf.at[j * k:(j + 1) * k, j * 16:(j + 1) * 16].set(wmat)
        return wf.astype(jnp.bfloat16)

    w1m, w2m = conv_mat(w1_4d), conv_mat(w2_4d)
    # hidden weight: permute input dim from PyTorch's (c,h,w) flatten to NHWC (h,w,c)
    wh_hwc = wh.reshape(256, 16, 36).transpose(0, 2, 1).reshape(256, 576)

    return dict(
        # kernel-layout params
        w1_fold=fold_block_diag(w1m), b1_128=jnp.tile(b1, FOLD)[None, :], b1_16=b1,
        g1=g1, be1=be1,
        w2_fold=fold_block_diag(w2m), b2_128=jnp.tile(b2, FOLD)[None, :], b2_16=b2,
        g2=g2, be2=be2,
        wh_hwc_t=wh_hwc.T,                            # (576,256) f32; BN2 folded per-forward
        bh=bh.reshape(1, 256),
        wo_row=wo, bo=bo.reshape(1, 1),
        # reference-layout params
        w1_4d=w1_4d, w2_4d=w2_4d, wh=wh,
    )


def discriminator_forward(x, params):
    n = x.shape[0]
    x = x.reshape(n, 28, 28, 1)                       # view(-1,1,28,28); C=1 so NHWC==NCHW data

    # ---- conv1 + LeakyReLU (BN1 per-tile stats in-kernel) ---------------------
    p1, oh1, ow1 = im2col_nhwc(x, 5, 2, 1)            # (N*13*13, 25)
    m1 = p1.shape[0]
    p1f, t1 = _fold_pad(p1, CONV1_TILE_CAP)
    y1f, s1, q1 = conv_stage(p1f, params["w1_fold"], params["b1_128"], tile_rows=t1)
    mean1, var1 = _finish_stats(s1, q1, p1f.shape[0] * FOLD - m1, params["b1_16"], m1)
    scale1 = params["g1"] * jax.lax.rsqrt(var1 + BN_EPS)
    shift1 = params["be1"] - mean1 * scale1
    # BN1 apply is a plain fused scale/shift (no extra Pallas pass); spatial zero
    # padding for conv2 happens AFTER the BN apply, matching PyTorch.
    y1 = y1f.reshape(-1, 16)[:m1].astype(jnp.float32) * scale1 + shift1
    y1 = y1.astype(jnp.bfloat16).reshape(n, oh1, ow1, 16)   # NHWC, no transpose

    # ---- conv2 + LeakyReLU (BN2 per-tile stats in-kernel) ---------------------
    p2, oh2, ow2 = im2col_nhwc(y1, 5, 2, 1)           # (N*6*6, 400) bf16
    m2 = p2.shape[0]
    p2f, t2 = _fold_pad(p2, CONV2_TILE_CAP)
    y2f, s2, q2 = conv_stage(p2f, params["w2_fold"], params["b2_128"], tile_rows=t2)
    mean2, var2 = _finish_stats(s2, q2, p2f.shape[0] * FOLD - m2, params["b2_16"], m2)
    scale2 = params["g2"] * jax.lax.rsqrt(var2 + BN_EPS)
    shift2 = params["be2"] - mean2 * scale2

    # ---- head: BN2 folded exactly into the Linear(576,256) weights ------------
    flat = y2f.reshape(-1, 16)[:m2].reshape(n, oh2 * ow2 * 16)       # bf16, (h,w,c) order
    sc_col = jnp.tile(scale2, oh2 * ow2)                             # (576,)
    sh_col = jnp.tile(shift2, oh2 * ow2)                             # (576,)
    w_eff = (sc_col[:, None] * params["wh_hwc_t"]).astype(jnp.bfloat16)
    b_eff = sh_col[None, :] @ params["wh_hwc_t"] + params["bh"]      # (1,256) f32
    return mlp_head(flat, w_eff, b_eff, params["wo_row"], params["bo"])


# Pure-JAX reference (sanity check; original PyTorch NCHW layout / weight order).
def reference_forward(x, params):
    n = x.shape[0]
    x = x.reshape(n, 1, 28, 28)

    def block(x, w4, b, g, be):
        y = jax.lax.conv_general_dilated(
            x, w4, window_strides=(2, 2), padding=[(1, 1), (1, 1)],
            dimension_numbers=("NCHW", "OIHW", "NCHW"))
        y = y + b.reshape(1, -1, 1, 1)
        y = jnp.where(y > 0, y, LRELU_SLOPE * y)
        mean = y.mean(axis=(0, 2, 3), keepdims=True)
        var = ((y - mean) ** 2).mean(axis=(0, 2, 3), keepdims=True)
        return g.reshape(1, -1, 1, 1) * (y - mean) / jnp.sqrt(var + BN_EPS) + be.reshape(1, -1, 1, 1)

    y = block(x, params["w1_4d"], params["b1_16"], params["g1"], params["be1"])
    y = block(y, params["w2_4d"], params["b2_16"], params["g2"], params["be2"])
    flat = y.reshape(n, -1)
    h = jax.nn.sigmoid(flat @ params["wh"].T + params["bh"])
    return jax.nn.sigmoid(h @ params["wo_row"].T + params["bo"])


if __name__ == "__main__":
    key = jax.random.PRNGKey(0)
    k_x, k_p = jax.random.split(key)
    batch = 2
    # Module's preprocess views input as (-1, 1, 28, 28): feed (batch, 784).
    x = jax.random.normal(k_x, (batch, 784), dtype=jnp.float32)
    params = init_params(k_p)

    fwd = jax.jit(discriminator_forward)
    out = jax.block_until_ready(fwd(x, params))
    assert out.shape == (batch, 1), out.shape

    ref = jax.block_until_ready(reference_forward(x, params))
    # Tolerance covers bf16 MXU inputs and bf16-stored activations (f32 accumulation
    # and f32 BN statistics / elementwise math).
    np.testing.assert_allclose(np.asarray(out), np.asarray(ref), rtol=2e-2, atol=2e-2)

    print("KERNEL_OK")
</pallas_src>

<mosaic_0001>
module attributes {stable_mosaic.version = 11 : i64} {
  func.func @_conv_stage_kernel(%arg0: i32, %arg1: memref<48x200xbf16, #tpu.memory_space<vmem>>, %arg2: memref<200x128xbf16, #tpu.memory_space<vmem>>, %arg3: memref<1x128xf32, #tpu.memory_space<vmem>>, %arg4: memref<48x128xbf16, #tpu.memory_space<vmem>>, %arg5: memref<1x1x128xf32, #tpu.memory_space<vmem>>, %arg6: memref<1x1x128xf32, #tpu.memory_space<vmem>>) attributes {dimension_semantics = [#tpu.dimension_semantics<parallel>], iteration_bounds = array<i64: 1>, scalar_prefetch = 0 : i64, scratch_operands = 0 : i64, tpu.core_type = #tpu.core_type<tc>, window_params = [{transform_indices = @transform_0, window_bounds = array<i64: 48, 200>}, {pipeline_mode = #tpu.pipeline_mode<synchronous>, transform_indices = @transform_1, window_bounds = array<i64: 200, 128>}, {pipeline_mode = #tpu.pipeline_mode<synchronous>, transform_indices = @transform_2, window_bounds = array<i64: 1, 128>}, {transform_indices = @transform_3, window_bounds = array<i64: 48, 128>}, {transform_indices = @transform_4, window_bounds = array<i64: 1, 1, 128>}, {transform_indices = @transform_5, window_bounds = array<i64: 1, 1, 128>}]} {
    %c0 = arith.constant 0 : index
    %c0_0 = arith.constant 0 : index
    %0 = vector.load %arg1[%c0, %c0_0] : memref<48x200xbf16, #tpu.memory_space<vmem>>, vector<48x200xbf16>
    %c0_1 = arith.constant 0 : index
    %c0_2 = arith.constant 0 : index
    %1 = vector.load %arg2[%c0_1, %c0_2] : memref<200x128xbf16, #tpu.memory_space<vmem>>, vector<200x128xbf16>
    %cst = arith.constant dense<0.000000e+00> : vector<48x128xf32>
    %2 = tpu.matmul %0, %1, %cst {dimension_numbers = #tpu.dot_dimension_numbers<[1], [0], [0], [1], [0, 0, 1, 1], [], []>} : vector<48x200xbf16>, vector<200x128xbf16>, vector<48x128xf32> -> vector<48x128xf32>
    %c0_3 = arith.constant 0 : index
    %c0_4 = arith.constant 0 : index
    %3 = vector.load %arg3[%c0_3, %c0_4] : memref<1x128xf32, #tpu.memory_space<vmem>>, vector<1x128xf32>
    %4 = vector.broadcast %3 : vector<1x128xf32> to vector<48x128xf32>
    %5 = arith.addf %2, %4 : vector<48x128xf32>
    %cst_5 = arith.constant 0.000000e+00 : f32
    %6 = vector.broadcast %cst_5 : f32 to vector<48x128xf32>
    %7 = arith.cmpf ogt, %5, %6 : vector<48x128xf32>
    %cst_6 = arith.constant 1.000000e-01 : f32
    %8 = vector.broadcast %cst_6 : f32 to vector<48x128xf32>
    %9 = arith.mulf %8, %5 : vector<48x128xf32>
    %10 = arith.select %7, %5, %9 : vector<48x128xi1>, vector<48x128xf32>
    %11 = arith.truncf %10 : vector<48x128xf32> to vector<48x128xbf16>
    %c0_7 = arith.constant 0 : index
    %c0_8 = arith.constant 0 : index
    %12 = vector.load %arg4[%c0_7, %c0_8] : memref<48x128xbf16, #tpu.memory_space<vmem>>, vector<48x128xbf16>
    tpu.vector_store %arg4[%c0_7, %c0_8], %11 {strides = array<i32>} : memref<48x128xbf16, #tpu.memory_space<vmem>>, vector<48x128xbf16>,
    %cst_9 = arith.constant dense<0.000000e+00> : vector<128xf32>
    %13 = vector.multi_reduction <add>, %10, %cst_9 [0] : vector<48x128xf32> to vector<128xf32>
    %14 = vector.shape_cast %13 : vector<128xf32> to vector<1x128xf32>
    %15 = vector.shape_cast %14 : vector<1x128xf32> to vector<1x1x128xf32>
    %c0_10 = arith.constant 0 : index
    %c0_11 = arith.constant 0 : index
    %c0_12 = arith.constant 0 : index
    %16 = vector.load %arg5[%c0_10, %c0_11, %c0_12] : memref<1x1x128xf32, #tpu.memory_space<vmem>>, vector<1x1x128xf32>
    tpu.vector_store %arg5[%c0_10, %c0_11, %c0_12], %15 {strides = array<i32>} : memref<1x1x128xf32, #tpu.memory_space<vmem>>, vector<1x1x128xf32>,
    %17 = arith.mulf %10, %10 : vector<48x128xf32>
    %cst_13 = arith.constant dense<0.000000e+00> : vector<128xf32>
    %18 = vector.multi_reduction <add>, %17, %cst_13 [0] : vector<48x128xf32> to vector<128xf32>
    %19 = vector.shape_cast %18 : vector<128xf32> to vector<1x128xf32>
    %20 = vector.shape_cast %19 : vector<1x128xf32> to vector<1x1x128xf32>
    %c0_14 = arith.constant 0 : index
    %c0_15 = arith.constant 0 : index
    %c0_16 = arith.constant 0 : index
    %21 = vector.load %arg6[%c0_14, %c0_15, %c0_16] : memref<1x1x128xf32, #tpu.memory_space<vmem>>, vector<1x1x128xf32>
    tpu.vector_store %arg6[%c0_14, %c0_15, %c0_16], %20 {strides = array<i32>} : memref<1x1x128xf32, #tpu.memory_space<vmem>>, vector<1x1x128xf32>,
    return
  }
  func.func @transform_0(%arg0: i32) -> (i32, i32) {
    %c0_i32 = arith.constant 0 : i32
    %c0_i32_0 = arith.constant 0 : i32
    return %arg0, %c0_i32 : i32, i32
  }
  func.func @transform_1(%arg0: i32) -> (i32, i32) {
    %c0_i32 = arith.constant 0 : i32
    %c0_i32_0 = arith.constant 0 : i32
    %c0_i32_1 = arith.constant 0 : i32
    return %c0_i32, %c0_i32_0 : i32, i32
  }
  func.func @transform_2(%arg0: i32) -> (i32, i32) {
    %c0_i32 = arith.constant 0 : i32
    %c0_i32_0 = arith.constant 0 : i32
    %c0_i32_1 = arith.constant 0 : i32
    return %c0_i32, %c0_i32_0 : i32, i32
  }
  func.func @transform_3(%arg0: i32) -> (i32, i32) {
    %c0_i32 = arith.constant 0 : i32
    %c0_i32_0 = arith.constant 0 : i32
    return %arg0, %c0_i32 : i32, i32
  }
  func.func @transform_4(%arg0: i32) -> (i32, i32, i32) {
    %c0_i32 = arith.constant 0 : i32
    %c0_i32_0 = arith.constant 0 : i32
    %c0_i32_1 = arith.constant 0 : i32
    return %arg0, %c0_i32, %c0_i32_0 : i32, i32, i32
  }
  func.func @transform_5(%arg0: i32) -> (i32, i32, i32) {
    %c0_i32 = arith.constant 0 : i32
    %c0_i32_0 = arith.constant 0 : i32
    %c0_i32_1 = arith.constant 0 : i32
    return %arg0, %c0_i32, %c0_i32_0 : i32, i32, i32
  }
}

module attributes {stable_mosaic.version = 11 : i64} {
  func.func @_conv_stage_kernel(%arg0: i32, %arg1: memref<16x3200xbf16, #tpu.memory_space<vmem>>, %arg2: memref<3200x128xbf16, #tpu.memory_space<vmem>>, %arg3: memref<1x128xf32, #tpu.memory_space<vmem>>, %arg4: memref<16x128xbf16, #tpu.memory_space<vmem>>, %arg5: memref<1x1x128xf32, #tpu.memory_space<vmem>>, %arg6: memref<1x1x128xf32, #tpu.memory_space<vmem>>) attributes {dimension_semantics = [#tpu.dimension_semantics<parallel>], iteration_bounds = array<i64: 1>, scalar_prefetch = 0 : i64, scratch_operands = 0 : i64, tpu.core_type = #tpu.core_type<tc>, window_params = [{transform_indices = @transform_0, window_bounds = array<i64: 16, 3200>}, {pipeline_mode = #tpu.pipeline_mode<synchronous>, transform_indices = @transform_1, window_bounds = array<i64: 3200, 128>}, {pipeline_mode = #tpu.pipeline_mode<synchronous>, transform_indices = @transform_2, window_bounds = array<i64: 1, 128>}, {transform_indices = @transform_3, window_bounds = array<i64: 16, 128>}, {transform_indices = @transform_4, window_bounds = array<i64: 1, 1, 128>}, {transform_indices = @transform_5, window_bounds = array<i64: 1, 1, 128>}]} {
    %c0 = arith.constant 0 : index
    %c0_0 = arith.constant 0 : index
    %0 = vector.load %arg1[%c0, %c0_0] : memref<16x3200xbf16, #tpu.memory_space<vmem>>, vector<16x3200xbf16>
    %c0_1 = arith.constant 0 : index
    %c0_2 = arith.constant 0 : index
    %1 = vector.load %arg2[%c0_1, %c0_2] : memref<3200x128xbf16, #tpu.memory_space<vmem>>, vector<3200x128xbf16>
    %cst = arith.constant dense<0.000000e+00> : vector<16x128xf32>
    %2 = tpu.matmul %0, %1, %cst {dimension_numbers = #tpu.dot_dimension_numbers<[1], [0], [0], [1], [0, 0, 1, 1], [], []>} : vector<16x3200xbf16>, vector<3200x128xbf16>, vector<16x128xf32> -> vector<16x128xf32>
    %c0_3 = arith.constant 0 : index
    %c0_4 = arith.constant 0 : index
    %3 = vector.load %arg3[%c0_3, %c0_4] : memref<1x128xf32, #tpu.memory_space<vmem>>, vector<1x128xf32>
    %4 = vector.broadcast %3 : vector<1x128xf32> to vector<16x128xf32>
    %5 = arith.addf %2, %4 : vector<16x128xf32>
    %cst_5 = arith.constant 0.000000e+00 : f32
    %6 = vector.broadcast %cst_5 : f32 to vector<16x128xf32>
    %7 = arith.cmpf ogt, %5, %6 : vector<16x128xf32>
    %cst_6 = arith.constant 1.000000e-01 : f32
    %8 = vector.broadcast %cst_6 : f32 to vector<16x128xf32>
    %9 = arith.mulf %8, %5 : vector<16x128xf32>
    %10 = arith.select %7, %5, %9 : vector<16x128xi1>, vector<16x128xf32>
    %11 = arith.truncf %10 : vector<16x128xf32> to vector<16x128xbf16>
    %c0_7 = arith.constant 0 : index
    %c0_8 = arith.constant 0 : index
    %12 = vector.load %arg4[%c0_7, %c0_8] : memref<16x128xbf16, #tpu.memory_space<vmem>>, vector<16x128xbf16>
    tpu.vector_store %arg4[%c0_7, %c0_8], %11 {strides = array<i32>} : memref<16x128xbf16, #tpu.memory_space<vmem>>, vector<16x128xbf16>,
    %cst_9 = arith.constant dense<0.000000e+00> : vector<128xf32>
    %13 = vector.multi_reduction <add>, %10, %cst_9 [0] : vector<16x128xf32> to vector<128xf32>
    %14 = vector.shape_cast %13 : vector<128xf32> to vector<1x128xf32>
    %15 = vector.shape_cast %14 : vector<1x128xf32> to vector<1x1x128xf32>
    %c0_10 = arith.constant 0 : index
    %c0_11 = arith.constant 0 : index
    %c0_12 = arith.constant 0 : index
    %16 = vector.load %arg5[%c0_10, %c0_11, %c0_12] : memref<1x1x128xf32, #tpu.memory_space<vmem>>, vector<1x1x128xf32>
    tpu.vector_store %arg5[%c0_10, %c0_11, %c0_12], %15 {strides = array<i32>} : memref<1x1x128xf32, #tpu.memory_space<vmem>>, vector<1x1x128xf32>,
    %17 = arith.mulf %10, %10 : vector<16x128xf32>
    %cst_13 = arith.constant dense<0.000000e+00> : vector<128xf32>
    %18 = vector.multi_reduction <add>, %17, %cst_13 [0] : vector<16x128xf32> to vector<128xf32>
    %19 = vector.shape_cast %18 : vector<128xf32> to vector<1x128xf32>
    %20 = vector.shape_cast %19 : vector<1x128xf32> to vector<1x1x128xf32>
    %c0_14 = arith.constant 0 : index
    %c0_15 = arith.constant 0 : index
    %c0_16 = arith.constant 0 : index
    %21 = vector.load %arg6[%c0_14, %c0_15, %c0_16] : memref<1x1x128xf32, #tpu.memory_space<vmem>>, vector<1x1x128xf32>
    tpu.vector_store %arg6[%c0_14, %c0_15, %c0_16], %20 {strides = array<i32>} : memref<1x1x128xf32, #tpu.memory_space<vmem>>, vector<1x1x128xf32>,
    return
  }
  func.func @transform_0(%arg0: i32) -> (i32, i32) {
    %c0_i32 = arith.constant 0 : i32
    %c0_i32_0 = arith.constant 0 : i32
    return %arg0, %c0_i32 : i32, i32
  }
  func.func @transform_1(%arg0: i32) -> (i32, i32) {
    %c0_i32 = arith.constant 0 : i32
    %c0_i32_0 = arith.constant 0 : i32
    %c0_i32_1 = arith.constant 0 : i32
    return %c0_i32, %c0_i32_0 : i32, i32
  }
  func.func @transform_2(%arg0: i32) -> (i32, i32) {
    %c0_i32 = arith.constant 0 : i32
    %c0_i32_0 = arith.constant 0 : i32
    %c0_i32_1 = arith.constant 0 : i32
    return %c0_i32, %c0_i32_0 : i32, i32
  }
  func.func @transform_3(%arg0: i32) -> (i32, i32) {
    %c0_i32 = arith.constant 0 : i32
    %c0_i32_0 = arith.constant 0 : i32
    return %arg0, %c0_i32 : i32, i32
  }
  func.func @transform_4(%arg0: i32) -> (i32, i32, i32) {
    %c0_i32 = arith.constant 0 : i32
    %c0_i32_0 = arith.constant 0 : i32
    %c0_i32_1 = arith.constant 0 : i32
    return %arg0, %c0_i32, %c0_i32_0 : i32, i32, i32
  }
  func.func @transform_5(%arg0: i32) -> (i32, i32, i32) {
    %c0_i32 = arith.constant 0 : i32
    %c0_i32_0 = arith.constant 0 : i32
    %c0_i32_1 = arith.constant 0 : i32
    return %arg0, %c0_i32, %c0_i32_0 : i32, i32, i32
  }
}

module attributes {stable_mosaic.version = 11 : i64} {
  func.func @_mlp_kernel(%arg0: i32, %arg1: memref<16x576xbf16, #tpu.memory_space<vmem>>, %arg2: memref<576x256xbf16, #tpu.memory_space<vmem>>, %arg3: memref<1x256xf32, #tpu.memory_space<vmem>>, %arg4: memref<1x256xf32, #tpu.memory_space<vmem>>, %arg5: memref<1x1xf32, #tpu.memory_space<vmem>>, %arg6: memref<16x1xf32, #tpu.memory_space<vmem>>) attributes {dimension_semantics = [#tpu.dimension_semantics<parallel>], iteration_bounds = array<i64: 1>, scalar_prefetch = 0 : i64, scratch_operands = 0 : i64, tpu.core_type = #tpu.core_type<tc>, window_params = [{transform_indices = @transform_0, window_bounds = array<i64: 16, 576>}, {pipeline_mode = #tpu.pipeline_mode<synchronous>, transform_indices = @transform_1, window_bounds = array<i64: 576, 256>}, {pipeline_mode = #tpu.pipeline_mode<synchronous>, transform_indices = @transform_2, window_bounds = array<i64: 1, 256>}, {pipeline_mode = #tpu.pipeline_mode<synchronous>, transform_indices = @transform_3, window_bounds = array<i64: 1, 256>}, {pipeline_mode = #tpu.pipeline_mode<synchronous>, transform_indices = @transform_4, window_bounds = array<i64: 1, 1>}, {transform_indices = @transform_5, window_bounds = array<i64: 16, 1>}]} {
    %c0 = arith.constant 0 : index
    %c0_0 = arith.constant 0 : index
    %0 = vector.load %arg1[%c0, %c0_0] : memref<16x576xbf16, #tpu.memory_space<vmem>>, vector<16x576xbf16>
    %c0_1 = arith.constant 0 : index
    %c0_2 = arith.constant 0 : index
    %1 = vector.load %arg2[%c0_1, %c0_2] : memref<576x256xbf16, #tpu.memory_space<vmem>>, vector<576x256xbf16>
    %cst = arith.constant dense<0.000000e+00> : vector<16x256xf32>
    %2 = tpu.matmul %0, %1, %cst {dimension_numbers = #tpu.dot_dimension_numbers<[1], [0], [0], [1], [0, 0, 1, 1], [], []>} : vector<16x576xbf16>, vector<576x256xbf16>, vector<16x256xf32> -> vector<16x256xf32>
    %c0_3 = arith.constant 0 : index
    %c0_4 = arith.constant 0 : index
    %3 = vector.load %arg3[%c0_3, %c0_4] : memref<1x256xf32, #tpu.memory_space<vmem>>, vector<1x256xf32>
    %4 = vector.broadcast %3 : vector<1x256xf32> to vector<16x256xf32>
    %5 = arith.addf %2, %4 : vector<16x256xf32>
    %6 = arith.negf %5 : vector<16x256xf32>
    %7 = math.exp %6 : vector<16x256xf32>
    %cst_5 = arith.constant 1.000000e+00 : f32
    %8 = vector.broadcast %cst_5 : f32 to vector<16x256xf32>
    %9 = arith.addf %8, %7 : vector<16x256xf32>
    %10 = arith.divf %8, %9 : vector<16x256xf32>
    %c0_6 = arith.constant 0 : index
    %c0_7 = arith.constant 0 : index
    %11 = vector.load %arg4[%c0_6, %c0_7] : memref<1x256xf32, #tpu.memory_space<vmem>>, vector<1x256xf32>
    %12 = vector.broadcast %11 : vector<1x256xf32> to vector<16x256xf32>
    %13 = arith.mulf %10, %12 : vector<16x256xf32>
    %cst_8 = arith.constant dense<0.000000e+00> : vector<16xf32>
    %14 = vector.multi_reduction <add>, %13, %cst_8 [1] : vector<16x256xf32> to vector<16xf32>
    %15 = vector.shape_cast %14 : vector<16xf32> to vector<16x1xf32>
    %c0_9 = arith.constant 0 : index
    %c0_10 = arith.constant 0 : index
    %16 = vector.load %arg5[%c0_9, %c0_10] : memref<1x1xf32, #tpu.memory_space<vmem>>, vector<1x1xf32>
    %17 = vector.broadcast %16 : vector<1x1xf32> to vector<16x1xf32>
    %18 = arith.addf %15, %17 : vector<16x1xf32>
    %19 = arith.negf %18 : vector<16x1xf32>
    %20 = math.exp %19 : vector<16x1xf32>
    %cst_11 = arith.constant 1.000000e+00 : f32
    %21 = vector.broadcast %cst_11 : f32 to vector<16x1xf32>
    %22 = arith.addf %21, %20 : vector<16x1xf32>
    %23 = arith.divf %21, %22 : vector<16x1xf32>
    %c0_12 = arith.constant 0 : index
    %c0_13 = arith.constant 0 : index
    %24 = vector.load %arg6[%c0_12, %c0_13] : memref<16x1xf32, #tpu.memory_space<vmem>>, vector<16x1xf32>
    tpu.vector_store %arg6[%c0_12, %c0_13], %23 {strides = array<i32>} : memref<16x1xf32, #tpu.memory_space<vmem>>, vector<16x1xf32>,
    return
  }
  func.func @transform_0(%arg0: i32) -> (i32, i32) {
    %c0_i32 = arith.constant 0 : i32
    %c0_i32_0 = arith.constant 0 : i32
    return %arg0, %c0_i32 : i32, i32
  }
  func.func @transform_1(%arg0: i32) -> (i32, i32) {
    %c0_i32 = arith.constant 0 : i32
    %c0_i32_0 = arith.constant 0 : i32
    %c0_i32_1 = arith.constant 0 : i32
    return %c0_i32, %c0_i32_0 : i32, i32
  }
  func.func @transform_2(%arg0: i32) -> (i32, i32) {
    %c0_i32 = arith.constant 0 : i32
    %c0_i32_0 = arith.constant 0 : i32
    %c0_i32_1 = arith.constant 0 : i32
    return %c0_i32, %c0_i32_0 : i32, i32
  }
  func.func @transform_3(%arg0: i32) -> (i32, i32) {
    %c0_i32 = arith.constant 0 : i32
    %c0_i32_0 = arith.constant 0 : i32
    %c0_i32_1 = arith.constant 0 : i32
    return %c0_i32, %c0_i32_0 : i32, i32
  }
  func.func @transform_4(%arg0: i32) -> (i32, i32) {
    %c0_i32 = arith.constant 0 : i32
    %c0_i32_0 = arith.constant 0 : i32
    %c0_i32_1 = arith.constant 0 : i32
    return %c0_i32, %c0_i32_0 : i32, i32
  }
  func.func @transform_5(%arg0: i32) -> (i32, i32) {
    %c0_i32 = arith.constant 0 : i32
    %c0_i32_0 = arith.constant 0 : i32
    return %arg0, %c0_i32 : i32, i32
  }
}

</mosaic_0001>

<llo_original>
// kernel: discriminator_forward.3
$region0: #{discriminator_forward.3}
  #allocation0 [shape = 'u32[]', space=smem, size = 0x4, offset = 0x4, fixed_abs, tag = 'smem constant byte address 0x4 - core index']
  #allocation1 [shape = 'u32[144,128]{1,0:T(1,128)}', space=vmem, size = 0x12000, scoped, tag = 'internal scratch']
  %s0 = inlined_call_operand.vmem [shape: bf16[48,200], index: 0, kind: input, shape index: {}]
  %s1 = inlined_call_operand.hbm [shape: bf16[200,128], index: 1, kind: input, shape index: {}]
  %s2 = inlined_call_operand.hbm [shape: f32[1,128], index: 2, kind: input, shape index: {}]
  %s3 = inlined_call_operand.vmem [shape: bf16[48,128], index: 3, kind: output, shape index: {0}]
  %s4 = inlined_call_operand.vmem [shape: f32[1,1,128], index: 4, kind: output, shape index: {1}]
  %s5 = inlined_call_operand.vmem [shape: f32[1,1,128], index: 5, kind: output, shape index: {2}]
  %6 = xla_tuple %s3, %s4, %s5
  %s7 = sld [smem:[#allocation0]]
  $region46: #{discriminator_forward.3} parent=0
    _
  %s9 = ssub.s32 1, %s7
  %s10 = scalar_select 0, %s9, %s7
  $region1: #{discriminator_forward.3} parent=0
    #allocation2 [shape = 'u8[51200]{0}', space=vmem, size = 0xc800, scoped, tag = 'input window, operand 1, single buffered']
    #allocation3 [shape = 's32[1]{0}', space=sflag, size = 0x4, scoped, tag = 'scoped memory for discriminator_forward.3']
    #allocation4 [shape = 'u8[512]{0}', space=vmem, size = 0x400, scoped, tag = 'input window, operand 2, single buffered']
    #allocation5 [shape = 's32[1]{0}', space=sflag, size = 0x4, scoped, tag = 'scoped memory for discriminator_forward.3']
    %11 = vsyncpa [#allocation3], 0
    %12 = vsyncpa [#allocation5], 0
    // Predicated region
    $region2: #{discriminator_forward.3} parent=1 // pred_check
      _
    $region3: #{discriminator_forward.3} parent=1 // pred_check_branch
      %14 = sbr.rel (0) target = $region5
    $region4: #{discriminator_forward.3} parent=1 // pred_region
      _
    $region5: #{discriminator_forward.3} parent=1 // pred_fallthru
      _
    // Predicated region
    $region6: #{discriminator_forward.3} parent=1 // pred_check
      _
    $region7: #{discriminator_forward.3} parent=1 // pred_check_branch
      %16 = sbr.rel (0) target = $region9
    $region8: #{discriminator_forward.3} parent=1 // pred_region
      %s18 = ssub.s32 1600, 1600
      %19 = vsyncadd [#allocation3], %s18
      %s20 = sshll.u32 [#allocation2], 4
      %s21 = int_to_ptr.vmem [resolvable:$true] %s20
      %26 = dma.hbm_to_vmem [thread:$0]  %s1, 1600, %s21, [#allocation3], 64, 64, 4
    $region9: #{discriminator_forward.3} parent=1 // pred_fallthru
      _
    // Predicated region
    $region10: #{discriminator_forward.3} parent=1 // pred_check
      _
    $region11: #{discriminator_forward.3} parent=1 // pred_check_branch
      %28 = sbr.rel (0) target = $region13
    $region12: #{discriminator_forward.3} parent=1 // pred_region
      %s30 = ssub.s32 16, 16
      %31 = vsyncadd [#allocation5], %s30
      %s33 = sshll.u32 [#allocation4], 4
      %s34 = int_to_ptr.vmem [resolvable:$true] %s33
      %36 = dma.hbm_to_vmem [thread:$0]  %s2, 16, %s34, [#allocation5]
    $region13: #{discriminator_forward.3} parent=1 // pred_fallthru
      _
    // Predicated region
    $region14: #{discriminator_forward.3} parent=1 // pred_check
      _
    $region15: #{discriminator_forward.3} parent=1 // pred_check_branch
      %38 = sbr.rel (0) target = $region17
    $region16: #{discriminator_forward.3} parent=1 // pred_region
      %39 = dma.done [#allocation3], 1600
    $region17: #{discriminator_forward.3} parent=1 // pred_fallthru
      _
    // Predicated region
    $region18: #{discriminator_forward.3} parent=1 // pred_check
      _
    $region19: #{discriminator_forward.3} parent=1 // pred_check_branch
      %41 = sbr.rel (0) target = $region21
    $region20: #{discriminator_forward.3} parent=1 // pred_region
      %42 = dma.done [#allocation5], 16
    $region21: #{discriminator_forward.3} parent=1 // pred_fallthru
      _
    %v44 = vld [vmem:[%s0] sm:$0xff]
    %v45 = vld [vmem:[%s0 + $0x8] sm:$0xff]
    %v46 = vld [vmem:[%s0 + $0x10] sm:$0xff]
    %v47 = vld [vmem:[%s0 + $0x18] sm:$0xff]
    %v48 = vld [vmem:[%s0 + $0x20] sm:$0xff]
    %v49 = vld [vmem:[%s0 + $0x28] sm:$0xff]
    %v50 = vld [vmem:[#allocation2] sm:$0xf]
    %v51 = vld [vmem:[#allocation2 + $0x4] sm:$0xf]
    %v52 = vld [vmem:[#allocation2 + $0x8] sm:$0xf]
    %v53 = vld [vmem:[#allocation2 + $0xc] sm:$0xf]
    %v54 = vld [vmem:[#allocation2 + $0x10] sm:$0xf]
    %v55 = vld [vmem:[#allocation2 + $0x14] sm:$0xf]
    %v56 = vld [vmem:[#allocation2 + $0x18] sm:$0xf]
    %v57 = vld [vmem:[#allocation2 + $0x1c] sm:$0xf]
    %v58 = vld [vmem:[#allocation2 + $0x20] sm:$0xf]
    %v59 = vld [vmem:[#allocation2 + $0x24] sm:$0xf]
    %v60 = vld [vmem:[#allocation2 + $0x28] sm:$0xf]
    %v61 = vld [vmem:[#allocation2 + $0x2c] sm:$0xf]
    %v62 = vld [vmem:[#allocation2 + $0x30] sm:$0xf]
    %v63 = vld [vmem:[#allocation2 + $0x34] sm:$0xf]
    %v64 = vld [vmem:[#allocation2 + $0x38] sm:$0xf]
    %v65 = vld [vmem:[#allocation2 + $0x3c] sm:$0xf]
    %v66 = vld [vmem:[#allocation2 + $0x40] sm:$0xf]
    %v67 = vld [vmem:[#allocation2 + $0x44] sm:$0xf]
    %v68 = vld [vmem:[#allocation2 + $0x48] sm:$0xf]
    %v69 = vld [vmem:[#allocation2 + $0x4c] sm:$0xf]
    %v70 = vld [vmem:[#allocation2 + $0x50] sm:$0xf]
    %v71 = vld [vmem:[#allocation2 + $0x54] sm:$0xf]
    %v72 = vld [vmem:[#allocation2 + $0x58] sm:$0xf]
    %v73 = vld [vmem:[#allocation2 + $0x5c] sm:$0xf]
    %v74 = vld [vmem:[#allocation2 + $0x60] sm:$0xf]
    %v75 = vld [vmem:[#allocation4] sm:$0x1]
    %v77 = vlaneseq
    %v78 = vshrl.u32 %v77, 7
    %v79 = vsub.s32 0, %v78
    %v80 = vrot.slane %v75, %v79
    %v88 = vunpack.c.l.b16 %v44
    %v89 = vunpack.c.h.b16 %v44
    %v90 = vunpack.c.l.b16 %v45
    %v91 = vunpack.c.h.b16 %v45
    %v92 = vunpack.c.l.b16 %v46
    %v93 = vunpack.c.h.b16 %v46
    %v94 = vunpack.c.l.b16 %v47
    %v95 = vunpack.c.h.b16 %v47
    %v96 = vunpack.c.l.b16 %v48
    %v97 = vunpack.c.h.b16 %v48
    %v98 = vunpack.c.l.b16 %v49
    %v99 = vunpack.c.h.b16 %v49
    %v100 = vpack.c.b16 %v90, %v88
    %v101 = vpack.c.b16 %v91, %v89
    %v102 = vpack.c.b16 %v94, %v92
    %v103 = vpack.c.b16 %v95, %v93
    %v104 = vpack.c.b16 %v98, %v96
    %v105 = vpack.c.b16 %v99, %v97
    %v134 = vunpack.c.l.b16 %v50
    %v135 = vunpack.c.l.b16 %v51
    %v136 = vunpack.c.l.b16 %v52
    %v137 = vunpack.c.l.b16 %v53
    %v138 = vunpack.c.l.b16 %v54
    %v139 = vunpack.c.l.b16 %v55
    %v140 = vunpack.c.l.b16 %v56
    %v141 = vunpack.c.l.b16 %v57
    %v142 = vunpack.c.l.b16 %v58
    %v143 = vunpack.c.l.b16 %v59
    %v144 = vunpack.c.l.b16 %v60
    %v145 = vunpack.c.l.b16 %v61
    %v146 = vunpack.c.l.b16 %v62
    %v147 = vunpack.c.l.b16 %v63
    %v148 = vunpack.c.l.b16 %v64
    %v149 = vunpack.c.l.b16 %v65
    %v150 = vunpack.c.l.b16 %v66
    %v151 = vunpack.c.l.b16 %v67
    %v152 = vunpack.c.l.b16 %v68
    %v153 = vunpack.c.l.b16 %v69
    %v154 = vunpack.c.l.b16 %v70
    %v155 = vunpack.c.l.b16 %v71
    %v156 = vunpack.c.l.b16 %v72
    %v157 = vunpack.c.l.b16 %v73
    %v158 = vunpack.c.l.b16 %v74
    %v159 = vpack.c.b16 %v135, %v134
    %v160 = vpack.c.b16 %v137, %v136
    %v161 = vpack.c.b16 %v139, %v138
    %v162 = vpack.c.b16 %v141, %v140
    %v163 = vpack.c.b16 %v143, %v142
    %v164 = vpack.c.b16 %v145, %v144
    %v165 = vpack.c.b16 %v147, %v146
    %v166 = vpack.c.b16 %v149, %v148
    %v167 = vpack.c.b16 %v151, %v150
    %v168 = vpack.c.b16 %v153, %v152
    %v169 = vpack.c.b16 %v155, %v154
    %v170 = vpack.c.b16 %v157, %v156
    %v171 = vpack.c.b16 %v158, %v158
    %vm184 = vcmask 588800
    %v186 = vsel %vm184, %v101, 0
    %v189 = vsel %vm184, %v103, 0
    %v192 = vsel %vm184, %v105, 0
    %vm194 = vcmask 1043456
    %v196 = vsel %vm194, %v171, 0
    %198 = vmatprep.subr.bf16.mxu0 0
    %199 = vmatpush1.bf16.msra.mxu0 %v166
    %200 = vmatprep.subr.bf16.mxu0 0
    %201 = vmatpush1.bf16.msra.mxu0 %v165
    %202 = vmatprep.subr.bf16.mxu0 0
    %203 = vmatpush1.bf16.msra.mxu0 %v164
    %204 = vmatprep.subr.bf16.mxu0 0
    %205 = vmatpush1.bf16.msra.mxu0 %v163
    %206 = vmatprep.subr.bf16.mxu0 0
    %207 = vmatpush1.bf16.msra.mxu0 %v162
    %208 = vmatprep.subr.bf16.mxu0 0
    %209 = vmatpush1.bf16.msra.mxu0 %v161
    %210 = vmatprep.subr.bf16.mxu0 0
    %211 = vmatpush1.bf16.msra.mxu0 %v160
    %212 = vmatprep.subr.bf16.mxu0 0
    %213 = vmatpush1.bf16.msra.mxu0 %v159
    %214 = vmatprep.subr.bf16.mxu0 0
    %215 = vmatpush2.bf16.msra.mxu0 0
    %216 = vmatprep.subr.bf16.mxu0 0
    %217 = vmatpush2.bf16.msra.mxu0 0
    %218 = vmatprep.subr.bf16.mxu0 0
    %219 = vmatpush2.bf16.msra.mxu0 0
    %220 = vmatprep.subr.bf16.mxu0 0
    %221 = vmatpush2.bf16.msra.mxu0 %v196
    %222 = vmatprep.subr.bf16.mxu0 0
    %223 = vmatpush2.bf16.msra.mxu0 %v170
    %224 = vmatprep.subr.bf16.mxu0 0
    %225 = vmatpush2.bf16.msra.mxu0 %v169
    %226 = vmatprep.subr.bf16.mxu0 0
    %227 = vmatpush2.bf16.msra.mxu0 %v168
    %228 = vmatprep.subr.bf16.mxu0 0
    %229 = vmatpush2.bf16.msra.mxu0 %v167
    %230 = vmatprep.mubr.bf16.mxu0 %v186
    %231 = vmatmul.mubr.bf16.gmra.mxu0 %v100
    %v232 = vpop.f32.mrf.mxu0
    %v233 = vadd.f32 %v80, %v232
    %v234 = vpop.f32.mrf.mxu0
    %v235 = vpop.f32.mrf.mxu0
    %v236 = vadd.f32 %v80, %v235
    %v237 = vpop.f32.mrf.mxu0
    %238 = vmatprep.mubr.bf16.mxu0 %v189
    %239 = vmatmul.mubr.bf16.gmra.mxu0 %v102
    %v240 = vpop.f32.mrf.mxu0
    %v241 = vadd.f32 %v80, %v240
    %v242 = vpop.f32.mrf.mxu0
    %v243 = vpop.f32.mrf.mxu0
    %v244 = vadd.f32 %v80, %v243
    %v245 = vpop.f32.mrf.mxu0
    %246 = vmatprep.mubr.bf16.mxu0 %v192
    %247 = vmatmul.mubr.bf16.gmra.mxu0 %v104
    %v248 = vpop.f32.mrf.mxu0
    %v249 = vadd.f32 %v80, %v248
    %v250 = vpop.f32.mrf.mxu0
    %v251 = vpop.f32.mrf.mxu0
    %v252 = vadd.f32 %v80, %v251
    %v253 = vpop.f32.mrf.mxu0
    %254 = vdwg.mxu0
    %vm255 = vcmp.gt.f32.partialorder %v233, 0.0
    %vm256 = vcmp.gt.f32.partialorder %v236, 0.0
    %vm257 = vcmp.gt.f32.partialorder %v241, 0.0
    %vm258 = vcmp.gt.f32.partialorder %v244, 0.0
    %vm259 = vcmp.gt.f32.partialorder %v249, 0.0
    %vm260 = vcmp.gt.f32.partialorder %v252, 0.0
    %v261 = vmul.f32 %v233, 0.1
    %v262 = vmul.f32 %v236, 0.1
    %v263 = vmul.f32 %v241, 0.1
    %v264 = vmul.f32 %v244, 0.1
    %v265 = vmul.f32 %v249, 0.1
    %v266 = vmul.f32 %v252, 0.1
    %v267 = vsel %vm255, %v233, %v261
    %v268 = vsel %vm256, %v236, %v262
    %v269 = vsel %vm257, %v241, %v263
    %v270 = vsel %vm258, %v244, %v264
    %v271 = vsel %vm259, %v249, %v265
    %v272 = vsel %vm260, %v252, %v266
    %v273 = vpack.c.bf16 %v268, %v267
    %v274 = vpack.c.bf16 %v270, %v269
    %v275 = vpack.c.bf16 %v272, %v271
    %v279 = vunpack.c.l.b16 %v273
    %v280 = vunpack.c.h.b16 %v273
    %v281 = vunpack.c.l.b16 %v274
    %v282 = vunpack.c.h.b16 %v274
    %v283 = vunpack.c.l.b16 %v275
    %v284 = vunpack.c.h.b16 %v275
    %v285 = vpack.c.b16 %v279, %v279
    %v286 = vpack.c.b16 %v280, %v280
    %v287 = vpack.c.b16 %v281, %v281
    %v288 = vpack.c.b16 %v282, %v282
    %v289 = vpack.c.b16 %v283, %v283
    %v290 = vpack.c.b16 %v284, %v284
    %297 = vst [vmem:[%s3] sm:$0xf] %v285
    %298 = vst [vmem:[%s3 + $0x4] sm:$0xf] %v286
    %299 = vst [vmem:[%s3 + $0x8] sm:$0xf] %v287
    %300 = vst [vmem:[%s3 + $0xc] sm:$0xf] %v288
    %301 = vst [vmem:[%s3 + $0x10] sm:$0xf] %v289
    %302 = vst [vmem:[%s3 + $0x14] sm:$0xf] %v290
    %v303 = vadd.f32 %v267, %v268
    %v304 = vadd.f32 %v303, %v269
    %v305 = vadd.f32 %v304, %v270
    %v306 = vadd.f32 %v305, %v271
    %v307 = vadd.f32 %v306, %v272
    %v308 = vrot.slane %v307, 4
    %v309 = vadd.f32 %v307, %v308
    %v310 = vrot.slane %v309, 2
    %v311 = vadd.f32 %v309, %v310
    %v312 = vrot.slane %v311, 1
    %v313 = vadd.f32 %v311, %v312
    %314 = vst [vmem:[%s4] sm:$0x1] %v313
    %v315 = vmul.f32 %v267, %v267
    %v316 = vmul.f32 %v268, %v268
    %v317 = vmul.f32 %v269, %v269
    %v318 = vmul.f32 %v270, %v270
    %v319 = vmul.f32 %v271, %v271
    %v320 = vmul.f32 %v272, %v272
    %v321 = vadd.f32 %v315, %v316
    %v322 = vadd.f32 %v321, %v317
    %v323 = vadd.f32 %v322, %v318
    %v324 = vadd.f32 %v323, %v319
    %v325 = vadd.f32 %v324, %v320
    %v326 = vrot.slane %v325, 4
    %v327 = vadd.f32 %v325, %v326
    %v328 = vrot.slane %v327, 2
    %v329 = vadd.f32 %v327, %v328
    %v330 = vrot.slane %v329, 1
    %v331 = vadd.f32 %v329, %v330
    %332 = vst [vmem:[%s5] sm:$0x1] %v331
    // Predicated region
    $region22: #{discriminator_forward.3} parent=1 // pred_check
      _
    $region23: #{discriminator_forward.3} parent=1 // pred_check_branch
      %334 = sbr.rel (0) target = $region25
    $region24: #{discriminator_forward.3} parent=1 // pred_region
      _
    $region25: #{discriminator_forward.3} parent=1 // pred_fallthru
      _
    // Predicated region
    $region26: #{discriminator_forward.3} parent=1 // pred_check
      _
    $region27: #{discriminator_forward.3} parent=1 // pred_check_branch
      %336 = sbr.rel (0) target = $region29
    $region28: #{discriminator_forward.3} parent=1 // pred_region
      _
    $region29: #{discriminator_forward.3} parent=1 // pred_fallthru
      _
    // Predicated region
    $region30: #{discriminator_forward.3} parent=1 // pred_check
      _
    $region31: #{discriminator_forward.3} parent=1 // pred_check_branch
      %338 = sbr.rel (0) target = $region33
    $region32: #{discriminator_forward.3} parent=1 // pred_region
      _
    $region33: #{discriminator_forward.3} parent=1 // pred_fallthru
      _
    // Predicated region
    $region34: #{discriminator_forward.3} parent=1 // pred_check
      _
    $region35: #{discriminator_forward.3} parent=1 // pred_check_branch
      %340 = sbr.rel (0) target = $region37
    $region36: #{discriminator_forward.3} parent=1 // pred_region
      _
    $region37: #{discriminator_forward.3} parent=1 // pred_fallthru
      _
    // Predicated region
    $region38: #{discriminator_forward.3} parent=1 // pred_check
      _
    $region39: #{discriminator_forward.3} parent=1 // pred_check_branch
      %342 = sbr.rel (0) target = $region41
    $region40: #{discriminator_forward.3} parent=1 // pred_region
      _
    $region41: #{discriminator_forward.3} parent=1 // pred_fallthru
      _
    // Predicated region
    $region42: #{discriminator_forward.3} parent=1 // pred_check
      _
    $region43: #{discriminator_forward.3} parent=1 // pred_check_branch
      %344 = sbr.rel (0) target = $region45
    $region44: #{discriminator_forward.3} parent=1 // pred_region
      _
    $region45: #{discriminator_forward.3} parent=1 // pred_fallthru
      _
    %345 = vsyncpa [#allocation3], 1
    %346 = vsyncpa [#allocation5], 1

// kernel: tile.13
$region0: #{tile.13}
  #allocation0 [shape = 's32[1]{0}', space=sflag, size = 0x4, scoped, tag = 'scoped memory for tile.13']
  %s0 = inlined_call_operand.vmem [shape: f32[16], index: 0, kind: input, shape index: {}]
  %s1 = inlined_call_operand.vmem [shape: f32[36,16], index: 1, kind: output, shape index: {}]
  // Predicated region
  $region2: #{tile.13} parent=0 // pred_check
    _
  $region3: #{tile.13} parent=0 // pred_check_branch
    %3 = sbr.rel (0) target = $region5
  $region4: #{tile.13} parent=0 // pred_region
    _
  $region5: #{tile.13} parent=0 // pred_fallthru
    _
  %v4 = vld [vmem:[%s0] ss:$0 sm:$0xff]
  %5 = vst [vmem:[%s1] sm:$0xff] %v4
  %s6 = scalar_lea.vmem %s1, 8
  %7 = vst [vmem:[%s6] sm:$0xff] %v4
  %s8 = scalar_lea.vmem %s1, 16
  %9 = vst [vmem:[%s8] sm:$0xff] %v4
  %s10 = scalar_lea.vmem %s1, 24
  %11 = vst [vmem:[%s10] sm:$0xff] %v4
  %s12 = scalar_lea.vmem %s1, 32
  %13 = vst [vmem:[%s12] sm:$0xff] %v4

// kernel: mul.41
$region0: #{mul.41}
  %s0 = inlined_call_operand.vmem [shape: f32[36,16], index: 0, kind: input, shape index: {}]
  %s1 = inlined_call_operand.vmem [shape: f32[576], index: 1, kind: output, shape index: {}]
  %v2 = vld [vmem:[%s0] ss:$8 sm:$0xf]
  %s3 = scalar_lea.vmem %s0, 28
  %v4 = vld [vmem:[%s3] sm:$0x10]
  %vm5 = vcmask 1044484
  %v6 = vsel %vm5, %v4, %v2
  %vm7 = vcmask 130048
  %8 = vst.msk [vmem:[%s1] sm:$0x1f] %vm7, %v6
  %s9 = scalar_lea.vmem %s0, 7
  %v10 = vld [vmem:[%s9] ss:$8 sm:$0xf]
  %11 = vrot.lane.b32.xlu0 %v10, 112
  %v12 = vpop.permute.xlu0 %11
  %vm13 = vcmask 1048448
  %14 = vst.msk [vmem:[%s1] sm:$0xf] %vm13, %v12
  %s15 = scalar_lea.vmem %s0, 6
  %v16 = vld [vmem:[%s15] ss:$8 sm:$0xf]
  %17 = vrot.lane.b32.xlu0 %v16, 96
  %v18 = vpop.permute.xlu0 %17
  %vm19 = vcmask 917248
  %20 = vst.msk [vmem:[%s1] sm:$0xf] %vm19, %v18
  %s21 = scalar_lea.vmem %s0, 5
  %v22 = vld [vmem:[%s21] ss:$8 sm:$0xf]
  %23 = vrot.lane.b32.xlu0 %v22, 80
  %v24 = vpop.permute.xlu0 %23
  %vm25 = vcmask 786048
  %26 = vst.msk [vmem:[%s1] sm:$0xf] %vm25, %v24
  %s27 = scalar_lea.vmem %s0, 4
  %v28 = vld [vmem:[%s27] ss:$8 sm:$0xf]
  %29 = vrot.lane.b32.xlu0 %v28, 64
  %v30 = vpop.permute.xlu0 %29
  %vm31 = vcmask 654848
  %32 = vst.msk [vmem:[%s1] sm:$0xf] %vm31, %v30
  %s33 = scalar_lea.vmem %s0, 3
  %v34 = vld [vmem:[%s33] ss:$8 sm:$0xf]
  %s35 = scalar_lea.vmem %s0, 31
  %v36 = vld [vmem:[%s35] sm:$0x10]
  %vm37 = vcmask 1044484
  %v38 = vsel %vm37, %v36, %v34
  %39 = vrot.lane.b32.xlu0 %v38, 48
  %v40 = vpop.permute.xlu0 %39
  %vm41 = vcmask 523648
  %42 = vst.msk [vmem:[%s1] sm:$0x1f] %vm41, %v40
  %s43 = scalar_lea.vmem %s0, 2
  %v44 = vld [vmem:[%s43] ss:$8 sm:$0xf]
  %s45 = scalar_lea.vmem %s0, 30
  %v46 = vld [vmem:[%s45] sm:$0x10]
  %vm47 = vcmask 1044484
  %v48 = vsel %vm47, %v46, %v44
  %49 = vrot.lane.b32.xlu0 %v48, 32
  %v50 = vpop.permute.xlu0 %49
  %vm51 = vcmask 392448
  %52 = vst.msk [vmem:[%s1] sm:$0x1f] %vm51, %v50
  %s53 = scalar_lea.vmem %s0, 1
  %v54 = vld [vmem:[%s53] ss:$8 sm:$0xf]
  %s55 = scalar_lea.vmem %s0, 29
  %v56 = vld [vmem:[%s55] sm:$0x10]
  %vm57 = vcmask 1044484
  %v58 = vsel %vm57, %v56, %v54
  %59 = vrot.lane.b32.xlu0 %v58, 16
  %v60 = vpop.permute.xlu0 %59
  %vm61 = vcmask 261248
  %62 = vst.msk [vmem:[%s1] sm:$0x1f] %vm61, %v60

// kernel: discriminator_forward.4
$region0: #{discriminator_forward.4}
  #allocation0 [shape = 'u32[]', space=smem, size = 0x4, offset = 0x4, fixed_abs, tag = 'smem constant byte address 0x4 - core index']
  #allocation1 [shape = 'u32[144,128]{1,0:T(1,128)}', space=vmem, size = 0x12000, scoped, tag = 'internal scratch']
  %s0 = inlined_call_operand.vmem [shape: bf16[16,3200], index: 0, kind: input, shape index: {}]
  %s1 = inlined_call_operand.vmem [shape: bf16[3200,128], index: 1, kind: input, shape index: {}]
  %s2 = inlined_call_operand.vmem [shape: f32[1,128], index: 2, kind: input, shape index: {}]
  %s3 = inlined_call_operand.vmem [shape: bf16[16,128], index: 3, kind: output, shape index: {0}]
  %s4 = inlined_call_operand.vmem [shape: f32[1,1,128], index: 4, kind: output, shape index: {1}]
  %s5 = inlined_call_operand.vmem [shape: f32[1,1,128], index: 5, kind: output, shape index: {2}]
  %6 = xla_tuple %s3, %s4, %s5
  %s7 = sld [smem:[#allocation0]]
  $region38: #{discriminator_forward.4} parent=0
    _
  %s9 = ssub.s32 1, %s7
  %s10 = scalar_select 0, %s9, %s7
  // Predicated region
  $region2: #{discriminator_forward.4} parent=0 // pred_check
    _
  $region3: #{discriminator_forward.4} parent=0 // pred_check_branch
    %12 = sbr.rel (0) target = $region5
  $region4: #{discriminator_forward.4} parent=0 // pred_region
    _
  $region5: #{discriminator_forward.4} parent=0 // pred_fallthru
    _
  // Predicated region
  $region6: #{discriminator_forward.4} parent=0 // pred_check
    _
  $region7: #{discriminator_forward.4} parent=0 // pred_check_branch
    %14 = sbr.rel (0) target = $region9
  $region8: #{discriminator_forward.4} parent=0 // pred_region
    _
  $region9: #{discriminator_forward.4} parent=0 // pred_fallthru
    _
  // Predicated region
  $region10: #{discriminator_forward.4} parent=0 // pred_check
    _
  $region11: #{discriminator_forward.4} parent=0 // pred_check_branch
    %16 = sbr.rel (0) target = $region13
  $region12: #{discriminator_forward.4} parent=0 // pred_region
    _
  $region13: #{discriminator_forward.4} parent=0 // pred_fallthru
    _
  %v18 = vld [vmem:[%s0] sm:$0xff]
  %v19 = vld [vmem:[%s0 + $0x8] sm:$0xff]
  %v20 = vld [vmem:[%s0 + $0x10] sm:$0xff]
  %v21 = vld [vmem:[%s0 + $0x18] sm:$0xff]
  %v22 = vld [vmem:[%s0 + $0x20] sm:$0xff]
  %v23 = vld [vmem:[%s0 + $0x28] sm:$0xff]
  %v24 = vld [vmem:[%s0 + $0x30] sm:$0xff]
  %v25 = vld [vmem:[%s0 + $0x38] sm:$0xff]
  %v26 = vld [vmem:[%s0 + $0x40] sm:$0xff]
  %v27 = vld [vmem:[%s0 + $0x48] sm:$0xff]
  %v28 = vld [vmem:[%s0 + $0x50] sm:$0xff]
  %v29 = vld [vmem:[%s0 + $0x58] sm:$0xff]
  %v30 = vld [vmem:[%s0 + $0x60] sm:$0xf]
  %v31 = vld [vmem:[%s0 + $0x64] sm:$0xff]
  %v32 = vld [vmem:[%s0 + $0x6c] sm:$0xff]
  %v33 = vld [vmem:[%s0 + $0x74] sm:$0xff]
  %v34 = vld [vmem:[%s0 + $0x7c] sm:$0xff]
  %v35 = vld [vmem:[%s0 + $0x84] sm:$0xff]
  %v36 = vld [vmem:[%s0 + $0x8c] sm:$0xff]
  %v37 = vld [vmem:[%s0 + $0x94] sm:$0xff]
  %v38 = vld [vmem:[%s0 + $0x9c] sm:$0xff]
  %v39 = vld [vmem:[%s0 + $0xa4] sm:$0xff]
  %v40 = vld [vmem:[%s0 + $0xac] sm:$0xff]
  %v41 = vld [vmem:[%s0 + $0xb4] sm:$0xff]
  %v42 = vld [vmem:[%s0 + $0xbc] sm:$0xff]
  %v43 = vld [vmem:[%s0 + $0xc4] sm:$0xf]
  %v44 = vld [vmem:[%s1] sm:$0xf]
  %v45 = vld [vmem:[%s1 + $0x4] sm:$0xf]
  %v46 = vld [vmem:[%s1 + $0x8] sm:$0xf]
  %v47 = vld [vmem:[%s1 + $0xc] sm:$0xf]
  %v48 = vld [vmem:[%s1 + $0x10] sm:$0xf]
  %v49 = vld [vmem:[%s1 + $0x14] sm:$0xf]
  %v50 = vld [vmem:[%s1 + $0x18] sm:$0xf]
  %v51 = vld [vmem:[%s1 + $0x1c] sm:$0xf]
  %v52 = vld [vmem:[%s1 + $0x20] sm:$0xf]
  %v53 = vld [vmem:[%s1 + $0x24] sm:$0xf]
  %v54 = vld [vmem:[%s1 + $0x28] sm:$0xf]
  %v55 = vld [vmem:[%s1 + $0x2c] sm:$0xf]
  %v56 = vld [vmem:[%s1 + $0x30] sm:$0xf]
  %v57 = vld [vmem:[%s1 + $0x34] sm:$0xf]
  %v58 = vld [vmem:[%s1 + $0x38] sm:$0xf]
  %v59 = vld [vmem:[%s1 + $0x3c] sm:$0xf]
  %v60 = vld [vmem:[%s1 + $0x40] sm:$0xf]
  %v61 = vld [vmem:[%s1 + $0x44] sm:$0xf]
  %v62 = vld [vmem:[%s1 + $0x48] sm:$0xf]
  %v63 = vld [vmem:[%s1 + $0x4c] sm:$0xf]
  %v64 = vld [vmem:[%s1 + $0x50] sm:$0xf]
  %v65 = vld [vmem:[%s1 + $0x54] sm:$0xf]
  %v66 = vld [vmem:[%s1 + $0x58] sm:$0xf]
  %v67 = vld [vmem:[%s1 + $0x5c] sm:$0xf]
  %v68 = vld [vmem:[%s1 + $0x60] sm:$0xf]
  %v69 = vld [vmem:[%s1 + $0x64] sm:$0xf]
  %v70 = vld [vmem:[%s1 + $0x68] sm:$0xf]
  %v71 = vld [vmem:[%s1 + $0x6c] sm:$0xf]
  %v72 = vld [vmem:[%s1 + $0x70] sm:$0xf]
  %v73 = vld [vmem:[%s1 + $0x74] sm:$0xf]
  %v74 = vld [vmem:[%s1 + $0x78] sm:$0xf]
  %v75 = vld [vmem:[%s1 + $0x7c] sm:$0xf]
  %v76 = vld [vmem:[%s1 + $0x80] sm:$0xf]
  %v77 = vld [vmem:[%s1 + $0x84] sm:$0xf]
  %v78 = vld [vmem:[%s1 + $0x88] sm:$0xf]
  %v79 = vld [vmem:[%s1 + $0x8c] sm:$0xf]
  %v80 = vld [vmem:[%s1 + $0x90] sm:$0xf]
  %v81 = vld [vmem:[%s1 + $0x94] sm:$0xf]
  %v82 = vld [vmem:[%s1 + $0x98] sm:$0xf]
  %v83 = vld [vmem:[%s1 + $0x9c] sm:$0xf]
  %v84 = vld [vmem:[%s1 + $0xa0] sm:$0xf]
  %v85 = vld [vmem:[%s1 + $0xa4] sm:$0xf]
  %v86 = vld [vmem:[%s1 + $0xa8] sm:$0xf]
  %v87 = vld [vmem:[%s1 + $0xac] sm:$0xf]
  %v88 = vld [vmem:[%s1 + $0xb0] sm:$0xf]
  %v89 = vld [vmem:[%s1 + $0xb4] sm:$0xf]
  %v90 = vld [vmem:[%s1 + $0xb8] sm:$0xf]
  %v91 = vld [vmem:[%s1 + $0xbc] sm:$0xf]
  %v92 = vld [vmem:[%s1 + $0xc0] sm:$0xf]
  %v93 = vld [vmem:[%s1 + $0xc4] sm:$0xf]
  %v94 = vld [vmem:[%s1 + $0xc8] sm:$0xf]
  %v95 = vld [vmem:[%s1 + $0xcc] sm:$0xf]
  %v96 = vld [vmem:[%s1 + $0xd0] sm:$0xf]
  %v97 = vld [vmem:[%s1 + $0xd4] sm:$0xf]
  %v98 = vld [vmem:[%s1 + $0xd8] sm:$0xf]
  %v99 = vld [vmem:[%s1 + $0xdc] sm:$0xf]
  %v100 = vld [vmem:[%s1 + $0xe0] sm:$0xf]
  %v101 = vld [vmem:[%s1 + $0xe4] sm:$0xf]
  %v102 = vld [vmem:[%s1 + $0xe8] sm:$0xf]
  %v103 = vld [vmem:[%s1 + $0xec] sm:$0xf]
  %v104 = vld [vmem:[%s1 + $0xf0] sm:$0xf]
  %v105 = vld [vmem:[%s1 + $0xf4] sm:$0xf]
  %v106 = vld [vmem:[%s1 + $0xf8] sm:$0xf]
  %v107 = vld [vmem:[%s1 + $0xfc] sm:$0xf]
  %v108 = vld [vmem:[%s1 + $0x100] sm:$0xf]
  %v109 = vld [vmem:[%s1 + $0x104] sm:$0xf]
  %v110 = vld [vmem:[%s1 + $0x108] sm:$0xf]
  %v111 = vld [vmem:[%s1 + $0x10c] sm:$0xf]
  %v112 = vld [vmem:[%s1 + $0x110] sm:$0xf]
  %v113 = vld [vmem:[%s1 + $0x114] sm:$0xf]
  %v114 = vld [vmem:[%s1 + $0x118] sm:$0xf]
  %v115 = vld [vmem:[%s1 + $0x11c] sm:$0xf]
  %v116 = vld [vmem:[%s1 + $0x120] sm:$0xf]
  %v117 = vld [vmem:[%s1 + $0x124] sm:$0xf]
  %v118 = vld [vmem:[%s1 + $0x128] sm:$0xf]
  %v119 = vld [vmem:[%s1 + $0x12c] sm:$0xf]
  %v120 = vld [vmem:[%s1 + $0x130] sm:$0xf]
  %v121 = vld [vmem:[%s1 + $0x134] sm:$0xf]
  %v122 = vld [vmem:[%s1 + $0x138] sm:$0xf]
  %v123 = vld [vmem:[%s1 + $0x13c] sm:$0xf]
  %v124 = vld [vmem:[%s1 + $0x140] sm:$0xf]
  %v125 = vld [vmem:[%s1 + $0x144] sm:$0xf]
  %v126 = vld [vmem:[%s1 + $0x148] sm:$0xf]
  %v127 = vld [vmem:[%s1 + $0x14c] sm:$0xf]
  %v128 = vld [vmem:[%s1 + $0x150] sm:$0xf]
  %v129 = vld [vmem:[%s1 + $0x154] sm:$0xf]
  %v130 = vld [vmem:[%s1 + $0x158] sm:$0xf]
  %v131 = vld [vmem:[%s1 + $0x15c] sm:$0xf]
  %v132 = vld [vmem:[%s1 + $0x160] sm:$0xf]
  %v133 = vld [vmem:[%s1 + $0x164] sm:$0xf]
  %v134 = vld [vmem:[%s1 + $0x168] sm:$0xf]
  %v135 = vld [vmem:[%s1 + $0x16c] sm:$0xf]
  %v136 = vld [vmem:[%s1 + $0x170] sm:$0xf]
  %v137 = vld [vmem:[%s1 + $0x174] sm:$0xf]
  %v138 = vld [vmem:[%s1 + $0x178] sm:$0xf]
  %v139 = vld [vmem:[%s1 + $0x17c] sm:$0xf]
  %v140 = vld [vmem:[%s1 + $0x180] sm:$0xf]
  %v141 = vld [vmem:[%s1 + $0x184] sm:$0xf]
  %v142 = vld [vmem:[%s1 + $0x188] sm:$0xf]
  %v143 = vld [vmem:[%s1 + $0x18c] sm:$0xf]
  %v144 = vld [vmem:[%s1 + $0x190] sm:$0xf]
  %v145 = vld [vmem:[%s1 + $0x194] sm:$0xf]
  %v146 = vld [vmem:[%s1 + $0x198] sm:$0xf]
  %v147 = vld [vmem:[%s1 + $0x19c] sm:$0xf]
  %v148 = vld [vmem:[%s1 + $0x1a0] sm:$0xf]
  %v149 = vld [vmem:[%s1 + $0x1a4] sm:$0xf]
  %v150 = vld [vmem:[%s1 + $0x1a8] sm:$0xf]
  %v151 = vld [vmem:[%s1 + $0x1ac] sm:$0xf]
  %v152 = vld [vmem:[%s1 + $0x1b0] sm:$0xf]
  %v153 = vld [vmem:[%s1 + $0x1b4] sm:$0xf]
  %v154 = vld [vmem:[%s1 + $0x1b8] sm:$0xf]
  %v155 = vld [vmem:[%s1 + $0x1bc] sm:$0xf]
  %v156 = vld [vmem:[%s1 + $0x1c0] sm:$0xf]
  %v157 = vld [vmem:[%s1 + $0x1c4] sm:$0xf]
  %v158 = vld [vmem:[%s1 + $0x1c8] sm:$0xf]
  %v159 = vld [vmem:[%s1 + $0x1cc] sm:$0xf]
  %v160 = vld [vmem:[%s1 + $0x1d0] sm:$0xf]
  %v161 = vld [vmem:[%s1 + $0x1d4] sm:$0xf]
  %v162 = vld [vmem:[%s1 + $0x1d8] sm:$0xf]
  %v163 = vld [vmem:[%s1 + $0x1dc] sm:$0xf]
  %v164 = vld [vmem:[%s1 + $0x1e0] sm:$0xf]
  %v165 = vld [vmem:[%s1 + $0x1e4] sm:$0xf]
  %v166 = vld [vmem:[%s1 + $0x1e8] sm:$0xf]
  %v167 = vld [vmem:[%s1 + $0x1ec] sm:$0xf]
  %v168 = vld [vmem:[%s1 + $0x1f0] sm:$0xf]
  %v169 = vld [vmem:[%s1 + $0x1f4] sm:$0xf]
  %v170 = vld [vmem:[%s1 + $0x1f8] sm:$0xf]
  %v171 = vld [vmem:[%s1 + $0x1fc] sm:$0xf]
  %v172 = vld [vmem:[%s1 + $0x200] sm:$0xf]
  %v173 = vld [vmem:[%s1 + $0x204] sm:$0xf]
  %v174 = vld [vmem:[%s1 + $0x208] sm:$0xf]
  %v175 = vld [vmem:[%s1 + $0x20c] sm:$0xf]
  %v176 = vld [vmem:[%s1 + $0x210] sm:$0xf]
  %v177 = vld [vmem:[%s1 + $0x214] sm:$0xf]
  %v178 = vld [vmem:[%s1 + $0x218] sm:$0xf]
  %v179 = vld [vmem:[%s1 + $0x21c] sm:$0xf]
  %v180 = vld [vmem:[%s1 + $0x220] sm:$0xf]
  %v181 = vld [vmem:[%s1 + $0x224] sm:$0xf]
  %v182 = vld [vmem:[%s1 + $0x228] sm:$0xf]
  %v183 = vld [vmem:[%s1 + $0x22c] sm:$0xf]
  %v184 = vld [vmem:[%s1 + $0x230] sm:$0xf]
  %v185 = vld [vmem:[%s1 + $0x234] sm:$0xf]
  %v186 = vld [vmem:[%s1 + $0x238] sm:$0xf]
  %v187 = vld [vmem:[%s1 + $0x23c] sm:$0xf]
  %v188 = vld [vmem:[%s1 + $0x240] sm:$0xf]
  %v189 = vld [vmem:[%s1 + $0x244] sm:$0xf]
  %v190 = vld [vmem:[%s1 + $0x248] sm:$0xf]
  %v191 = vld [vmem:[%s1 + $0x24c] sm:$0xf]
  %v192 = vld [vmem:[%s1 + $0x250] sm:$0xf]
  %v193 = vld [vmem:[%s1 + $0x254] sm:$0xf]
  %v194 = vld [vmem:[%s1 + $0x258] sm:$0xf]
  %v195 = vld [vmem:[%s1 + $0x25c] sm:$0xf]
  %v196 = vld [vmem:[%s1 + $0x260] sm:$0xf]
  %v197 = vld [vmem:[%s1 + $0x264] sm:$0xf]
  %v198 = vld [vmem:[%s1 + $0x268] sm:$0xf]
  %v199 = vld [vmem:[%s1 + $0x26c] sm:$0xf]
  %v200 = vld [vmem:[%s1 + $0x270] sm:$0xf]
  %v201 = vld [vmem:[%s1 + $0x274] sm:$0xf]
  %v202 = vld [vmem:[%s1 + $0x278] sm:$0xf]
  %v203 = vld [vmem:[%s1 + $0x27c] sm:$0xf]
  %v204 = vld [vmem:[%s1 + $0x280] sm:$0xf]
  %v205 = vld [vmem:[%s1 + $0x284] sm:$0xf]
  %v206 = vld [vmem:[%s1 + $0x288] sm:$0xf]
  %v207 = vld [vmem:[%s1 + $0x28c] sm:$0xf]
  %v208 = vld [vmem:[%s1 + $0x290] sm:$0xf]
  %v209 = vld [vmem:[%s1 + $0x294] sm:$0xf]
  %v210 = vld [vmem:[%s1 + $0x298] sm:$0xf]
  %v211 = vld [vmem:[%s1 + $0x29c] sm:$0xf]
  %v212 = vld [vmem:[%s1 + $0x2a0] sm:$0xf]
  %v213 = vld [vmem:[%s1 + $0x2a4] sm:$0xf]
  %v214 = vld [vmem:[%s1 + $0x2a8] sm:$0xf]
  %v215 = vld [vmem:[%s1 + $0x2ac] sm:$0xf]
  %v216 = vld [vmem:[%s1 + $0x2b0] sm:$0xf]
  %v217 = vld [vmem:[%s1 + $0x2b4] sm:$0xf]
  %v218 = vld [vmem:[%s1 + $0x2b8] sm:$0xf]
  %v219 = vld [vmem:[%s1 + $0x2bc] sm:$0xf]
  %v220 = vld [vmem:[%s1 + $0x2c0] sm:$0xf]
  %v221 = vld [vmem:[%s1 + $0x2c4] sm:$0xf]
  %v222 = vld [vmem:[%s1 + $0x2c8] sm:$0xf]
  %v223 = vld [vmem:[%s1 + $0x2cc] sm:$0xf]
  %v224 = vld [vmem:[%s1 + $0x2d0] sm:$0xf]
  %v225 = vld [vmem:[%s1 + $0x2d4] sm:$0xf]
  %v226 = vld [vmem:[%s1 + $0x2d8] sm:$0xf]
  %v227 = vld [vmem:[%s1 + $0x2dc] sm:$0xf]
  %v228 = vld [vmem:[%s1 + $0x2e0] sm:$0xf]
  %v229 = vld [vmem:[%s1 + $0x2e4] sm:$0xf]
  %v230 = vld [vmem:[%s1 + $0x2e8] sm:$0xf]
  %v231 = vld [vmem:[%s1 + $0x2ec] sm:$0xf]
  %v232 = vld [vmem:[%s1 + $0x2f0] sm:$0xf]
  %v233 = vld [vmem:[%s1 + $0x2f4] sm:$0xf]
  %v234 = vld [vmem:[%s1 + $0x2f8] sm:$0xf]
  %v235 = vld [vmem:[%s1 + $0x2fc] sm:$0xf]
  %v236 = vld [vmem:[%s1 + $0x300] sm:$0xf]
  %v237 = vld [vmem:[%s1 + $0x304] sm:$0xf]
  %v238 = vld [vmem:[%s1 + $0x308] sm:$0xf]
  %v239 = vld [vmem:[%s1 + $0x30c] sm:$0xf]
  %v240 = vld [vmem:[%s1 + $0x310] sm:$0xf]
  %v241 = vld [vmem:[%s1 + $0x314] sm:$0xf]
  %v242 = vld [vmem:[%s1 + $0x318] sm:$0xf]
  %v243 = vld [vmem:[%s1 + $0x31c] sm:$0xf]
  %v244 = vld [vmem:[%s1 + $0x320] sm:$0xf]
  %v245 = vld [vmem:[%s1 + $0x324] sm:$0xf]
  %v246 = vld [vmem:[%s1 + $0x328] sm:$0xf]
  %v247 = vld [vmem:[%s1 + $0x32c] sm:$0xf]
  %v248 = vld [vmem:[%s1 + $0x330] sm:$0xf]
  %v249 = vld [vmem:[%s1 + $0x334] sm:$0xf]
  %v250 = vld [vmem:[%s1 + $0x338] sm:$0xf]
  %v251 = vld [vmem:[%s1 + $0x33c] sm:$0xf]
  %v252 = vld [vmem:[%s1 + $0x340] sm:$0xf]
  %v253 = vld [vmem:[%s1 + $0x344] sm:$0xf]
  %v254 = vld [vmem:[%s1 + $0x348] sm:$0xf]
  %v255 = vld [vmem:[%s1 + $0x34c] sm:$0xf]
  %v256 = vld [vmem:[%s1 + $0x350] sm:$0xf]
  %v257 = vld [vmem:[%s1 + $0x354] sm:$0xf]
  %v258 = vld [vmem:[%s1 + $0x358] sm:$0xf]
  %v259 = vld [vmem:[%s1 + $0x35c] sm:$0xf]
  %v260 = vld [vmem:[%s1 + $0x360] sm:$0xf]
  %v261 = vld [vmem:[%s1 + $0x364] sm:$0xf]
  %v262 = vld [vmem:[%s1 + $0x368] sm:$0xf]
  %v263 = vld [vmem:[%s1 + $0x36c] sm:$0xf]
  %v264 = vld [vmem:[%s1 + $0x370] sm:$0xf]
  %v265 = vld [vmem:[%s1 + $0x374] sm:$0xf]
  %v266 = vld [vmem:[%s1 + $0x378] sm:$0xf]
  %v267 = vld [vmem:[%s1 + $0x37c] sm:$0xf]
  %v268 = vld [vmem:[%s1 + $0x380] sm:$0xf]
  %v269 = vld [vmem:[%s1 + $0x384] sm:$0xf]
  %v270 = vld [vmem:[%s1 + $0x388] sm:$0xf]
  %v271 = vld [vmem:[%s1 + $0x38c] sm:$0xf]
  %v272 = vld [vmem:[%s1 + $0x390] sm:$0xf]
  %v273 = vld [vmem:[%s1 + $0x394] sm:$0xf]
  %v274 = vld [vmem:[%s1 + $0x398] sm:$0xf]
  %v275 = vld [vmem:[%s1 + $0x39c] sm:$0xf]
  %v276 = vld [vmem:[%s1 + $0x3a0] sm:$0xf]
  %v277 = vld [vmem:[%s1 + $0x3a4] sm:$0xf]
  %v278 = vld [vmem:[%s1 + $0x3a8] sm:$0xf]
  %v279 = vld [vmem:[%s1 + $0x3ac] sm:$0xf]
  %v280 = vld [vmem:[%s1 + $0x3b0] sm:$0xf]
  %v281 = vld [vmem:[%s1 + $0x3b4] sm:$0xf]
  %v282 = vld [vmem:[%s1 + $0x3b8] sm:$0xf]
  %v283 = vld [vmem:[%s1 + $0x3bc] sm:$0xf]
  %v284 = vld [vmem:[%s1 + $0x3c0] sm:$0xf]
  %v285 = vld [vmem:[%s1 + $0x3c4] sm:$0xf]
  %v286 = vld [vmem:[%s1 + $0x3c8] sm:$0xf]
  %v287 = vld [vmem:[%s1 + $0x3cc] sm:$0xf]
  %v288 = vld [vmem:[%s1 + $0x3d0] sm:$0xf]
  %v289 = vld [vmem:[%s1 + $0x3d4] sm:$0xf]
  %v290 = vld [vmem:[%s1 + $0x3d8] sm:$0xf]
  %v291 = vld [vmem:[%s1 + $0x3dc] sm:$0xf]
  %v292 = vld [vmem:[%s1 + $0x3e0] sm:$0xf]
  %v293 = vld [vmem:[%s1 + $0x3e4] sm:$0xf]
  %v294 = vld [vmem:[%s1 + $0x3e8] sm:$0xf]
  %v295 = vld [vmem:[%s1 + $0x3ec] sm:$0xf]
  %v296 = vld [vmem:[%s1 + $0x3f0] sm:$0xf]
  %v297 = vld [vmem:[%s1 + $0x3f4] sm:$0xf]
  %v298 = vld [vmem:[%s1 + $0x3f8] sm:$0xf]
  %v299 = vld [vmem:[%s1 + $0x3fc] sm:$0xf]
  %v300 = vld [vmem:[%s1 + $0x400] sm:$0xf]
  %v301 = vld [vmem:[%s1 + $0x404] sm:$0xf]
  %v302 = vld [vmem:[%s1 + $0x408] sm:$0xf]
  %v303 = vld [vmem:[%s1 + $0x40c] sm:$0xf]
  %v304 = vld [vmem:[%s1 + $0x410] sm:$0xf]
  %v305 = vld [vmem:[%s1 + $0x414] sm:$0xf]
  %v306 = vld [vmem:[%s1 + $0x418] sm:$0xf]
  %v307 = vld [vmem:[%s1 + $0x41c] sm:$0xf]
  %v308 = vld [vmem:[%s1 + $0x420] sm:$0xf]
  %v309 = vld [vmem:[%s1 + $0x424] sm:$0xf]
  %v310 = vld [vmem:[%s1 + $0x428] sm:$0xf]
  %v311 = vld [vmem:[%s1 + $0x42c] sm:$0xf]
  %v312 = vld [vmem:[%s1 + $0x430] sm:$0xf]
  %v313 = vld [vmem:[%s1 + $0x434] sm:$0xf]
  %v314 = vld [vmem:[%s1 + $0x438] sm:$0xf]
  %v315 = vld [vmem:[%s1 + $0x43c] sm:$0xf]
  %v316 = vld [vmem:[%s1 + $0x440] sm:$0xf]
  %v317 = vld [vmem:[%s1 + $0x444] sm:$0xf]
  %v318 = vld [vmem:[%s1 + $0x448] sm:$0xf]
  %v319 = vld [vmem:[%s1 + $0x44c] sm:$0xf]
  %v320 = vld [vmem:[%s1 + $0x450] sm:$0xf]
  %v321 = vld [vmem:[%s1 + $0x454] sm:$0xf]
  %v322 = vld [vmem:[%s1 + $0x458] sm:$0xf]
  %v323 = vld [vmem:[%s1 + $0x45c] sm:$0xf]
  %v324 = vld [vmem:[%s1 + $0x460] sm:$0xf]
  %v325 = vld [vmem:[%s1 + $0x464] sm:$0xf]
  %v326 = vld [vmem:[%s1 + $0x468] sm:$0xf]
  %v327 = vld [vmem:[%s1 + $0x46c] sm:$0xf]
  %v328 = vld [vmem:[%s1 + $0x470] sm:$0xf]
  %v329 = vld [vmem:[%s1 + $0x474] sm:$0xf]
  %v330 = vld [vmem:[%s1 + $0x478] sm:$0xf]
  %v331 = vld [vmem:[%s1 + $0x47c] sm:$0xf]
  %v332 = vld [vmem:[%s1 + $0x480] sm:$0xf]
  %v333 = vld [vmem:[%s1 + $0x484] sm:$0xf]
  %v334 = vld [vmem:[%s1 + $0x488] sm:$0xf]
  %v335 = vld [vmem:[%s1 + $0x48c] sm:$0xf]
  %v336 = vld [vmem:[%s1 + $0x490] sm:$0xf]
  %v337 = vld [vmem:[%s1 + $0x494] sm:$0xf]
  %v338 = vld [vmem:[%s1 + $0x498] sm:$0xf]
  %v339 = vld [vmem:[%s1 + $0x49c] sm:$0xf]
  %v340 = vld [vmem:[%s1 + $0x4a0] sm:$0xf]
  %v341 = vld [vmem:[%s1 + $0x4a4] sm:$0xf]
  %v342 = vld [vmem:[%s1 + $0x4a8] sm:$0xf]
  %v343 = vld [vmem:[%s1 + $0x4ac] sm:$0xf]
  %v344 = vld [vmem:[%s1 + $0x4b0] sm:$0xf]
  %v345 = vld [vmem:[%s1 + $0x4b4] sm:$0xf]
  %v346 = vld [vmem:[%s1 + $0x4b8] sm:$0xf]
  %v347 = vld [vmem:[%s1 + $0x4bc] sm:$0xf]
  %v348 = vld [vmem:[%s1 + $0x4c0] sm:$0xf]
  %v349 = vld [vmem:[%s1 + $0x4c4] sm:$0xf]
  %v350 = vld [vmem:[%s1 + $0x4c8] sm:$0xf]
  %v351 = vld [vmem:[%s1 + $0x4cc] sm:$0xf]
  %v352 = vld [vmem:[%s1 + $0x4d0] sm:$0xf]
  %v353 = vld [vmem:[%s1 + $0x4d4] sm:$0xf]
  %v354 = vld [vmem:[%s1 + $0x4d8] sm:$0xf]
  %v355 = vld [vmem:[%s1 + $0x4dc] sm:$0xf]
  %v356 = vld [vmem:[%s1 + $0x4e0] sm:$0xf]
  %v357 = vld [vmem:[%s1 + $0x4e4] sm:$0xf]
  %v358 = vld [vmem:[%s1 + $0x4e8] sm:$0xf]
  %v359 = vld [vmem:[%s1 + $0x4ec] sm:$0xf]
  %v360 = vld [vmem:[%s1 + $0x4f0] sm:$0xf]
  %v361 = vld [vmem:[%s1 + $0x4f4] sm:$0xf]
  %v362 = vld [vmem:[%s1 + $0x4f8] sm:$0xf]
  %v363 = vld [vmem:[%s1 + $0x4fc] sm:$0xf]
  %v364 = vld [vmem:[%s1 + $0x500] sm:$0xf]
  %v365 = vld [vmem:[%s1 + $0x504] sm:$0xf]
  %v366 = vld [vmem:[%s1 + $0x508] sm:$0xf]
  %v367 = vld [vmem:[%s1 + $0x50c] sm:$0xf]
  %v368 = vld [vmem:[%s1 + $0x510] sm:$0xf]
  %v369 = vld [vmem:[%s1 + $0x514] sm:$0xf]
  %v370 = vld [vmem:[%s1 + $0x518] sm:$0xf]
  %v371 = vld [vmem:[%s1 + $0x51c] sm:$0xf]
  %v372 = vld [vmem:[%s1 + $0x520] sm:$0xf]
  %v373 = vld [vmem:[%s1 + $0x524] sm:$0xf]
  %v374 = vld [vmem:[%s1 + $0x528] sm:$0xf]
  %v375 = vld [vmem:[%s1 + $0x52c] sm:$0xf]
  %v376 = vld [vmem:[%s1 + $0x530] sm:$0xf]
  %v377 = vld [vmem:[%s1 + $0x534] sm:$0xf]
  %v378 = vld [vmem:[%s1 + $0x538] sm:$0xf]
  %v379 = vld [vmem:[%s1 + $0x53c] sm:$0xf]
  %v380 = vld [vmem:[%s1 + $0x540] sm:$0xf]
  %v381 = vld [vmem:[%s1 + $0x544] sm:$0xf]
  %v382 = vld [vmem:[%s1 + $0x548] sm:$0xf]
  %v383 = vld [vmem:[%s1 + $0x54c] sm:$0xf]
  %v384 = vld [vmem:[%s1 + $0x550] sm:$0xf]
  %v385 = vld [vmem:[%s1 + $0x554] sm:$0xf]
  %v386 = vld [vmem:[%s1 + $0x558] sm:$0xf]
  %v387 = vld [vmem:[%s1 + $0x55c] sm:$0xf]
  %v388 = vld [vmem:[%s1 + $0x560] sm:$0xf]
  %v389 = vld [vmem:[%s1 + $0x564] sm:$0xf]
  %v390 = vld [vmem:[%s1 + $0x568] sm:$0xf]
  %v391 = vld [vmem:[%s1 + $0x56c] sm:$0xf]
  %v392 = vld [vmem:[%s1 + $0x570] sm:$0xf]
  %v393 = vld [vmem:[%s1 + $0x574] sm:$0xf]
  %v394 = vld [vmem:[%s1 + $0x578] sm:$0xf]
  %v395 = vld [vmem:[%s1 + $0x57c] sm:$0xf]
  %v396 = vld [vmem:[%s1 + $0x580] sm:$0xf]
  %v397 = vld [vmem:[%s1 + $0x584] sm:$0xf]
  %v398 = vld [vmem:[%s1 + $0x588] sm:$0xf]
  %v399 = vld [vmem:[%s1 + $0x58c] sm:$0xf]
  %v400 = vld [vmem:[%s1 + $0x590] sm:$0xf]
  %v401 = vld [vmem:[%s1 + $0x594] sm:$0xf]
  %v402 = vld [vmem:[%s1 + $0x598] sm:$0xf]
  %v403 = vld [vmem:[%s1 + $0x59c] sm:$0xf]
  %v404 = vld [vmem:[%s1 + $0x5a0] sm:$0xf]
  %v405 = vld [vmem:[%s1 + $0x5a4] sm:$0xf]
  %v406 = vld [vmem:[%s1 + $0x5a8] sm:$0xf]
  %v407 = vld [vmem:[%s1 + $0x5ac] sm:$0xf]
  %v408 = vld [vmem:[%s1 + $0x5b0] sm:$0xf]
  %v409 = vld [vmem:[%s1 + $0x5b4] sm:$0xf]
  %v410 = vld [vmem:[%s1 + $0x5b8] sm:$0xf]
  %v411 = vld [vmem:[%s1 + $0x5bc] sm:$0xf]
  %v412 = vld [vmem:[%s1 + $0x5c0] sm:$0xf]
  %v413 = vld [vmem:[%s1 + $0x5c4] sm:$0xf]
  %v414 = vld [vmem:[%s1 + $0x5c8] sm:$0xf]
  %v415 = vld [vmem:[%s1 + $0x5cc] sm:$0xf]
  %v416 = vld [vmem:[%s1 + $0x5d0] sm:$0xf]
  %v417 = vld [vmem:[%s1 + $0x5d4] sm:$0xf]
  %v418 = vld [vmem:[%s1 + $0x5d8] sm:$0xf]
  %v419 = vld [vmem:[%s1 + $0x5dc] sm:$0xf]
  %v420 = vld [vmem:[%s1 + $0x5e0] sm:$0xf]
  %v421 = vld [vmem:[%s1 + $0x5e4] sm:$0xf]
  %v422 = vld [vmem:[%s1 + $0x5e8] sm:$0xf]
  %v423 = vld [vmem:[%s1 + $0x5ec] sm:$0xf]
  %v424 = vld [vmem:[%s1 + $0x5f0] sm:$0xf]
  %v425 = vld [vmem:[%s1 + $0x5f4] sm:$0xf]
  %v426 = vld [vmem:[%s1 + $0x5f8] sm:$0xf]
  %v427 = vld [vmem:[%s1 + $0x5fc] sm:$0xf]
  %v428 = vld [vmem:[%s1 + $0x600] sm:$0xf]
  %v429 = vld [vmem:[%s1 + $0x604] sm:$0xf]
  %v430 = vld [vmem:[%s1 + $0x608] sm:$0xf]
  %v431 = vld [vmem:[%s1 + $0x60c] sm:$0xf]
  %v432 = vld [vmem:[%s1 + $0x610] sm:$0xf]
  %v433 = vld [vmem:[%s1 + $0x614] sm:$0xf]
  %v434 = vld [vmem:[%s1 + $0x618] sm:$0xf]
  %v435 = vld [vmem:[%s1 + $0x61c] sm:$0xf]
  %v436 = vld [vmem:[%s1 + $0x620] sm:$0xf]
  %v437 = vld [vmem:[%s1 + $0x624] sm:$0xf]
  %v438 = vld [vmem:[%s1 + $0x628] sm:$0xf]
  %v439 = vld [vmem:[%s1 + $0x62c] sm:$0xf]
  %v440 = vld [vmem:[%s1 + $0x630] sm:$0xf]
  %v441 = vld [vmem:[%s1 + $0x634] sm:$0xf]
  %v442 = vld [vmem:[%s1 + $0x638] sm:$0xf]
  %v443 = vld [vmem:[%s1 + $0x63c] sm:$0xf]
  %v444 = vld [vmem:[%s2] sm:$0x1]
  %v446 = vlaneseq
  %v447 = vshrl.u32 %v446, 7
  %v448 = vsub.s32 0, %v447
  %v449 = vrot.slane %v444, %v448
  %v477 = vunpack.c.l.b16 %v18
  %v478 = vunpack.c.h.b16 %v18
  %v479 = vunpack.c.l.b16 %v19
  %v480 = vunpack.c.h.b16 %v19
  %v481 = vunpack.c.l.b16 %v20
  %v482 = vunpack.c.h.b16 %v20
  %v483 = vunpack.c.l.b16 %v21
  %v484 = vunpack.c.h.b16 %v21
  %v485 = vunpack.c.l.b16 %v22
  %v486 = vunpack.c.h.b16 %v22
  %v487 = vunpack.c.l.b16 %v23
  %v488 = vunpack.c.h.b16 %v23
  %v489 = vunpack.c.l.b16 %v24
  %v490 = vunpack.c.h.b16 %v24
  %v491 = vunpack.c.l.b16 %v25
  %v492 = vunpack.c.h.b16 %v25
  %v493 = vunpack.c.l.b16 %v26
  %v494 = vunpack.c.h.b16 %v26
  %v495 = vunpack.c.l.b16 %v27
  %v496 = vunpack.c.h.b16 %v27
  %v497 = vunpack.c.l.b16 %v28
  %v498 = vunpack.c.h.b16 %v28
  %v499 = vunpack.c.l.b16 %v29
  %v500 = vunpack.c.h.b16 %v29
  %v501 = vunpack.c.l.b16 %v30
  %v502 = vunpack.c.l.b16 %v31
  %v503 = vunpack.c.h.b16 %v31
  %v504 = vunpack.c.l.b16 %v32
  %v505 = vunpack.c.h.b16 %v32
  %v506 = vunpack.c.l.b16 %v33
  %v507 = vunpack.c.h.b16 %v33
  %v508 = vunpack.c.l.b16 %v34
  %v509 = vunpack.c.h.b16 %v34
  %v510 = vunpack.c.l.b16 %v35
  %v511 = vunpack.c.h.b16 %v35
  %v512 = vunpack.c.l.b16 %v36
  %v513 = vunpack.c.h.b16 %v36
  %v514 = vunpack.c.l.b16 %v37
  %v515 = vunpack.c.h.b16 %v37
  %v516 = vunpack.c.l.b16 %v38
  %v517 = vunpack.c.h.b16 %v38
  %v518 = vunpack.c.l.b16 %v39
  %v519 = vunpack.c.h.b16 %v39
  %v520 = vunpack.c.l.b16 %v40
  %v521 = vunpack.c.h.b16 %v40
  %v522 = vunpack.c.l.b16 %v41
  %v523 = vunpack.c.h.b16 %v41
  %v524 = vunpack.c.l.b16 %v42
  %v525 = vunpack.c.h.b16 %v42
  %v526 = vunpack.c.l.b16 %v43
  %v527 = vpack.c.b16 %v502, %v477
  %v528 = vpack.c.b16 %v503, %v478
  %v529 = vpack.c.b16 %v504, %v479
  %v530 = vpack.c.b16 %v505, %v480
  %v531 = vpack.c.b16 %v506, %v481
  %v532 = vpack.c.b16 %v507, %v482
  %v533 = vpack.c.b16 %v508, %v483
  %v534 = vpack.c.b16 %v509, %v484
  %v535 = vpack.c.b16 %v510, %v485
  %v536 = vpack.c.b16 %v511, %v486
  %v537 = vpack.c.b16 %v512, %v487
  %v538 = vpack.c.b16 %v513, %v488
  %v539 = vpack.c.b16 %v514, %v489
  %v540 = vpack.c.b16 %v515, %v490
  %v541 = vpack.c.b16 %v516, %v491
  %v542 = vpack.c.b16 %v517, %v492
  %v543 = vpack.c.b16 %v518, %v493
  %v544 = vpack.c.b16 %v519, %v494
  %v545 = vpack.c.b16 %v520, %v495
  %v546 = vpack.c.b16 %v521, %v496
  %v547 = vpack.c.b16 %v522, %v497
  %v548 = vpack.c.b16 %v523, %v498
  %v549 = vpack.c.b16 %v524, %v499
  %v550 = vpack.c.b16 %v525, %v500
  %v551 = vpack.c.b16 %v526, %v501
  %v977 = vunpack.c.l.b16 %v44
  %v978 = vunpack.c.l.b16 %v45
  %v979 = vunpack.c.l.b16 %v46
  %v980 = vunpack.c.l.b16 %v47
  %v981 = vunpack.c.l.b16 %v48
  %v982 = vunpack.c.l.b16 %v49
  %v983 = vunpack.c.l.b16 %v50
  %v984 = vunpack.c.l.b16 %v51
  %v985 = vunpack.c.l.b16 %v52
  %v986 = vunpack.c.l.b16 %v53
  %v987 = vunpack.c.l.b16 %v54
  %v988 = vunpack.c.l.b16 %v55
  %v989 = vunpack.c.l.b16 %v56
  %v990 = vunpack.c.l.b16 %v57
  %v991 = vunpack.c.l.b16 %v58
  %v992 = vunpack.c.l.b16 %v59
  %v993 = vunpack.c.l.b16 %v60
  %v994 = vunpack.c.l.b16 %v61
  %v995 = vunpack.c.l.b16 %v62
  %v996 = vunpack.c.l.b16 %v63
  %v997 = vunpack.c.l.b16 %v64
  %v998 = vunpack.c.l.b16 %v65
  %v999 = vunpack.c.l.b16 %v66
  %v1000 = vunpack.c.l.b16 %v67
  %v1001 = vunpack.c.l.b16 %v68
  %v1002 = vunpack.c.l.b16 %v69
  %v1003 = vunpack.c.l.b16 %v70
  %v1004 = vunpack.c.l.b16 %v71
  %v1005 = vunpack.c.l.b16 %v72
  %v1006 = vunpack.c.l.b16 %v73
  %v1007 = vunpack.c.l.b16 %v74
  %v1008 = vunpack.c.l.b16 %v75
  %v1009 = vunpack.c.l.b16 %v76
  %v1010 = vunpack.c.l.b16 %v77
  %v1011 = vunpack.c.l.b16 %v78
  %v1012 = vunpack.c.l.b16 %v79
  %v1013 = vunpack.c.l.b16 %v80
  %v1014 = vunpack.c.l.b16 %v81
  %v1015 = vunpack.c.l.b16 %v82
  %v1016 = vunpack.c.l.b16 %v83
  %v1017 = vunpack.c.l.b16 %v84
  %v1018 = vunpack.c.l.b16 %v85
  %v1019 = vunpack.c.l.b16 %v86
  %v1020 = vunpack.c.l.b16 %v87
  %v1021 = vunpack.c.l.b16 %v88
  %v1022 = vunpack.c.l.b16 %v89
  %v1023 = vunpack.c.l.b16 %v90
  %v1024 = vunpack.c.l.b16 %v91
  %v1025 = vunpack.c.l.b16 %v92
  %v1026 = vunpack.c.l.b16 %v93
  %v1027 = vunpack.c.l.b16 %v94
  %v1028 = vunpack.c.l.b16 %v95
  %v1029 = vunpack.c.l.b16 %v96
  %v1030 = vunpack.c.l.b16 %v97
  %v1031 = vunpack.c.l.b16 %v98
  %v1032 = vunpack.c.l.b16 %v99
  %v1033 = vunpack.c.l.b16 %v100
  %v1034 = vunpack.c.l.b16 %v101
  %v1035 = vunpack.c.l.b16 %v102
  %v1036 = vunpack.c.l.b16 %v103
  %v1037 = vunpack.c.l.b16 %v104
  %v1038 = vunpack.c.l.b16 %v105
  %v1039 = vunpack.c.l.b16 %v106
  %v1040 = vunpack.c.l.b16 %v107
  %v1041 = vunpack.c.l.b16 %v108
  %v1042 = vunpack.c.l.b16 %v109
  %v1043 = vunpack.c.l.b16 %v110
  %v1044 = vunpack.c.l.b16 %v111
  %v1045 = vunpack.c.l.b16 %v112
  %v1046 = vunpack.c.l.b16 %v113
  %v1047 = vunpack.c.l.b16 %v114
  %v1048 = vunpack.c.l.b16 %v115
  %v1049 = vunpack.c.l.b16 %v116
  %v1050 = vunpack.c.l.b16 %v117
  %v1051 = vunpack.c.l.b16 %v118
  %v1052 = vunpack.c.l.b16 %v119
  %v1053 = vunpack.c.l.b16 %v120
  %v1054 = vunpack.c.l.b16 %v121
  %v1055 = vunpack.c.l.b16 %v122
  %v1056 = vunpack.c.l.b16 %v123
  %v1057 = vunpack.c.l.b16 %v124
  %v1058 = vunpack.c.l.b16 %v125
  %v1059 = vunpack.c.l.b16 %v126
  %v1060 = vunpack.c.l.b16 %v127
  %v1061 = vunpack.c.l.b16 %v128
  %v1062 = vunpack.c.l.b16 %v129
  %v1063 = vunpack.c.l.b16 %v130
  %v1064 = vunpack.c.l.b16 %v131
  %v1065 = vunpack.c.l.b16 %v132
  %v1066 = vunpack.c.l.b16 %v133
  %v1067 = vunpack.c.l.b16 %v134
  %v1068 = vunpack.c.l.b16 %v135
  %v1069 = vunpack.c.l.b16 %v136
  %v1070 = vunpack.c.l.b16 %v137
  %v1071 = vunpack.c.l.b16 %v138
  %v1072 = vunpack.c.l.b16 %v139
  %v1073 = vunpack.c.l.b16 %v140
  %v1074 = vunpack.c.l.b16 %v141
  %v1075 = vunpack.c.l.b16 %v142
  %v1076 = vunpack.c.l.b16 %v143
  %v1077 = vunpack.c.l.b16 %v144
  %v1078 = vunpack.c.l.b16 %v145
  %v1079 = vunpack.c.l.b16 %v146
  %v1080 = vunpack.c.l.b16 %v147
  %v1081 = vunpack.c.l.b16 %v148
  %v1082 = vunpack.c.l.b16 %v149
  %v1083 = vunpack.c.l.b16 %v150
  %v1084 = vunpack.c.l.b16 %v151
  %v1085 = vunpack.c.l.b16 %v152
  %v1086 = vunpack.c.l.b16 %v153
  %v1087 = vunpack.c.l.b16 %v154
  %v1088 = vunpack.c.l.b16 %v155
  %v1089 = vunpack.c.l.b16 %v156
  %v1090 = vunpack.c.l.b16 %v157
  %v1091 = vunpack.c.l.b16 %v158
  %v1092 = vunpack.c.l.b16 %v159
  %v1093 = vunpack.c.l.b16 %v160
  %v1094 = vunpack.c.l.b16 %v161
  %v1095 = vunpack.c.l.b16 %v162
  %v1096 = vunpack.c.l.b16 %v163
  %v1097 = vunpack.c.l.b16 %v164
  %v1098 = vunpack.c.l.b16 %v165
  %v1099 = vunpack.c.l.b16 %v166
  %v1100 = vunpack.c.l.b16 %v167
  %v1101 = vunpack.c.l.b16 %v168
  %v1102 = vunpack.c.l.b16 %v169
  %v1103 = vunpack.c.l.b16 %v170
  %v1104 = vunpack.c.l.b16 %v171
  %v1105 = vunpack.c.l.b16 %v172
  %v1106 = vunpack.c.l.b16 %v173
  %v1107 = vunpack.c.l.b16 %v174
  %v1108 = vunpack.c.l.b16 %v175
  %v1109 = vunpack.c.l.b16 %v176
  %v1110 = vunpack.c.l.b16 %v177
  %v1111 = vunpack.c.l.b16 %v178
  %v1112 = vunpack.c.l.b16 %v179
  %v1113 = vunpack.c.l.b16 %v180
  %v1114 = vunpack.c.l.b16 %v181
  %v1115 = vunpack.c.l.b16 %v182
  %v1116 = vunpack.c.l.b16 %v183
  %v1117 = vunpack.c.l.b16 %v184
  %v1118 = vunpack.c.l.b16 %v185
  %v1119 = vunpack.c.l.b16 %v186
  %v1120 = vunpack.c.l.b16 %v187
  %v1121 = vunpack.c.l.b16 %v188
  %v1122 = vunpack.c.l.b16 %v189
  %v1123 = vunpack.c.l.b16 %v190
  %v1124 = vunpack.c.l.b16 %v191
  %v1125 = vunpack.c.l.b16 %v192
  %v1126 = vunpack.c.l.b16 %v193
  %v1127 = vunpack.c.l.b16 %v194
  %v1128 = vunpack.c.l.b16 %v195
  %v1129 = vunpack.c.l.b16 %v196
  %v1130 = vunpack.c.l.b16 %v197
  %v1131 = vunpack.c.l.b16 %v198
  %v1132 = vunpack.c.l.b16 %v199
  %v1133 = vunpack.c.l.b16 %v200
  %v1134 = vunpack.c.l.b16 %v201
  %v1135 = vunpack.c.l.b16 %v202
  %v1136 = vunpack.c.l.b16 %v203
  %v1137 = vunpack.c.l.b16 %v204
  %v1138 = vunpack.c.l.b16 %v205
  %v1139 = vunpack.c.l.b16 %v206
  %v1140 = vunpack.c.l.b16 %v207
  %v1141 = vunpack.c.l.b16 %v208
  %v1142 = vunpack.c.l.b16 %v209
  %v1143 = vunpack.c.l.b16 %v210
  %v1144 = vunpack.c.l.b16 %v211
  %v1145 = vunpack.c.l.b16 %v212
  %v1146 = vunpack.c.l.b16 %v213
  %v1147 = vunpack.c.l.b16 %v214
  %v1148 = vunpack.c.l.b16 %v215
  %v1149 = vunpack.c.l.b16 %v216
  %v1150 = vunpack.c.l.b16 %v217
  %v1151 = vunpack.c.l.b16 %v218
  %v1152 = vunpack.c.l.b16 %v219
  %v1153 = vunpack.c.l.b16 %v220
  %v1154 = vunpack.c.l.b16 %v221
  %v1155 = vunpack.c.l.b16 %v222
  %v1156 = vunpack.c.l.b16 %v223
  %v1157 = vunpack.c.l.b16 %v224
  %v1158 = vunpack.c.l.b16 %v225
  %v1159 = vunpack.c.l.b16 %v226
  %v1160 = vunpack.c.l.b16 %v227
  %v1161 = vunpack.c.l.b16 %v228
  %v1162 = vunpack.c.l.b16 %v229
  %v1163 = vunpack.c.l.b16 %v230
  %v1164 = vunpack.c.l.b16 %v231
  %v1165 = vunpack.c.l.b16 %v232
  %v1166 = vunpack.c.l.b16 %v233
  %v1167 = vunpack.c.l.b16 %v234
  %v1168 = vunpack.c.l.b16 %v235
  %v1169 = vunpack.c.l.b16 %v236
  %v1170 = vunpack.c.l.b16 %v237
  %v1171 = vunpack.c.l.b16 %v238
  %v1172 = vunpack.c.l.b16 %v239
  %v1173 = vunpack.c.l.b16 %v240
  %v1174 = vunpack.c.l.b16 %v241
  %v1175 = vunpack.c.l.b16 %v242
  %v1176 = vunpack.c.l.b16 %v243
  %v1177 = vunpack.c.l.b16 %v244
  %v1178 = vunpack.c.l.b16 %v245
  %v1179 = vunpack.c.l.b16 %v246
  %v1180 = vunpack.c.l.b16 %v247
  %v1181 = vunpack.c.l.b16 %v248
  %v1182 = vunpack.c.l.b16 %v249
  %v1183 = vunpack.c.l.b16 %v250
  %v1184 = vunpack.c.l.b16 %v251
  %v1185 = vunpack.c.l.b16 %v252
  %v1186 = vunpack.c.l.b16 %v253
  %v1187 = vunpack.c.l.b16 %v254
  %v1188 = vunpack.c.l.b16 %v255
  %v1189 = vunpack.c.l.b16 %v256
  %v1190 = vunpack.c.l.b16 %v257
  %v1191 = vunpack.c.l.b16 %v258
  %v1192 = vunpack.c.l.b16 %v259
  %v1193 = vunpack.c.l.b16 %v260
  %v1194 = vunpack.c.l.b16 %v261
  %v1195 = vunpack.c.l.b16 %v262
  %v1196 = vunpack.c.l.b16 %v263
  %v1197 = vunpack.c.l.b16 %v264
  %v1198 = vunpack.c.l.b16 %v265
  %v1199 = vunpack.c.l.b16 %v266
  %v1200 = vunpack.c.l.b16 %v267
  %v1201 = vunpack.c.l.b16 %v268
  %v1202 = vunpack.c.l.b16 %v269
  %v1203 = vunpack.c.l.b16 %v270
  %v1204 = vunpack.c.l.b16 %v271
  %v1205 = vunpack.c.l.b16 %v272
  %v1206 = vunpack.c.l.b16 %v273
  %v1207 = vunpack.c.l.b16 %v274
  %v1208 = vunpack.c.l.b16 %v275
  %v1209 = vunpack.c.l.b16 %v276
  %v1210 = vunpack.c.l.b16 %v277
  %v1211 = vunpack.c.l.b16 %v278
  %v1212 = vunpack.c.l.b16 %v279
  %v1213 = vunpack.c.l.b16 %v280
  %v1214 = vunpack.c.l.b16 %v281
  %v1215 = vunpack.c.l.b16 %v282
  %v1216 = vunpack.c.l.b16 %v283
  %v1217 = vunpack.c.l.b16 %v284
  %v1218 = vunpack.c.l.b16 %v285
  %v1219 = vunpack.c.l.b16 %v286
  %v1220 = vunpack.c.l.b16 %v287
  %v1221 = vunpack.c.l.b16 %v288
  %v1222 = vunpack.c.l.b16 %v289
  %v1223 = vunpack.c.l.b16 %v290
  %v1224 = vunpack.c.l.b16 %v291
  %v1225 = vunpack.c.l.b16 %v292
  %v1226 = vunpack.c.l.b16 %v293
  %v1227 = vunpack.c.l.b16 %v294
  %v1228 = vunpack.c.l.b16 %v295
  %v1229 = vunpack.c.l.b16 %v296
  %v1230 = vunpack.c.l.b16 %v297
  %v1231 = vunpack.c.l.b16 %v298
  %v1232 = vunpack.c.l.b16 %v299
  %v1233 = vunpack.c.l.b16 %v300
  %v1234 = vunpack.c.l.b16 %v301
  %v1235 = vunpack.c.l.b16 %v302
  %v1236 = vunpack.c.l.b16 %v303
  %v1237 = vunpack.c.l.b16 %v304
  %v1238 = vunpack.c.l.b16 %v305
  %v1239 = vunpack.c.l.b16 %v306
  %v1240 = vunpack.c.l.b16 %v307
  %v1241 = vunpack.c.l.b16 %v308
  %v1242 = vunpack.c.l.b16 %v309
  %v1243 = vunpack.c.l.b16 %v310
  %v1244 = vunpack.c.l.b16 %v311
  %v1245 = vunpack.c.l.b16 %v312
  %v1246 = vunpack.c.l.b16 %v313
  %v1247 = vunpack.c.l.b16 %v314
  %v1248 = vunpack.c.l.b16 %v315
  %v1249 = vunpack.c.l.b16 %v316
  %v1250 = vunpack.c.l.b16 %v317
  %v1251 = vunpack.c.l.b16 %v318
  %v1252 = vunpack.c.l.b16 %v319
  %v1253 = vunpack.c.l.b16 %v320
  %v1254 = vunpack.c.l.b16 %v321
  %v1255 = vunpack.c.l.b16 %v322
  %v1256 = vunpack.c.l.b16 %v323
  %v1257 = vunpack.c.l.b16 %v324
  %v1258 = vunpack.c.l.b16 %v325
  %v1259 = vunpack.c.l.b16 %v326
  %v1260 = vunpack.c.l.b16 %v327
  %v1261 = vunpack.c.l.b16 %v328
  %v1262 = vunpack.c.l.b16 %v329
  %v1263 = vunpack.c.l.b16 %v330
  %v1264 = vunpack.c.l.b16 %v331
  %v1265 = vunpack.c.l.b16 %v332
  %v1266 = vunpack.c.l.b16 %v333
  %v1267 = vunpack.c.l.b16 %v334
  %v1268 = vunpack.c.l.b16 %v335
  %v1269 = vunpack.c.l.b16 %v336
  %v1270 = vunpack.c.l.b16 %v337
  %v1271 = vunpack.c.l.b16 %v338
  %v1272 = vunpack.c.l.b16 %v339
  %v1273 = vunpack.c.l.b16 %v340
  %v1274 = vunpack.c.l.b16 %v341
  %v1275 = vunpack.c.l.b16 %v342
  %v1276 = vunpack.c.l.b16 %v343
  %v1277 = vunpack.c.l.b16 %v344
  %v1278 = vunpack.c.l.b16 %v345
  %v1279 = vunpack.c.l.b16 %v346
  %v1280 = vunpack.c.l.b16 %v347
  %v1281 = vunpack.c.l.b16 %v348
  %v1282 = vunpack.c.l.b16 %v349
  %v1283 = vunpack.c.l.b16 %v350
  %v1284 = vunpack.c.l.b16 %v351
  %v1285 = vunpack.c.l.b16 %v352
  %v1286 = vunpack.c.l.b16 %v353
  %v1287 = vunpack.c.l.b16 %v354
  %v1288 = vunpack.c.l.b16 %v355
  %v1289 = vunpack.c.l.b16 %v356
  %v1290 = vunpack.c.l.b16 %v357
  %v1291 = vunpack.c.l.b16 %v358
  %v1292 = vunpack.c.l.b16 %v359
  %v1293 = vunpack.c.l.b16 %v360
  %v1294 = vunpack.c.l.b16 %v361
  %v1295 = vunpack.c.l.b16 %v362
  %v1296 = vunpack.c.l.b16 %v363
  %v1297 = vunpack.c.l.b16 %v364
  %v1298 = vunpack.c.l.b16 %v365
  %v1299 = vunpack.c.l.b16 %v366
  %v1300 = vunpack.c.l.b16 %v367
  %v1301 = vunpack.c.l.b16 %v368
  %v1302 = vunpack.c.l.b16 %v369
  %v1303 = vunpack.c.l.b16 %v370
  %v1304 = vunpack.c.l.b16 %v371
  %v1305 = vunpack.c.l.b16 %v372
  %v1306 = vunpack.c.l.b16 %v373
  %v1307 = vunpack.c.l.b16 %v374
  %v1308 = vunpack.c.l.b16 %v375
  %v1309 = vunpack.c.l.b16 %v376
  %v1310 = vunpack.c.l.b16 %v377
  %v1311 = vunpack.c.l.b16 %v378
  %v1312 = vunpack.c.l.b16 %v379
  %v1313 = vunpack.c.l.b16 %v380
  %v1314 = vunpack.c.l.b16 %v381
  %v1315 = vunpack.c.l.b16 %v382
  %v1316 = vunpack.c.l.b16 %v383
  %v1317 = vunpack.c.l.b16 %v384
  %v1318 = vunpack.c.l.b16 %v385
  %v1319 = vunpack.c.l.b16 %v386
  %v1320 = vunpack.c.l.b16 %v387
  %v1321 = vunpack.c.l.b16 %v388
  %v1322 = vunpack.c.l.b16 %v389
  %v1323 = vunpack.c.l.b16 %v390
  %v1324 = vunpack.c.l.b16 %v391
  %v1325 = vunpack.c.l.b16 %v392
  %v1326 = vunpack.c.l.b16 %v393
  %v1327 = vunpack.c.l.b16 %v394
  %v1328 = vunpack.c.l.b16 %v395
  %v1329 = vunpack.c.l.b16 %v396
  %v1330 = vunpack.c.l.b16 %v397
  %v1331 = vunpack.c.l.b16 %v398
  %v1332 = vunpack.c.l.b16 %v399
  %v1333 = vunpack.c.l.b16 %v400
  %v1334 = vunpack.c.l.b16 %v401
  %v1335 = vunpack.c.l.b16 %v402
  %v1336 = vunpack.c.l.b16 %v403
  %v1337 = vunpack.c.l.b16 %v404
  %v1338 = vunpack.c.l.b16 %v405
  %v1339 = vunpack.c.l.b16 %v406
  %v1340 = vunpack.c.l.b16 %v407
  %v1341 = vunpack.c.l.b16 %v408
  %v1342 = vunpack.c.l.b16 %v409
  %v1343 = vunpack.c.l.b16 %v410
  %v1344 = vunpack.c.l.b16 %v411
  %v1345 = vunpack.c.l.b16 %v412
  %v1346 = vunpack.c.l.b16 %v413
  %v1347 = vunpack.c.l.b16 %v414
  %v1348 = vunpack.c.l.b16 %v415
  %v1349 = vunpack.c.l.b16 %v416
  %v1350 = vunpack.c.l.b16 %v417
  %v1351 = vunpack.c.l.b16 %v418
  %v1352 = vunpack.c.l.b16 %v419
  %v1353 = vunpack.c.l.b16 %v420
  %v1354 = vunpack.c.l.b16 %v421
  %v1355 = vunpack.c.l.b16 %v422
  %v1356 = vunpack.c.l.b16 %v423
  %v1357 = vunpack.c.l.b16 %v424
  %v1358 = vunpack.c.l.b16 %v425
  %v1359 = vunpack.c.l.b16 %v426
  %v1360 = vunpack.c.l.b16 %v427
  %v1361 = vunpack.c.l.b16 %v428
  %v1362 = vunpack.c.l.b16 %v429
  %v1363 = vunpack.c.l.b16 %v430
  %v1364 = vunpack.c.l.b16 %v431
  %v1365 = vunpack.c.l.b16 %v432
  %v1366 = vunpack.c.l.b16 %v433
  %v1367 = vunpack.c.l.b16 %v434
  %v1368 = vunpack.c.l.b16 %v435
  %v1369 = vunpack.c.l.b16 %v436
  %v1370 = vunpack.c.l.b16 %v437
  %v1371 = vunpack.c.l.b16 %v438
  %v1372 = vunpack.c.l.b16 %v439
  %v1373 = vunpack.c.l.b16 %v440
  %v1374 = vunpack.c.l.b16 %v441
  %v1375 = vunpack.c.l.b16 %v442
  %v1376 = vunpack.c.l.b16 %v443
  %v1377 = vpack.c.b16 %v978, %v977
  %v1378 = vpack.c.b16 %v980, %v979
  %v1379 = vpack.c.b16 %v982, %v981
  %v1380 = vpack.c.b16 %v984, %v983
  %v1381 = vpack.c.b16 %v986, %v985
  %v1382 = vpack.c.b16 %v988, %v987
  %v1383 = vpack.c.b16 %v990, %v989
  %v1384 = vpack.c.b16 %v992, %v991
  %v1385 = vpack.c.b16 %v994, %v993
  %v1386 = vpack.c.b16 %v996, %v995
  %v1387 = vpack.c.b16 %v998, %v997
  %v1388 = vpack.c.b16 %v1000, %v999
  %v1389 = vpack.c.b16 %v1002, %v1001
  %v1390 = vpack.c.b16 %v1004, %v1003
  %v1391 = vpack.c.b16 %v1006, %v1005
  %v1392 = vpack.c.b16 %v1008, %v1007
  %v1393 = vpack.c.b16 %v1010, %v1009
  %v1394 = vpack.c.b16 %v1012, %v1011
  %v1395 = vpack.c.b16 %v1014, %v1013
  %v1396 = vpack.c.b16 %v1016, %v1015
  %v1397 = vpack.c.b16 %v1018, %v1017
  %v1398 = vpack.c.b16 %v1020, %v1019
  %v1399 = vpack.c.b16 %v1022, %v1021
  %v1400 = vpack.c.b16 %v1024, %v1023
  %v1401 = vpack.c.b16 %v1026, %v1025
  %v1402 = vpack.c.b16 %v1028, %v1027
  %v1403 = vpack.c.b16 %v1030, %v1029
  %v1404 = vpack.c.b16 %v1032, %v1031
  %v1405 = vpack.c.b16 %v1034, %v1033
  %v1406 = vpack.c.b16 %v1036, %v1035
  %v1407 = vpack.c.b16 %v1038, %v1037
  %v1408 = vpack.c.b16 %v1040, %v1039
  %v1409 = vpack.c.b16 %v1042, %v1041
  %v1410 = vpack.c.b16 %v1044, %v1043
  %v1411 = vpack.c.b16 %v1046, %v1045
  %v1412 = vpack.c.b16 %v1048, %v1047
  %v1413 = vpack.c.b16 %v1050, %v1049
  %v1414 = vpack.c.b16 %v1052, %v1051
  %v1415 = vpack.c.b16 %v1054, %v1053
  %v1416 = vpack.c.b16 %v1056, %v1055
  %v1417 = vpack.c.b16 %v1058, %v1057
  %v1418 = vpack.c.b16 %v1060, %v1059
  %v1419 = vpack.c.b16 %v1062, %v1061
  %v1420 = vpack.c.b16 %v1064, %v1063
  %v1421 = vpack.c.b16 %v1066, %v1065
  %v1422 = vpack.c.b16 %v1068, %v1067
  %v1423 = vpack.c.b16 %v1070, %v1069
  %v1424 = vpack.c.b16 %v1072, %v1071
  %v1425 = vpack.c.b16 %v1074, %v1073
  %v1426 = vpack.c.b16 %v1076, %v1075
  %v1427 = vpack.c.b16 %v1078, %v1077
  %v1428 = vpack.c.b16 %v1080, %v1079
  %v1429 = vpack.c.b16 %v1082, %v1081
  %v1430 = vpack.c.b16 %v1084, %v1083
  %v1431 = vpack.c.b16 %v1086, %v1085
  %v1432 = vpack.c.b16 %v1088, %v1087
  %v1433 = vpack.c.b16 %v1090, %v1089
  %v1434 = vpack.c.b16 %v1092, %v1091
  %v1435 = vpack.c.b16 %v1094, %v1093
  %v1436 = vpack.c.b16 %v1096, %v1095
  %v1437 = vpack.c.b16 %v1098, %v1097
  %v1438 = vpack.c.b16 %v1100, %v1099
  %v1439 = vpack.c.b16 %v1102, %v1101
  %v1440 = vpack.c.b16 %v1104, %v1103
  %v1441 = vpack.c.b16 %v1106, %v1105
  %v1442 = vpack.c.b16 %v1108, %v1107
  %v1443 = vpack.c.b16 %v1110, %v1109
  %v1444 = vpack.c.b16 %v1112, %v1111
  %v1445 = vpack.c.b16 %v1114, %v1113
  %v1446 = vpack.c.b16 %v1116, %v1115
  %v1447 = vpack.c.b16 %v1118, %v1117
  %v1448 = vpack.c.b16 %v1120, %v1119
  %v1449 = vpack.c.b16 %v1122, %v1121
  %v1450 = vpack.c.b16 %v1124, %v1123
  %v1451 = vpack.c.b16 %v1126, %v1125
  %v1452 = vpack.c.b16 %v1128, %v1127
  %v1453 = vpack.c.b16 %v1130, %v1129
  %v1454 = vpack.c.b16 %v1132, %v1131
  %v1455 = vpack.c.b16 %v1134, %v1133
  %v1456 = vpack.c.b16 %v1136, %v1135
  %v1457 = vpack.c.b16 %v1138, %v1137
  %v1458 = vpack.c.b16 %v1140, %v1139
  %v1459 = vpack.c.b16 %v1142, %v1141
  %v1460 = vpack.c.b16 %v1144, %v1143
  %v1461 = vpack.c.b16 %v1146, %v1145
  %v1462 = vpack.c.b16 %v1148, %v1147
  %v1463 = vpack.c.b16 %v1150, %v1149
  %v1464 = vpack.c.b16 %v1152, %v1151
  %v1465 = vpack.c.b16 %v1154, %v1153
  %v1466 = vpack.c.b16 %v1156, %v1155
  %v1467 = vpack.c.b16 %v1158, %v1157
  %v1468 = vpack.c.b16 %v1160, %v1159
  %v1469 = vpack.c.b16 %v1162, %v1161
  %v1470 = vpack.c.b16 %v1164, %v1163
  %v1471 = vpack.c.b16 %v1166, %v1165
  %v1472 = vpack.c.b16 %v1168, %v1167
  %v1473 = vpack.c.b16 %v1170, %v1169
  %v1474 = vpack.c.b16 %v1172, %v1171
  %v1475 = vpack.c.b16 %v1174, %v1173
  %v1476 = vpack.c.b16 %v1176, %v1175
  %v1477 = vpack.c.b16 %v1178, %v1177
  %v1478 = vpack.c.b16 %v1180, %v1179
  %v1479 = vpack.c.b16 %v1182, %v1181
  %v1480 = vpack.c.b16 %v1184, %v1183
  %v1481 = vpack.c.b16 %v1186, %v1185
  %v1482 = vpack.c.b16 %v1188, %v1187
  %v1483 = vpack.c.b16 %v1190, %v1189
  %v1484 = vpack.c.b16 %v1192, %v1191
  %v1485 = vpack.c.b16 %v1194, %v1193
  %v1486 = vpack.c.b16 %v1196, %v1195
  %v1487 = vpack.c.b16 %v1198, %v1197
  %v1488 = vpack.c.b16 %v1200, %v1199
  %v1489 = vpack.c.b16 %v1202, %v1201
  %v1490 = vpack.c.b16 %v1204, %v1203
  %v1491 = vpack.c.b16 %v1206, %v1205
  %v1492 = vpack.c.b16 %v1208, %v1207
  %v1493 = vpack.c.b16 %v1210, %v1209
  %v1494 = vpack.c.b16 %v1212, %v1211
  %v1495 = vpack.c.b16 %v1214, %v1213
  %v1496 = vpack.c.b16 %v1216, %v1215
  %v1497 = vpack.c.b16 %v1218, %v1217
  %v1498 = vpack.c.b16 %v1220, %v1219
  %v1499 = vpack.c.b16 %v1222, %v1221
  %v1500 = vpack.c.b16 %v1224, %v1223
  %v1501 = vpack.c.b16 %v1226, %v1225
  %v1502 = vpack.c.b16 %v1228, %v1227
  %v1503 = vpack.c.b16 %v1230, %v1229
  %v1504 = vpack.c.b16 %v1232, %v1231
  %v1505 = vpack.c.b16 %v1234, %v1233
  %v1506 = vpack.c.b16 %v1236, %v1235
  %v1507 = vpack.c.b16 %v1238, %v1237
  %v1508 = vpack.c.b16 %v1240, %v1239
  %v1509 = vpack.c.b16 %v1242, %v1241
  %v1510 = vpack.c.b16 %v1244, %v1243
  %v1511 = vpack.c.b16 %v1246, %v1245
  %v1512 = vpack.c.b16 %v1248, %v1247
  %v1513 = vpack.c.b16 %v1250, %v1249
  %v1514 = vpack.c.b16 %v1252, %v1251
  %v1515 = vpack.c.b16 %v1254, %v1253
  %v1516 = vpack.c.b16 %v1256, %v1255
  %v1517 = vpack.c.b16 %v1258, %v1257
  %v1518 = vpack.c.b16 %v1260, %v1259
  %v1519 = vpack.c.b16 %v1262, %v1261
  %v1520 = vpack.c.b16 %v1264, %v1263
  %v1521 = vpack.c.b16 %v1266, %v1265
  %v1522 = vpack.c.b16 %v1268, %v1267
  %v1523 = vpack.c.b16 %v1270, %v1269
  %v1524 = vpack.c.b16 %v1272, %v1271
  %v1525 = vpack.c.b16 %v1274, %v1273
  %v1526 = vpack.c.b16 %v1276, %v1275
  %v1527 = vpack.c.b16 %v1278, %v1277
  %v1528 = vpack.c.b16 %v1280, %v1279
  %v1529 = vpack.c.b16 %v1282, %v1281
  %v1530 = vpack.c.b16 %v1284, %v1283
  %v1531 = vpack.c.b16 %v1286, %v1285
  %v1532 = vpack.c.b16 %v1288, %v1287
  %v1533 = vpack.c.b16 %v1290, %v1289
  %v1534 = vpack.c.b16 %v1292, %v1291
  %v1535 = vpack.c.b16 %v1294, %v1293
  %v1536 = vpack.c.b16 %v1296, %v1295
  %v1537 = vpack.c.b16 %v1298, %v1297
  %v1538 = vpack.c.b16 %v1300, %v1299
  %v1539 = vpack.c.b16 %v1302, %v1301
  %v1540 = vpack.c.b16 %v1304, %v1303
  %v1541 = vpack.c.b16 %v1306, %v1305
  %v1542 = vpack.c.b16 %v1308, %v1307
  %v1543 = vpack.c.b16 %v1310, %v1309
  %v1544 = vpack.c.b16 %v1312, %v1311
  %v1545 = vpack.c.b16 %v1314, %v1313
  %v1546 = vpack.c.b16 %v1316, %v1315
  %v1547 = vpack.c.b16 %v1318, %v1317
  %v1548 = vpack.c.b16 %v1320, %v1319
  %v1549 = vpack.c.b16 %v1322, %v1321
  %v1550 = vpack.c.b16 %v1324, %v1323
  %v1551 = vpack.c.b16 %v1326, %v1325
  %v1552 = vpack.c.b16 %v1328, %v1327
  %v1553 = vpack.c.b16 %v1330, %v1329
  %v1554 = vpack.c.b16 %v1332, %v1331
  %v1555 = vpack.c.b16 %v1334, %v1333
  %v1556 = vpack.c.b16 %v1336, %v1335
  %v1557 = vpack.c.b16 %v1338, %v1337
  %v1558 = vpack.c.b16 %v1340, %v1339
  %v1559 = vpack.c.b16 %v1342, %v1341
  %v1560 = vpack.c.b16 %v1344, %v1343
  %v1561 = vpack.c.b16 %v1346, %v1345
  %v1562 = vpack.c.b16 %v1348, %v1347
  %v1563 = vpack.c.b16 %v1350, %v1349
  %v1564 = vpack.c.b16 %v1352, %v1351
  %v1565 = vpack.c.b16 %v1354, %v1353
  %v1566 = vpack.c.b16 %v1356, %v1355
  %v1567 = vpack.c.b16 %v1358, %v1357
  %v1568 = vpack.c.b16 %v1360, %v1359
  %v1569 = vpack.c.b16 %v1362, %v1361
  %v1570 = vpack.c.b16 %v1364, %v1363
  %v1571 = vpack.c.b16 %v1366, %v1365
  %v1572 = vpack.c.b16 %v1368, %v1367
  %v1573 = vpack.c.b16 %v1370, %v1369
  %v1574 = vpack.c.b16 %v1372, %v1371
  %v1575 = vpack.c.b16 %v1374, %v1373
  %v1576 = vpack.c.b16 %v1376, %v1375
  %1777 = vmatprep.subr.bf16.mxu0 0
  %1778 = vmatpush1.bf16.msra.mxu0 %v1384
  %1779 = vmatprep.subr.bf16.mxu0 0
  %1780 = vmatpush1.bf16.msra.mxu0 %v1383
  %1781 = vmatprep.subr.bf16.mxu0 0
  %1782 = vmatpush1.bf16.msra.mxu0 %v1382
  %1783 = vmatprep.subr.bf16.mxu0 0
  %1784 = vmatpush1.bf16.msra.mxu0 %v1381
  %1785 = vmatprep.subr.bf16.mxu0 0
  %1786 = vmatpush1.bf16.msra.mxu0 %v1380
  %1787 = vmatprep.subr.bf16.mxu0 0
  %1788 = vmatpush1.bf16.msra.mxu0 %v1379
  %1789 = vmatprep.subr.bf16.mxu0 0
  %1790 = vmatpush1.bf16.msra.mxu0 %v1378
  %1791 = vmatprep.subr.bf16.mxu0 0
  %1792 = vmatpush1.bf16.msra.mxu0 %v1377
  %1793 = vmatprep.subr.bf16.mxu0 0
  %1794 = vmatpush2.bf16.msra.mxu0 %v1392
  %1795 = vmatprep.subr.bf16.mxu0 0
  %1796 = vmatpush2.bf16.msra.mxu0 %v1391
  %1797 = vmatprep.subr.bf16.mxu0 0
  %1798 = vmatpush2.bf16.msra.mxu0 %v1390
  %1799 = vmatprep.subr.bf16.mxu0 0
  %1800 = vmatpush2.bf16.msra.mxu0 %v1389
  %1801 = vmatprep.subr.bf16.mxu0 0
  %1802 = vmatpush2.bf16.msra.mxu0 %v1388
  %1803 = vmatprep.subr.bf16.mxu0 0
  %1804 = vmatpush2.bf16.msra.mxu0 %v1387
  %1805 = vmatprep.subr.bf16.mxu0 0
  %1806 = vmatpush2.bf16.msra.mxu0 %v1386
  %1807 = vmatprep.subr.bf16.mxu0 0
  %1808 = vmatpush2.bf16.msra.mxu0 %v1385
  %1809 = vmatprep.mubr.bf16.mxu0 %v528
  %1810 = vmatmul.mubr.bf16.gmra.mxu0 %v527
  %v1811 = vpop.f32.mrf.mxu0
  %v1812 = vadd.f32 %v449, %v1811
  %v1813 = vpop.f32.mrf.mxu0
  %v1814 = vpop.f32.mrf.mxu0
  %v1815 = vadd.f32 %v449, %v1814
  %v1816 = vpop.f32.mrf.mxu0
  %1817 = vdwg.mxu0
  %1818 = vmatprep.subr.bf16.mxu0 0
  %1819 = vmatpush1.bf16.msra.mxu0 %v1400
  %1820 = vmatprep.subr.bf16.mxu0 0
  %1821 = vmatpush1.bf16.msra.mxu0 %v1399
  %1822 = vmatprep.subr.bf16.mxu0 0
  %1823 = vmatpush1.bf16.msra.mxu0 %v1398
  %1824 = vmatprep.subr.bf16.mxu0 0
  %1825 = vmatpush1.bf16.msra.mxu0 %v1397
  %1826 = vmatprep.subr.bf16.mxu0 0
  %1827 = vmatpush1.bf16.msra.mxu0 %v1396
  %1828 = vmatprep.subr.bf16.mxu0 0
  %1829 = vmatpush1.bf16.msra.mxu0 %v1395
  %1830 = vmatprep.subr.bf16.mxu0 0
  %1831 = vmatpush1.bf16.msra.mxu0 %v1394
  %1832 = vmatprep.subr.bf16.mxu0 0
  %1833 = vmatpush1.bf16.msra.mxu0 %v1393
  %1834 = vmatprep.subr.bf16.mxu0 0
  %1835 = vmatpush2.bf16.msra.mxu0 %v1408
  %1836 = vmatprep.subr.bf16.mxu0 0
  %1837 = vmatpush2.bf16.msra.mxu0 %v1407
  %1838 = vmatprep.subr.bf16.mxu0 0
  %1839 = vmatpush2.bf16.msra.mxu0 %v1406
  %1840 = vmatprep.subr.bf16.mxu0 0
  %1841 = vmatpush2.bf16.msra.mxu0 %v1405
  %1842 = vmatprep.subr.bf16.mxu0 0
  %1843 = vmatpush2.bf16.msra.mxu0 %v1404
  %1844 = vmatprep.subr.bf16.mxu0 0
  %1845 = vmatpush2.bf16.msra.mxu0 %v1403
  %1846 = vmatprep.subr.bf16.mxu0 0
  %1847 = vmatpush2.bf16.msra.mxu0 %v1402
  %1848 = vmatprep.subr.bf16.mxu0 0
  %1849 = vmatpush2.bf16.msra.mxu0 %v1401
  %1850 = vmatprep.mubr.bf16.mxu0 %v530
  %1851 = vmatmul.mubr.bf16.gmra.mxu0 %v529
  %v1852 = vpop.f32.mrf.mxu0
  %v1853 = vadd.f32 %v1812, %v1852
  %v1854 = vpop.f32.mrf.mxu0
  %v1855 = vpop.f32.mrf.mxu0
  %v1856 = vadd.f32 %v1815, %v1855
  %v1857 = vpop.f32.mrf.mxu0
  %1858 = vdwg.mxu0
  %1859 = vmatprep.subr.bf16.mxu0 0
  %1860 = vmatpush1.bf16.msra.mxu0 %v1416
  %1861 = vmatprep.subr.bf16.mxu0 0
  %1862 = vmatpush1.bf16.msra.mxu0 %v1415
  %1863 = vmatprep.subr.bf16.mxu0 0
  %1864 = vmatpush1.bf16.msra.mxu0 %v1414
  %1865 = vmatprep.subr.bf16.mxu0 0
  %1866 = vmatpush1.bf16.msra.mxu0 %v1413
  %1867 = vmatprep.subr.bf16.mxu0 0
  %1868 = vmatpush1.bf16.msra.mxu0 %v1412
  %1869 = vmatprep.subr.bf16.mxu0 0
  %1870 = vmatpush1.bf16.msra.mxu0 %v1411
  %1871 = vmatprep.subr.bf16.mxu0 0
  %1872 = vmatpush1.bf16.msra.mxu0 %v1410
  %1873 = vmatprep.subr.bf16.mxu0 0
  %1874 = vmatpush1.bf16.msra.mxu0 %v1409
  %1875 = vmatprep.subr.bf16.mxu0 0
  %1876 = vmatpush2.bf16.msra.mxu0 %v1424
  %1877 = vmatprep.subr.bf16.mxu0 0
  %1878 = vmatpush2.bf16.msra.mxu0 %v1423
  %1879 = vmatprep.subr.bf16.mxu0 0
  %1880 = vmatpush2.bf16.msra.mxu0 %v1422
  %1881 = vmatprep.subr.bf16.mxu0 0
  %1882 = vmatpush2.bf16.msra.mxu0 %v1421
  %1883 = vmatprep.subr.bf16.mxu0 0
  %1884 = vmatpush2.bf16.msra.mxu0 %v1420
  %1885 = vmatprep.subr.bf16.mxu0 0
  %1886 = vmatpush2.bf16.msra.mxu0 %v1419
  %1887 = vmatprep.subr.bf16.mxu0 0
  %1888 = vmatpush2.bf16.msra.mxu0 %v1418
  %1889 = vmatprep.subr.bf16.mxu0 0
  %1890 = vmatpush2.bf16.msra.mxu0 %v1417
  %1891 = vmatprep.mubr.bf16.mxu0 %v532
  %1892 = vmatmul.mubr.bf16.gmra.mxu0 %v531
  %v1893 = vpop.f32.mrf.mxu0
  %v1894 = vadd.f32 %v1853, %v1893
  %v1895 = vpop.f32.mrf.mxu0
  %v1896 = vpop.f32.mrf.mxu0
  %v1897 = vadd.f32 %v1856, %v1896
  %v1898 = vpop.f32.mrf.mxu0
  %1899 = vdwg.mxu0
  %1900 = vmatprep.subr.bf16.mxu0 0
  %1901 = vmatpush1.bf16.msra.mxu0 %v1432
  %1902 = vmatprep.subr.bf16.mxu0 0
  %1903 = vmatpush1.bf16.msra.mxu0 %v1431
  %1904 = vmatprep.subr.bf16.mxu0 0
  %1905 = vmatpush1.bf16.msra.mxu0 %v1430
  %1906 = vmatprep.subr.bf16.mxu0 0
  %1907 = vmatpush1.bf16.msra.mxu0 %v1429
  %1908 = vmatprep.subr.bf16.mxu0 0
  %1909 = vmatpush1.bf16.msra.mxu0 %v1428
  %1910 = vmatprep.subr.bf16.mxu0 0
  %1911 = vmatpush1.bf16.msra.mxu0 %v1427
  %1912 = vmatprep.subr.bf16.mxu0 0
  %1913 = vmatpush1.bf16.msra.mxu0 %v1426
  %1914 = vmatprep.subr.bf16.mxu0 0
  %1915 = vmatpush1.bf16.msra.mxu0 %v1425
  %1916 = vmatprep.subr.bf16.mxu0 0
  %1917 = vmatpush2.bf16.msra.mxu0 %v1440
  %1918 = vmatprep.subr.bf16.mxu0 0
  %1919 = vmatpush2.bf16.msra.mxu0 %v1439
  %1920 = vmatprep.subr.bf16.mxu0 0
  %1921 = vmatpush2.bf16.msra.mxu0 %v1438
  %1922 = vmatprep.subr.bf16.mxu0 0
  %1923 = vmatpush2.bf16.msra.mxu0 %v1437
  %1924 = vmatprep.subr.bf16.mxu0 0
  %1925 = vmatpush2.bf16.msra.mxu0 %v1436
  %1926 = vmatprep.subr.bf16.mxu0 0
  %1927 = vmatpush2.bf16.msra.mxu0 %v1435
  %1928 = vmatprep.subr.bf16.mxu0 0
  %1929 = vmatpush2.bf16.msra.mxu0 %v1434
  %1930 = vmatprep.subr.bf16.mxu0 0
  %1931 = vmatpush2.bf16.msra.mxu0 %v1433
  %1932 = vmatprep.mubr.bf16.mxu0 %v534
  %1933 = vmatmul.mubr.bf16.gmra.mxu0 %v533
  %v1934 = vpop.f32.mrf.mxu0
  %v1935 = vadd.f32 %v1894, %v1934
  %v1936 = vpop.f32.mrf.mxu0
  %v1937 = vpop.f32.mrf.mxu0
  %v1938 = vadd.f32 %v1897, %v1937
  %v1939 = vpop.f32.mrf.mxu0
  %1940 = vdwg.mxu0
  %1941 = vmatprep.subr.bf16.mxu0 0
  %1942 = vmatpush1.bf16.msra.mxu0 %v1448
  %1943 = vmatprep.subr.bf16.mxu0 0
  %1944 = vmatpush1.bf16.msra.mxu0 %v1447
  %1945 = vmatprep.subr.bf16.mxu0 0
  %1946 = vmatpush1.bf16.msra.mxu0 %v1446
  %1947 = vmatprep.subr.bf16.mxu0 0
  %1948 = vmatpush1.bf16.msra.mxu0 %v1445
  %1949 = vmatprep.subr.bf16.mxu0 0
  %1950 = vmatpush1.bf16.msra.mxu0 %v1444
  %1951 = vmatprep.subr.bf16.mxu0 0
  %1952 = vmatpush1.bf16.msra.mxu0 %v1443
  %1953 = vmatprep.subr.bf16.mxu0 0
  %1954 = vmatpush1.bf16.msra.mxu0 %v1442
  %1955 = vmatprep.subr.bf16.mxu0 0
  %1956 = vmatpush1.bf16.msra.mxu0 %v1441
  %1957 = vmatprep.subr.bf16.mxu0 0
  %1958 = vmatpush2.bf16.msra.mxu0 %v1456
  %1959 = vmatprep.subr.bf16.mxu0 0
  %1960 = vmatpush2.bf16.msra.mxu0 %v1455
  %1961 = vmatprep.subr.bf16.mxu0 0
  %1962 = vmatpush2.bf16.msra.mxu0 %v1454
  %1963 = vmatprep.subr.bf16.mxu0 0
  %1964 = vmatpush2.bf16.msra.mxu0 %v1453
  %1965 = vmatprep.subr.bf16.mxu0 0
  %1966 = vmatpush2.bf16.msra.mxu0 %v1452
  %1967 = vmatprep.subr.bf16.mxu0 0
  %1968 = vmatpush2.bf16.msra.mxu0 %v1451
  %1969 = vmatprep.subr.bf16.mxu0 0
  %1970 = vmatpush2.bf16.msra.mxu0 %v1450
  %1971 = vmatprep.subr.bf16.mxu0 0
  %1972 = vmatpush2.bf16.msra.mxu0 %v1449
  %1973 = vmatprep.mubr.bf16.mxu0 %v536
  %1974 = vmatmul.mubr.bf16.gmra.mxu0 %v535
  %v1975 = vpop.f32.mrf.mxu0
  %v1976 = vadd.f32 %v1935, %v1975
  %v1977 = vpop.f32.mrf.mxu0
  %v1978 = vpop.f32.mrf.mxu0
  %v1979 = vadd.f32 %v1938, %v1978
  %v1980 = vpop.f32.mrf.mxu0
  %1981 = vdwg.mxu0
  %1982 = vmatprep.subr.bf16.mxu0 0
  %1983 = vmatpush1.bf16.msra.mxu0 %v1464
  %1984 = vmatprep.subr.bf16.mxu0 0
  %1985 = vmatpush1.bf16.msra.mxu0 %v1463
  %1986 = vmatprep.subr.bf16.mxu0 0
  %1987 = vmatpush1.bf16.msra.mxu0 %v1462
  %1988 = vmatprep.subr.bf16.mxu0 0
  %1989 = vmatpush1.bf16.msra.mxu0 %v1461
  %1990 = vmatprep.subr.bf16.mxu0 0
  %1991 = vmatpush1.bf16.msra.mxu0 %v1460
  %1992 = vmatprep.subr.bf16.mxu0 0
  %1993 = vmatpush1.bf16.msra.mxu0 %v1459
  %1994 = vmatprep.subr.bf16.mxu0 0
  %1995 = vmatpush1.bf16.msra.mxu0 %v1458
  %1996 = vmatprep.subr.bf16.mxu0 0
  %1997 = vmatpush1.bf16.msra.mxu0 %v1457
  %1998 = vmatprep.subr.bf16.mxu0 0
  %1999 = vmatpush2.bf16.msra.mxu0 %v1472
  %2000 = vmatprep.subr.bf16.mxu0 0
  %2001 = vmatpush2.bf16.msra.mxu0 %v1471
  %2002 = vmatprep.subr.bf16.mxu0 0
  %2003 = vmatpush2.bf16.msra.mxu0 %v1470
  %2004 = vmatprep.subr.bf16.mxu0 0
  %2005 = vmatpush2.bf16.msra.mxu0 %v1469
  %2006 = vmatprep.subr.bf16.mxu0 0
  %2007 = vmatpush2.bf16.msra.mxu0 %v1468
  %2008 = vmatprep.subr.bf16.mxu0 0
  %2009 = vmatpush2.bf16.msra.mxu0 %v1467
  %2010 = vmatprep.subr.bf16.mxu0 0
  %2011 = vmatpush2.bf16.msra.mxu0 %v1466
  %2012 = vmatprep.subr.bf16.mxu0 0
  %2013 = vmatpush2.bf16.msra.mxu0 %v1465
  %2014 = vmatprep.mubr.bf16.mxu0 %v538
  %2015 = vmatmul.mubr.bf16.gmra.mxu0 %v537
  %v2016 = vpop.f32.mrf.mxu0
  %v2017 = vadd.f32 %v1976, %v2016
  %v2018 = vpop.f32.mrf.mxu0
  %v2019 = vpop.f32.mrf.mxu0
  %v2020 = vadd.f32 %v1979, %v2019
  %v2021 = vpop.f32.mrf.mxu0
  %2022 = vdwg.mxu0
  %2023 = vmatprep.subr.bf16.mxu0 0
  %2024 = vmatpush1.bf16.msra.mxu0 %v1480
  %2025 = vmatprep.subr.bf16.mxu0 0
  %2026 = vmatpush1.bf16.msra.mxu0 %v1479
  %2027 = vmatprep.subr.bf16.mxu0 0
  %2028 = vmatpush1.bf16.msra.mxu0 %v1478
  %2029 = vmatprep.subr.bf16.mxu0 0
  %2030 = vmatpush1.bf16.msra.mxu0 %v1477
  %2031 = vmatprep.subr.bf16.mxu0 0
  %2032 = vmatpush1.bf16.msra.mxu0 %v1476
  %2033 = vmatprep.subr.bf16.mxu0 0
  %2034 = vmatpush1.bf16.msra.mxu0 %v1475
  %2035 = vmatprep.subr.bf16.mxu0 0
  %2036 = vmatpush1.bf16.msra.mxu0 %v1474
  %2037 = vmatprep.subr.bf16.mxu0 0
  %2038 = vmatpush1.bf16.msra.mxu0 %v1473
  %2039 = vmatprep.subr.bf16.mxu0 0
  %2040 = vmatpush2.bf16.msra.mxu0 %v1488
  %2041 = vmatprep.subr.bf16.mxu0 0
  %2042 = vmatpush2.bf16.msra.mxu0 %v1487
  %2043 = vmatprep.subr.bf16.mxu0 0
  %2044 = vmatpush2.bf16.msra.mxu0 %v1486
  %2045 = vmatprep.subr.bf16.mxu0 0
  %2046 = vmatpush2.bf16.msra.mxu0 %v1485
  %2047 = vmatprep.subr.bf16.mxu0 0
  %2048 = vmatpush2.bf16.msra.mxu0 %v1484
  %2049 = vmatprep.subr.bf16.mxu0 0
  %2050 = vmatpush2.bf16.msra.mxu0 %v1483
  %2051 = vmatprep.subr.bf16.mxu0 0
  %2052 = vmatpush2.bf16.msra.mxu0 %v1482
  %2053 = vmatprep.subr.bf16.mxu0 0
  %2054 = vmatpush2.bf16.msra.mxu0 %v1481
  %2055 = vmatprep.mubr.bf16.mxu0 %v540
  %2056 = vmatmul.mubr.bf16.gmra.mxu0 %v539
  %v2057 = vpop.f32.mrf.mxu0
  %v2058 = vadd.f32 %v2017, %v2057
  %v2059 = vpop.f32.mrf.mxu0
  %v2060 = vpop.f32.mrf.mxu0
  %v2061 = vadd.f32 %v2020, %v2060
  %v2062 = vpop.f32.mrf.mxu0
  %2063 = vdwg.mxu0
  %2064 = vmatprep.subr.bf16.mxu0 0
  %2065 = vmatpush1.bf16.msra.mxu0 %v1496
  %2066 = vmatprep.subr.bf16.mxu0 0
  %2067 = vmatpush1.bf16.msra.mxu0 %v1495
  %2068 = vmatprep.subr.bf16.mxu0 0
  %2069 = vmatpush1.bf16.msra.mxu0 %v1494
  %2070 = vmatprep.subr.bf16.mxu0 0
  %2071 = vmatpush1.bf16.msra.mxu0 %v1493
  %2072 = vmatprep.subr.bf16.mxu0 0
  %2073 = vmatpush1.bf16.msra.mxu0 %v1492
  %2074 = vmatprep.subr.bf16.mxu0 0
  %2075 = vmatpush1.bf16.msra.mxu0 %v1491
  %2076 = vmatprep.subr.bf16.mxu0 0
  %2077 = vmatpush1.bf16.msra.mxu0 %v1490
  %2078 = vmatprep.subr.bf16.mxu0 0
  %2079 = vmatpush1.bf16.msra.mxu0 %v1489
  %2080 = vmatprep.subr.bf16.mxu0 0
  %2081 = vmatpush2.bf16.msra.mxu0 %v1504
  %2082 = vmatprep.subr.bf16.mxu0 0
  %2083 = vmatpush2.bf16.msra.mxu0 %v1503
  %2084 = vmatprep.subr.bf16.mxu0 0
  %2085 = vmatpush2.bf16.msra.mxu0 %v1502
  %2086 = vmatprep.subr.bf16.mxu0 0
  %2087 = vmatpush2.bf16.msra.mxu0 %v1501
  %2088 = vmatprep.subr.bf16.mxu0 0
  %2089 = vmatpush2.bf16.msra.mxu0 %v1500
  %2090 = vmatprep.subr.bf16.mxu0 0
  %2091 = vmatpush2.bf16.msra.mxu0 %v1499
  %2092 = vmatprep.subr.bf16.mxu0 0
  %2093 = vmatpush2.bf16.msra.mxu0 %v1498
  %2094 = vmatprep.subr.bf16.mxu0 0
  %2095 = vmatpush2.bf16.msra.mxu0 %v1497
  %2096 = vmatprep.mubr.bf16.mxu0 %v542
  %2097 = vmatmul.mubr.bf16.gmra.mxu0 %v541
  %v2098 = vpop.f32.mrf.mxu0
  %v2099 = vadd.f32 %v2058, %v2098
  %v2100 = vpop.f32.mrf.mxu0
  %v2101 = vpop.f32.mrf.mxu0
  %v2102 = vadd.f32 %v2061, %v2101
  %v2103 = vpop.f32.mrf.mxu0
  %2104 = vdwg.mxu0
  %2105 = vmatprep.subr.bf16.mxu0 0
  %2106 = vmatpush1.bf16.msra.mxu0 %v1512
  %2107 = vmatprep.subr.bf16.mxu0 0
  %2108 = vmatpush1.bf16.msra.mxu0 %v1511
  %2109 = vmatprep.subr.bf16.mxu0 0
  %2110 = vmatpush1.bf16.msra.mxu0 %v1510
  %2111 = vmatprep.subr.bf16.mxu0 0
  %2112 = vmatpush1.bf16.msra.mxu0 %v1509
  %2113 = vmatprep.subr.bf16.mxu0 0
  %2114 = vmatpush1.bf16.msra.mxu0 %v1508
  %2115 = vmatprep.subr.bf16.mxu0 0
  %2116 = vmatpush1.bf16.msra.mxu0 %v1507
  %2117 = vmatprep.subr.bf16.mxu0 0
  %2118 = vmatpush1.bf16.msra.mxu0 %v1506
  %2119 = vmatprep.subr.bf16.mxu0 0
  %2120 = vmatpush1.bf16.msra.mxu0 %v1505
  %2121 = vmatprep.subr.bf16.mxu0 0
  %2122 = vmatpush2.bf16.msra.mxu0 %v1520
  %2123 = vmatprep.subr.bf16.mxu0 0
  %2124 = vmatpush2.bf16.msra.mxu0 %v1519
  %2125 = vmatprep.subr.bf16.mxu0 0
  %2126 = vmatpush2.bf16.msra.mxu0 %v1518
  %2127 = vmatprep.subr.bf16.mxu0 0
  %2128 = vmatpush2.bf16.msra.mxu0 %v1517
  %2129 = vmatprep.subr.bf16.mxu0 0
  %2130 = vmatpush2.bf16.msra.mxu0 %v1516
  %2131 = vmatprep.subr.bf16.mxu0 0
  %2132 = vmatpush2.bf16.msra.mxu0 %v1515
  %2133 = vmatprep.subr.bf16.mxu0 0
  %2134 = vmatpush2.bf16.msra.mxu0 %v1514
  %2135 = vmatprep.subr.bf16.mxu0 0
  %2136 = vmatpush2.bf16.msra.mxu0 %v1513
  %2137 = vmatprep.mubr.bf16.mxu0 %v544
  %2138 = vmatmul.mubr.bf16.gmra.mxu0 %v543
  %v2139 = vpop.f32.mrf.mxu0
  %v2140 = vadd.f32 %v2099, %v2139
  %v2141 = vpop.f32.mrf.mxu0
  %v2142 = vpop.f32.mrf.mxu0
  %v2143 = vadd.f32 %v2102, %v2142
  %v2144 = vpop.f32.mrf.mxu0
  %2145 = vdwg.mxu0
  %2146 = vmatprep.subr.bf16.mxu0 0
  %2147 = vmatpush1.bf16.msra.mxu0 %v1528
  %2148 = vmatprep.subr.bf16.mxu0 0
  %2149 = vmatpush1.bf16.msra.mxu0 %v1527
  %2150 = vmatprep.subr.bf16.mxu0 0
  %2151 = vmatpush1.bf16.msra.mxu0 %v1526
  %2152 = vmatprep.subr.bf16.mxu0 0
  %2153 = vmatpush1.bf16.msra.mxu0 %v1525
  %2154 = vmatprep.subr.bf16.mxu0 0
  %2155 = vmatpush1.bf16.msra.mxu0 %v1524
  %2156 = vmatprep.subr.bf16.mxu0 0
  %2157 = vmatpush1.bf16.msra.mxu0 %v1523
  %2158 = vmatprep.subr.bf16.mxu0 0
  %2159 = vmatpush1.bf16.msra.mxu0 %v1522
  %2160 = vmatprep.subr.bf16.mxu0 0
  %2161 = vmatpush1.bf16.msra.mxu0 %v1521
  %2162 = vmatprep.subr.bf16.mxu0 0
  %2163 = vmatpush2.bf16.msra.mxu0 %v1536
  %2164 = vmatprep.subr.bf16.mxu0 0
  %2165 = vmatpush2.bf16.msra.mxu0 %v1535
  %2166 = vmatprep.subr.bf16.mxu0 0
  %2167 = vmatpush2.bf16.msra.mxu0 %v1534
  %2168 = vmatprep.subr.bf16.mxu0 0
  %2169 = vmatpush2.bf16.msra.mxu0 %v1533
  %2170 = vmatprep.subr.bf16.mxu0 0
  %2171 = vmatpush2.bf16.msra.mxu0 %v1532
  %2172 = vmatprep.subr.bf16.mxu0 0
  %2173 = vmatpush2.bf16.msra.mxu0 %v1531
  %2174 = vmatprep.subr.bf16.mxu0 0
  %2175 = vmatpush2.bf16.msra.mxu0 %v1530
  %2176 = vmatprep.subr.bf16.mxu0 0
  %2177 = vmatpush2.bf16.msra.mxu0 %v1529
  %2178 = vmatprep.mubr.bf16.mxu0 %v546
  %2179 = vmatmul.mubr.bf16.gmra.mxu0 %v545
  %v2180 = vpop.f32.mrf.mxu0
  %v2181 = vadd.f32 %v2140, %v2180
  %v2182 = vpop.f32.mrf.mxu0
  %v2183 = vpop.f32.mrf.mxu0
  %v2184 = vadd.f32 %v2143, %v2183
  %v2185 = vpop.f32.mrf.mxu0
  %2186 = vdwg.mxu0
  %2187 = vmatprep.subr.bf16.mxu0 0
  %2188 = vmatpush1.bf16.msra.mxu0 %v1544
  %2189 = vmatprep.subr.bf16.mxu0 0
  %2190 = vmatpush1.bf16.msra.mxu0 %v1543
  %2191 = vmatprep.subr.bf16.mxu0 0
  %2192 = vmatpush1.bf16.msra.mxu0 %v1542
  %2193 = vmatprep.subr.bf16.mxu0 0
  %2194 = vmatpush1.bf16.msra.mxu0 %v1541
  %2195 = vmatprep.subr.bf16.mxu0 0
  %2196 = vmatpush1.bf16.msra.mxu0 %v1540
  %2197 = vmatprep.subr.bf16.mxu0 0
  %2198 = vmatpush1.bf16.msra.mxu0 %v1539
  %2199 = vmatprep.subr.bf16.mxu0 0
  %2200 = vmatpush1.bf16.msra.mxu0 %v1538
  %2201 = vmatprep.subr.bf16.mxu0 0
  %2202 = vmatpush1.bf16.msra.mxu0 %v1537
  %2203 = vmatprep.subr.bf16.mxu0 0
  %2204 = vmatpush2.bf16.msra.mxu0 %v1552
  %2205 = vmatprep.subr.bf16.mxu0 0
  %2206 = vmatpush2.bf16.msra.mxu0 %v1551
  %2207 = vmatprep.subr.bf16.mxu0 0
  %2208 = vmatpush2.bf16.msra.mxu0 %v1550
  %2209 = vmatprep.subr.bf16.mxu0 0
  %2210 = vmatpush2.bf16.msra.mxu0 %v1549
  %2211 = vmatprep.subr.bf16.mxu0 0
  %2212 = vmatpush2.bf16.msra.mxu0 %v1548
  %2213 = vmatprep.subr.bf16.mxu0 0
  %2214 = vmatpush2.bf16.msra.mxu0 %v1547
  %2215 = vmatprep.subr.bf16.mxu0 0
  %2216 = vmatpush2.bf16.msra.mxu0 %v1546
  %2217 = vmatprep.subr.bf16.mxu0 0
  %2218 = vmatpush2.bf16.msra.mxu0 %v1545
  %2219 = vmatprep.mubr.bf16.mxu0 %v548
  %2220 = vmatmul.mubr.bf16.gmra.mxu0 %v547
  %v2221 = vpop.f32.mrf.mxu0
  %v2222 = vadd.f32 %v2181, %v2221
  %v2223 = vpop.f32.mrf.mxu0
  %v2224 = vpop.f32.mrf.mxu0
  %v2225 = vadd.f32 %v2184, %v2224
  %v2226 = vpop.f32.mrf.mxu0
  %2227 = vdwg.mxu0
  %2228 = vmatprep.subr.bf16.mxu0 0
  %2229 = vmatpush1.bf16.msra.mxu0 %v1560
  %2230 = vmatprep.subr.bf16.mxu0 0
  %2231 = vmatpush1.bf16.msra.mxu0 %v1559
  %2232 = vmatprep.subr.bf16.mxu0 0
  %2233 = vmatpush1.bf16.msra.mxu0 %v1558
  %2234 = vmatprep.subr.bf16.mxu0 0
  %2235 = vmatpush1.bf16.msra.mxu0 %v1557
  %2236 = vmatprep.subr.bf16.mxu0 0
  %2237 = vmatpush1.bf16.msra.mxu0 %v1556
  %2238 = vmatprep.subr.bf16.mxu0 0
  %2239 = vmatpush1.bf16.msra.mxu0 %v1555
  %2240 = vmatprep.subr.bf16.mxu0 0
  %2241 = vmatpush1.bf16.msra.mxu0 %v1554
  %2242 = vmatprep.subr.bf16.mxu0 0
  %2243 = vmatpush1.bf16.msra.mxu0 %v1553
  %2244 = vmatprep.subr.bf16.mxu0 0
  %2245 = vmatpush2.bf16.msra.mxu0 %v1568
  %2246 = vmatprep.subr.bf16.mxu0 0
  %2247 = vmatpush2.bf16.msra.mxu0 %v1567
  %2248 = vmatprep.subr.bf16.mxu0 0
  %2249 = vmatpush2.bf16.msra.mxu0 %v1566
  %2250 = vmatprep.subr.bf16.mxu0 0
  %2251 = vmatpush2.bf16.msra.mxu0 %v1565
  %2252 = vmatprep.subr.bf16.mxu0 0
  %2253 = vmatpush2.bf16.msra.mxu0 %v1564
  %2254 = vmatprep.subr.bf16.mxu0 0
  %2255 = vmatpush2.bf16.msra.mxu0 %v1563
  %2256 = vmatprep.subr.bf16.mxu0 0
  %2257 = vmatpush2.bf16.msra.mxu0 %v1562
  %2258 = vmatprep.subr.bf16.mxu0 0
  %2259 = vmatpush2.bf16.msra.mxu0 %v1561
  %2260 = vmatprep.mubr.bf16.mxu0 %v550
  %2261 = vmatmul.mubr.bf16.gmra.mxu0 %v549
  %v2262 = vpop.f32.mrf.mxu0
  %v2263 = vadd.f32 %v2222, %v2262
  %v2264 = vpop.f32.mrf.mxu0
  %v2265 = vpop.f32.mrf.mxu0
  %v2266 = vadd.f32 %v2225, %v2265
  %v2267 = vpop.f32.mrf.mxu0
  %2268 = vdwg.mxu0
  %2269 = vmatprep.subr.bf16.mxu0 0
  %2270 = vmatpush1.bf16.msra.mxu0 %v1576
  %2271 = vmatprep.subr.bf16.mxu0 0
  %2272 = vmatpush1.bf16.msra.mxu0 %v1575
  %2273 = vmatprep.subr.bf16.mxu0 0
  %2274 = vmatpush1.bf16.msra.mxu0 %v1574
  %2275 = vmatprep.subr.bf16.mxu0 0
  %2276 = vmatpush1.bf16.msra.mxu0 %v1573
  %2277 = vmatprep.subr.bf16.mxu0 0
  %2278 = vmatpush1.bf16.msra.mxu0 %v1572
  %2279 = vmatprep.subr.bf16.mxu0 0
  %2280 = vmatpush1.bf16.msra.mxu0 %v1571
  %2281 = vmatprep.subr.bf16.mxu0 0
  %2282 = vmatpush1.bf16.msra.mxu0 %v1570
  %2283 = vmatprep.subr.bf16.mxu0 0
  %2284 = vmatpush1.bf16.msra.mxu0 %v1569
  %2285 = vmatprep.subr.bf16.mxu0 0
  %2286 = vmatpush2.bf16.msra.mxu0 0
  %2287 = vmatprep.subr.bf16.mxu0 0
  %2288 = vmatpush2.bf16.msra.mxu0 0
  %2289 = vmatprep.subr.bf16.mxu0 0
  %2290 = vmatpush2.bf16.msra.mxu0 0
  %2291 = vmatprep.subr.bf16.mxu0 0
  %2292 = vmatpush2.bf16.msra.mxu0 0
  %2293 = vmatprep.subr.bf16.mxu0 0
  %2294 = vmatpush2.bf16.msra.mxu0 0
  %2295 = vmatprep.subr.bf16.mxu0 0
  %2296 = vmatpush2.bf16.msra.mxu0 0
  %2297 = vmatprep.subr.bf16.mxu0 0
  %2298 = vmatpush2.bf16.msra.mxu0 0
  %2299 = vmatprep.subr.bf16.mxu0 0
  %2300 = vmatpush2.bf16.msra.mxu0 0
  %2301 = vmatprep.mubr.bf16.mxu0 0
  %2302 = vmatmul.mubr.bf16.gmra.mxu0 %v551
  %v2303 = vpop.f32.mrf.mxu0
  %v2304 = vadd.f32 %v2263, %v2303
  %v2305 = vpop.f32.mrf.mxu0
  %v2306 = vpop.f32.mrf.mxu0
  %v2307 = vadd.f32 %v2266, %v2306
  %v2308 = vpop.f32.mrf.mxu0
  %2309 = vdwg.mxu0
  %vm2310 = vcmp.gt.f32.partialorder %v2304, 0.0
  %vm2311 = vcmp.gt.f32.partialorder %v2307, 0.0
  %v2312 = vmul.f32 %v2304, 0.1
  %v2313 = vmul.f32 %v2307, 0.1
  %v2314 = vsel %vm2310, %v2304, %v2312
  %v2315 = vsel %vm2311, %v2307, %v2313
  %v2316 = vpack.c.bf16 %v2315, %v2314
  %v2318 = vunpack.c.l.b16 %v2316
  %v2319 = vunpack.c.h.b16 %v2316
  %v2320 = vpack.c.b16 %v2318, %v2318
  %v2321 = vpack.c.b16 %v2319, %v2319
  %2324 = vst [vmem:[%s3] sm:$0xf] %v2320
  %2325 = vst [vmem:[%s3 + $0x4] sm:$0xf] %v2321
  %v2326 = vadd.f32 %v2314, %v2315
  %v2327 = vrot.slane %v2326, 4
  %v2328 = vadd.f32 %v2326, %v2327
  %v2329 = vrot.slane %v2328, 2
  %v2330 = vadd.f32 %v2328, %v2329
  %v2331 = vrot.slane %v2330, 1
  %v2332 = vadd.f32 %v2330, %v2331
  %2333 = vst [vmem:[%s4] sm:$0x1] %v2332
  %v2334 = vmul.f32 %v2314, %v2314
  %v2335 = vmul.f32 %v2315, %v2315
  %v2336 = vadd.f32 %v2334, %v2335
  %v2337 = vrot.slane %v2336, 4
  %v2338 = vadd.f32 %v2336, %v2337
  %v2339 = vrot.slane %v2338, 2
  %v2340 = vadd.f32 %v2338, %v2339
  %v2341 = vrot.slane %v2340, 1
  %v2342 = vadd.f32 %v2340, %v2341
  %2343 = vst [vmem:[%s5] sm:$0x1] %v2342
  // Predicated region
  $region14: #{discriminator_forward.4} parent=0 // pred_check
    _
  $region15: #{discriminator_forward.4} parent=0 // pred_check_branch
    %2345 = sbr.rel (0) target = $region17
  $region16: #{discriminator_forward.4} parent=0 // pred_region
    _
  $region17: #{discriminator_forward.4} parent=0 // pred_fallthru
    _
  // Predicated region
  $region18: #{discriminator_forward.4} parent=0 // pred_check
    _
  $region19: #{discriminator_forward.4} parent=0 // pred_check_branch
    %2347 = sbr.rel (0) target = $region21
  $region20: #{discriminator_forward.4} parent=0 // pred_region
    _
  $region21: #{discriminator_forward.4} parent=0 // pred_fallthru
    _
  // Predicated region
  $region22: #{discriminator_forward.4} parent=0 // pred_check
    _
  $region23: #{discriminator_forward.4} parent=0 // pred_check_branch
    %2349 = sbr.rel (0) target = $region25
  $region24: #{discriminator_forward.4} parent=0 // pred_region
    _
  $region25: #{discriminator_forward.4} parent=0 // pred_fallthru
    _
  // Predicated region
  $region26: #{discriminator_forward.4} parent=0 // pred_check
    _
  $region27: #{discriminator_forward.4} parent=0 // pred_check_branch
    %2351 = sbr.rel (0) target = $region29
  $region28: #{discriminator_forward.4} parent=0 // pred_region
    _
  $region29: #{discriminator_forward.4} parent=0 // pred_fallthru
    _
  // Predicated region
  $region30: #{discriminator_forward.4} parent=0 // pred_check
    _
  $region31: #{discriminator_forward.4} parent=0 // pred_check_branch
    %2353 = sbr.rel (0) target = $region33
  $region32: #{discriminator_forward.4} parent=0 // pred_region
    _
  $region33: #{discriminator_forward.4} parent=0 // pred_fallthru
    _
  // Predicated region
  $region34: #{discriminator_forward.4} parent=0 // pred_check
    _
  $region35: #{discriminator_forward.4} parent=0 // pred_check_branch
    %2355 = sbr.rel (0) target = $region37
  $region36: #{discriminator_forward.4} parent=0 // pred_region
    _
  $region37: #{discriminator_forward.4} parent=0 // pred_fallthru
    _

// kernel: discriminator_forward.5
$region0: #{discriminator_forward.5}
  #allocation0 [shape = 'u32[]', space=smem, size = 0x4, offset = 0x4, fixed_abs, tag = 'smem constant byte address 0x4 - core index']
  #allocation1 [shape = 'u32[144,128]{1,0:T(1,128)}', space=vmem, size = 0x12000, scoped, tag = 'internal scratch']
  #allocation2 [shape = 'f32[1,1]{1,0:T(1,128)S(1)}', space=vmem, size = 0x200, scoped, tag = 'scoped memory for discriminator_forward.5']
  %s0 = inlined_call_operand.vmem [shape: bf16[16,576], index: 0, kind: input, shape index: {}]
  %s1 = inlined_call_operand.vmem [shape: bf16[576,256], index: 1, kind: input, shape index: {}]
  %s2 = inlined_call_operand.vmem [shape: f32[1,256], index: 2, kind: input, shape index: {}]
  %s3 = inlined_call_operand.vmem [shape: f32[1,256], index: 3, kind: input, shape index: {}]
  %s4 = inlined_call_operand.<no memory space> [shape: f32[1,1], index: 4, kind: input, shape index: {}]
  %s5 = inlined_call_operand.vmem [shape: f32[16,1], index: 5, kind: output, shape index: {}]
  %s6 = sld [smem:[#allocation0]]
  $region30: #{discriminator_forward.5} parent=0
    _
  %s8 = ssub.s32 1, %s6
  %s9 = scalar_select 0, %s8, %s6
  %v10 = vstv %s4
  %11 = vst [vmem:[#allocation2] sm:$0x1] %v10
  // Predicated region
  $region2: #{discriminator_forward.5} parent=0 // pred_check
    _
  $region3: #{discriminator_forward.5} parent=0 // pred_check_branch
    %13 = sbr.rel (0) target = $region5
  $region4: #{discriminator_forward.5} parent=0 // pred_region
    _
  $region5: #{discriminator_forward.5} parent=0 // pred_fallthru
    _
  // Predicated region
  $region6: #{discriminator_forward.5} parent=0 // pred_check
    _
  $region7: #{discriminator_forward.5} parent=0 // pred_check_branch
    %15 = sbr.rel (0) target = $region9
  $region8: #{discriminator_forward.5} parent=0 // pred_region
    _
  $region9: #{discriminator_forward.5} parent=0 // pred_fallthru
    _
  // Predicated region
  $region10: #{discriminator_forward.5} parent=0 // pred_check
    _
  $region11: #{discriminator_forward.5} parent=0 // pred_check_branch
    %17 = sbr.rel (0) target = $region13
  $region12: #{discriminator_forward.5} parent=0 // pred_region
    _
  $region13: #{discriminator_forward.5} parent=0 // pred_fallthru
    _
  // Predicated region
  $region14: #{discriminator_forward.5} parent=0 // pred_check
    _
  $region15: #{discriminator_forward.5} parent=0 // pred_check_branch
    %19 = sbr.rel (0) target = $region17
  $region16: #{discriminator_forward.5} parent=0 // pred_region
    _
  $region17: #{discriminator_forward.5} parent=0 // pred_fallthru
    _
  // Predicated region
  $region18: #{discriminator_forward.5} parent=0 // pred_check
    _
  $region19: #{discriminator_forward.5} parent=0 // pred_check_branch
    %21 = sbr.rel (0) target = $region21
  $region20: #{discriminator_forward.5} parent=0 // pred_region
    _
  $region21: #{discriminator_forward.5} parent=0 // pred_fallthru
    _
  %v23 = vld [vmem:[%s0] sm:$0xff]
  %v24 = vld [vmem:[%s0 + $0x8] sm:$0xff]
  %v25 = vld [vmem:[%s0 + $0x10] sm:$0xf]
  %v26 = vld [vmem:[%s0 + $0x14] sm:$0xff]
  %v27 = vld [vmem:[%s0 + $0x1c] sm:$0xff]
  %v28 = vld [vmem:[%s0 + $0x24] sm:$0xf]
  %v29 = vld [vmem:[%s1] sm:$0xff]
  %v30 = vld [vmem:[%s1 + $0x8] sm:$0xff]
  %v31 = vld [vmem:[%s1 + $0x10] sm:$0xff]
  %v32 = vld [vmem:[%s1 + $0x18] sm:$0xff]
  %v33 = vld [vmem:[%s1 + $0x20] sm:$0xff]
  %v34 = vld [vmem:[%s1 + $0x28] sm:$0xff]
  %v35 = vld [vmem:[%s1 + $0x30] sm:$0xff]
  %v36 = vld [vmem:[%s1 + $0x38] sm:$0xff]
  %v37 = vld [vmem:[%s1 + $0x40] sm:$0xff]
  %v38 = vld [vmem:[%s1 + $0x48] sm:$0xff]
  %v39 = vld [vmem:[%s1 + $0x50] sm:$0xff]
  %v40 = vld [vmem:[%s1 + $0x58] sm:$0xff]
  %v41 = vld [vmem:[%s1 + $0x60] sm:$0xff]
  %v42 = vld [vmem:[%s1 + $0x68] sm:$0xff]
  %v43 = vld [vmem:[%s1 + $0x70] sm:$0xff]
  %v44 = vld [vmem:[%s1 + $0x78] sm:$0xff]
  %v45 = vld [vmem:[%s1 + $0x80] sm:$0xff]
  %v46 = vld [vmem:[%s1 + $0x88] sm:$0xff]
  %v47 = vld [vmem:[%s1 + $0x90] sm:$0xff]
  %v48 = vld [vmem:[%s1 + $0x98] sm:$0xff]
  %v49 = vld [vmem:[%s1 + $0xa0] sm:$0xff]
  %v50 = vld [vmem:[%s1 + $0xa8] sm:$0xff]
  %v51 = vld [vmem:[%s1 + $0xb0] sm:$0xff]
  %v52 = vld [vmem:[%s1 + $0xb8] sm:$0xff]
  %v53 = vld [vmem:[%s1 + $0xc0] sm:$0xff]
  %v54 = vld [vmem:[%s1 + $0xc8] sm:$0xff]
  %v55 = vld [vmem:[%s1 + $0xd0] sm:$0xff]
  %v56 = vld [vmem:[%s1 + $0xd8] sm:$0xff]
  %v57 = vld [vmem:[%s1 + $0xe0] sm:$0xff]
  %v58 = vld [vmem:[%s1 + $0xe8] sm:$0xff]
  %v59 = vld [vmem:[%s1 + $0xf0] sm:$0xff]
  %v60 = vld [vmem:[%s1 + $0xf8] sm:$0xff]
  %v61 = vld [vmem:[%s1 + $0x100] sm:$0xff]
  %v62 = vld [vmem:[%s1 + $0x108] sm:$0xff]
  %v63 = vld [vmem:[%s1 + $0x110] sm:$0xff]
  %v64 = vld [vmem:[%s1 + $0x118] sm:$0xff]
  %v65 = vld [vmem:[%s1 + $0x120] sm:$0xff]
  %v66 = vld [vmem:[%s1 + $0x128] sm:$0xff]
  %v67 = vld [vmem:[%s1 + $0x130] sm:$0xff]
  %v68 = vld [vmem:[%s1 + $0x138] sm:$0xff]
  %v69 = vld [vmem:[%s1 + $0x140] sm:$0xff]
  %v70 = vld [vmem:[%s1 + $0x148] sm:$0xff]
  %v71 = vld [vmem:[%s1 + $0x150] sm:$0xff]
  %v72 = vld [vmem:[%s1 + $0x158] sm:$0xff]
  %v73 = vld [vmem:[%s1 + $0x160] sm:$0xff]
  %v74 = vld [vmem:[%s1 + $0x168] sm:$0xff]
  %v75 = vld [vmem:[%s1 + $0x170] sm:$0xff]
  %v76 = vld [vmem:[%s1 + $0x178] sm:$0xff]
  %v77 = vld [vmem:[%s1 + $0x180] sm:$0xff]
  %v78 = vld [vmem:[%s1 + $0x188] sm:$0xff]
  %v79 = vld [vmem:[%s1 + $0x190] sm:$0xff]
  %v80 = vld [vmem:[%s1 + $0x198] sm:$0xff]
  %v81 = vld [vmem:[%s1 + $0x1a0] sm:$0xff]
  %v82 = vld [vmem:[%s1 + $0x1a8] sm:$0xff]
  %v83 = vld [vmem:[%s1 + $0x1b0] sm:$0xff]
  %v84 = vld [vmem:[%s1 + $0x1b8] sm:$0xff]
  %v85 = vld [vmem:[%s1 + $0x1c0] sm:$0xff]
  %v86 = vld [vmem:[%s1 + $0x1c8] sm:$0xff]
  %v87 = vld [vmem:[%s1 + $0x1d0] sm:$0xff]
  %v88 = vld [vmem:[%s1 + $0x1d8] sm:$0xff]
  %v89 = vld [vmem:[%s1 + $0x1e0] sm:$0xff]
  %v90 = vld [vmem:[%s1 + $0x1e8] sm:$0xff]
  %v91 = vld [vmem:[%s1 + $0x1f0] sm:$0xff]
  %v92 = vld [vmem:[%s1 + $0x1f8] sm:$0xff]
  %v93 = vld [vmem:[%s1 + $0x200] sm:$0xff]
  %v94 = vld [vmem:[%s1 + $0x208] sm:$0xff]
  %v95 = vld [vmem:[%s1 + $0x210] sm:$0xff]
  %v96 = vld [vmem:[%s1 + $0x218] sm:$0xff]
  %v97 = vld [vmem:[%s1 + $0x220] sm:$0xff]
  %v98 = vld [vmem:[%s1 + $0x228] sm:$0xff]
  %v99 = vld [vmem:[%s1 + $0x230] sm:$0xff]
  %v100 = vld [vmem:[%s1 + $0x238] sm:$0xff]
  %v101 = vld [vmem:[%s2] sm:$0x3]
  %v103 = vlaneseq
  %v104 = vshrl.u32 %v103, 7
  %v105 = vsub.s32 0, %v104
  %v106 = vrot.slane %v101, %v105
  %v107 = vlaneseq
  %v108 = vshrl.u32 %v107, 7
  %v109 = vsub.s32 1, %v108
  %v110 = vrot.slane %v101, %v109
  %v119 = vunpack.c.l.b16 %v23
  %v120 = vunpack.c.h.b16 %v23
  %v121 = vunpack.c.l.b16 %v24
  %v122 = vunpack.c.h.b16 %v24
  %v123 = vunpack.c.l.b16 %v25
  %v124 = vunpack.c.l.b16 %v26
  %v125 = vunpack.c.h.b16 %v26
  %v126 = vunpack.c.l.b16 %v27
  %v127 = vunpack.c.h.b16 %v27
  %v128 = vunpack.c.l.b16 %v28
  %v129 = vpack.c.b16 %v124, %v119
  %v130 = vpack.c.b16 %v125, %v120
  %v131 = vpack.c.b16 %v126, %v121
  %v132 = vpack.c.b16 %v127, %v122
  %v133 = vpack.c.b16 %v128, %v123
  %v210 = vunpack.c.l.b16 %v29
  %v211 = vunpack.c.h.b16 %v29
  %v212 = vunpack.c.l.b16 %v30
  %v213 = vunpack.c.h.b16 %v30
  %v214 = vunpack.c.l.b16 %v31
  %v215 = vunpack.c.h.b16 %v31
  %v216 = vunpack.c.l.b16 %v32
  %v217 = vunpack.c.h.b16 %v32
  %v218 = vunpack.c.l.b16 %v33
  %v219 = vunpack.c.h.b16 %v33
  %v220 = vunpack.c.l.b16 %v34
  %v221 = vunpack.c.h.b16 %v34
  %v222 = vunpack.c.l.b16 %v35
  %v223 = vunpack.c.h.b16 %v35
  %v224 = vunpack.c.l.b16 %v36
  %v225 = vunpack.c.h.b16 %v36
  %v226 = vunpack.c.l.b16 %v37
  %v227 = vunpack.c.h.b16 %v37
  %v228 = vunpack.c.l.b16 %v38
  %v229 = vunpack.c.h.b16 %v38
  %v230 = vunpack.c.l.b16 %v39
  %v231 = vunpack.c.h.b16 %v39
  %v232 = vunpack.c.l.b16 %v40
  %v233 = vunpack.c.h.b16 %v40
  %v234 = vunpack.c.l.b16 %v41
  %v235 = vunpack.c.h.b16 %v41
  %v236 = vunpack.c.l.b16 %v42
  %v237 = vunpack.c.h.b16 %v42
  %v238 = vunpack.c.l.b16 %v43
  %v239 = vunpack.c.h.b16 %v43
  %v240 = vunpack.c.l.b16 %v44
  %v241 = vunpack.c.h.b16 %v44
  %v242 = vunpack.c.l.b16 %v45
  %v243 = vunpack.c.h.b16 %v45
  %v244 = vunpack.c.l.b16 %v46
  %v245 = vunpack.c.h.b16 %v46
  %v246 = vunpack.c.l.b16 %v47
  %v247 = vunpack.c.h.b16 %v47
  %v248 = vunpack.c.l.b16 %v48
  %v249 = vunpack.c.h.b16 %v48
  %v250 = vunpack.c.l.b16 %v49
  %v251 = vunpack.c.h.b16 %v49
  %v252 = vunpack.c.l.b16 %v50
  %v253 = vunpack.c.h.b16 %v50
  %v254 = vunpack.c.l.b16 %v51
  %v255 = vunpack.c.h.b16 %v51
  %v256 = vunpack.c.l.b16 %v52
  %v257 = vunpack.c.h.b16 %v52
  %v258 = vunpack.c.l.b16 %v53
  %v259 = vunpack.c.h.b16 %v53
  %v260 = vunpack.c.l.b16 %v54
  %v261 = vunpack.c.h.b16 %v54
  %v262 = vunpack.c.l.b16 %v55
  %v263 = vunpack.c.h.b16 %v55
  %v264 = vunpack.c.l.b16 %v56
  %v265 = vunpack.c.h.b16 %v56
  %v266 = vunpack.c.l.b16 %v57
  %v267 = vunpack.c.h.b16 %v57
  %v268 = vunpack.c.l.b16 %v58
  %v269 = vunpack.c.h.b16 %v58
  %v270 = vunpack.c.l.b16 %v59
  %v271 = vunpack.c.h.b16 %v59
  %v272 = vunpack.c.l.b16 %v60
  %v273 = vunpack.c.h.b16 %v60
  %v274 = vunpack.c.l.b16 %v61
  %v275 = vunpack.c.h.b16 %v61
  %v276 = vunpack.c.l.b16 %v62
  %v277 = vunpack.c.h.b16 %v62
  %v278 = vunpack.c.l.b16 %v63
  %v279 = vunpack.c.h.b16 %v63
  %v280 = vunpack.c.l.b16 %v64
  %v281 = vunpack.c.h.b16 %v64
  %v282 = vunpack.c.l.b16 %v65
  %v283 = vunpack.c.h.b16 %v65
  %v284 = vunpack.c.l.b16 %v66
  %v285 = vunpack.c.h.b16 %v66
  %v286 = vunpack.c.l.b16 %v67
  %v287 = vunpack.c.h.b16 %v67
  %v288 = vunpack.c.l.b16 %v68
  %v289 = vunpack.c.h.b16 %v68
  %v290 = vunpack.c.l.b16 %v69
  %v291 = vunpack.c.h.b16 %v69
  %v292 = vunpack.c.l.b16 %v70
  %v293 = vunpack.c.h.b16 %v70
  %v294 = vunpack.c.l.b16 %v71
  %v295 = vunpack.c.h.b16 %v71
  %v296 = vunpack.c.l.b16 %v72
  %v297 = vunpack.c.h.b16 %v72
  %v298 = vunpack.c.l.b16 %v73
  %v299 = vunpack.c.h.b16 %v73
  %v300 = vunpack.c.l.b16 %v74
  %v301 = vunpack.c.h.b16 %v74
  %v302 = vunpack.c.l.b16 %v75
  %v303 = vunpack.c.h.b16 %v75
  %v304 = vunpack.c.l.b16 %v76
  %v305 = vunpack.c.h.b16 %v76
  %v306 = vunpack.c.l.b16 %v77
  %v307 = vunpack.c.h.b16 %v77
  %v308 = vunpack.c.l.b16 %v78
  %v309 = vunpack.c.h.b16 %v78
  %v310 = vunpack.c.l.b16 %v79
  %v311 = vunpack.c.h.b16 %v79
  %v312 = vunpack.c.l.b16 %v80
  %v313 = vunpack.c.h.b16 %v80
  %v314 = vunpack.c.l.b16 %v81
  %v315 = vunpack.c.h.b16 %v81
  %v316 = vunpack.c.l.b16 %v82
  %v317 = vunpack.c.h.b16 %v82
  %v318 = vunpack.c.l.b16 %v83
  %v319 = vunpack.c.h.b16 %v83
  %v320 = vunpack.c.l.b16 %v84
  %v321 = vunpack.c.h.b16 %v84
  %v322 = vunpack.c.l.b16 %v85
  %v323 = vunpack.c.h.b16 %v85
  %v324 = vunpack.c.l.b16 %v86
  %v325 = vunpack.c.h.b16 %v86
  %v326 = vunpack.c.l.b16 %v87
  %v327 = vunpack.c.h.b16 %v87
  %v328 = vunpack.c.l.b16 %v88
  %v329 = vunpack.c.h.b16 %v88
  %v330 = vunpack.c.l.b16 %v89
  %v331 = vunpack.c.h.b16 %v89
  %v332 = vunpack.c.l.b16 %v90
  %v333 = vunpack.c.h.b16 %v90
  %v334 = vunpack.c.l.b16 %v91
  %v335 = vunpack.c.h.b16 %v91
  %v336 = vunpack.c.l.b16 %v92
  %v337 = vunpack.c.h.b16 %v92
  %v338 = vunpack.c.l.b16 %v93
  %v339 = vunpack.c.h.b16 %v93
  %v340 = vunpack.c.l.b16 %v94
  %v341 = vunpack.c.h.b16 %v94
  %v342 = vunpack.c.l.b16 %v95
  %v343 = vunpack.c.h.b16 %v95
  %v344 = vunpack.c.l.b16 %v96
  %v345 = vunpack.c.h.b16 %v96
  %v346 = vunpack.c.l.b16 %v97
  %v347 = vunpack.c.h.b16 %v97
  %v348 = vunpack.c.l.b16 %v98
  %v349 = vunpack.c.h.b16 %v98
  %v350 = vunpack.c.l.b16 %v99
  %v351 = vunpack.c.h.b16 %v99
  %v352 = vunpack.c.l.b16 %v100
  %v353 = vunpack.c.h.b16 %v100
  %v354 = vpack.c.b16 %v212, %v210
  %v355 = vpack.c.b16 %v213, %v211
  %v356 = vpack.c.b16 %v216, %v214
  %v357 = vpack.c.b16 %v217, %v215
  %v358 = vpack.c.b16 %v220, %v218
  %v359 = vpack.c.b16 %v221, %v219
  %v360 = vpack.c.b16 %v224, %v222
  %v361 = vpack.c.b16 %v225, %v223
  %v362 = vpack.c.b16 %v228, %v226
  %v363 = vpack.c.b16 %v229, %v227
  %v364 = vpack.c.b16 %v232, %v230
  %v365 = vpack.c.b16 %v233, %v231
  %v366 = vpack.c.b16 %v236, %v234
  %v367 = vpack.c.b16 %v237, %v235
  %v368 = vpack.c.b16 %v240, %v238
  %v369 = vpack.c.b16 %v241, %v239
  %v370 = vpack.c.b16 %v244, %v242
  %v371 = vpack.c.b16 %v245, %v243
  %v372 = vpack.c.b16 %v248, %v246
  %v373 = vpack.c.b16 %v249, %v247
  %v374 = vpack.c.b16 %v252, %v250
  %v375 = vpack.c.b16 %v253, %v251
  %v376 = vpack.c.b16 %v256, %v254
  %v377 = vpack.c.b16 %v257, %v255
  %v378 = vpack.c.b16 %v260, %v258
  %v379 = vpack.c.b16 %v261, %v259
  %v380 = vpack.c.b16 %v264, %v262
  %v381 = vpack.c.b16 %v265, %v263
  %v382 = vpack.c.b16 %v268, %v266
  %v383 = vpack.c.b16 %v269, %v267
  %v384 = vpack.c.b16 %v272, %v270
  %v385 = vpack.c.b16 %v273, %v271
  %v386 = vpack.c.b16 %v276, %v274
  %v387 = vpack.c.b16 %v277, %v275
  %v388 = vpack.c.b16 %v280, %v278
  %v389 = vpack.c.b16 %v281, %v279
  %v390 = vpack.c.b16 %v284, %v282
  %v391 = vpack.c.b16 %v285, %v283
  %v392 = vpack.c.b16 %v288, %v286
  %v393 = vpack.c.b16 %v289, %v287
  %v394 = vpack.c.b16 %v292, %v290
  %v395 = vpack.c.b16 %v293, %v291
  %v396 = vpack.c.b16 %v296, %v294
  %v397 = vpack.c.b16 %v297, %v295
  %v398 = vpack.c.b16 %v300, %v298
  %v399 = vpack.c.b16 %v301, %v299
  %v400 = vpack.c.b16 %v304, %v302
  %v401 = vpack.c.b16 %v305, %v303
  %v402 = vpack.c.b16 %v308, %v306
  %v403 = vpack.c.b16 %v309, %v307
  %v404 = vpack.c.b16 %v312, %v310
  %v405 = vpack.c.b16 %v313, %v311
  %v406 = vpack.c.b16 %v316, %v314
  %v407 = vpack.c.b16 %v317, %v315
  %v408 = vpack.c.b16 %v320, %v318
  %v409 = vpack.c.b16 %v321, %v319
  %v410 = vpack.c.b16 %v324, %v322
  %v411 = vpack.c.b16 %v325, %v323
  %v412 = vpack.c.b16 %v328, %v326
  %v413 = vpack.c.b16 %v329, %v327
  %v414 = vpack.c.b16 %v332, %v330
  %v415 = vpack.c.b16 %v333, %v331
  %v416 = vpack.c.b16 %v336, %v334
  %v417 = vpack.c.b16 %v337, %v335
  %v418 = vpack.c.b16 %v340, %v338
  %v419 = vpack.c.b16 %v341, %v339
  %v420 = vpack.c.b16 %v344, %v342
  %v421 = vpack.c.b16 %v345, %v343
  %v422 = vpack.c.b16 %v348, %v346
  %v423 = vpack.c.b16 %v349, %v347
  %v424 = vpack.c.b16 %v352, %v350
  %v425 = vpack.c.b16 %v353, %v351
  %vm498 = vcmask 523264
  %v500 = vsel %vm498, %v133, 0
  %502 = vmatprep.subr.bf16.mxu0 %v369
  %503 = vmatpush1.bf16.msra.mxu0 %v368
  %504 = vmatprep.subr.bf16.mxu0 %v367
  %505 = vmatpush1.bf16.msra.mxu0 %v366
  %506 = vmatprep.subr.bf16.mxu0 %v365
  %507 = vmatpush1.bf16.msra.mxu0 %v364
  %508 = vmatprep.subr.bf16.mxu0 %v363
  %509 = vmatpush1.bf16.msra.mxu0 %v362
  %510 = vmatprep.subr.bf16.mxu0 %v361
  %511 = vmatpush1.bf16.msra.mxu0 %v360
  %512 = vmatprep.subr.bf16.mxu0 %v359
  %513 = vmatpush1.bf16.msra.mxu0 %v358
  %514 = vmatprep.subr.bf16.mxu0 %v357
  %515 = vmatpush1.bf16.msra.mxu0 %v356
  %516 = vmatprep.subr.bf16.mxu0 %v355
  %517 = vmatpush1.bf16.msra.mxu0 %v354
  %518 = vmatprep.subr.bf16.mxu0 %v385
  %519 = vmatpush2.bf16.msra.mxu0 %v384
  %520 = vmatprep.subr.bf16.mxu0 %v383
  %521 = vmatpush2.bf16.msra.mxu0 %v382
  %522 = vmatprep.subr.bf16.mxu0 %v381
  %523 = vmatpush2.bf16.msra.mxu0 %v380
  %524 = vmatprep.subr.bf16.mxu0 %v379
  %525 = vmatpush2.bf16.msra.mxu0 %v378
  %526 = vmatprep.subr.bf16.mxu0 %v377
  %527 = vmatpush2.bf16.msra.mxu0 %v376
  %528 = vmatprep.subr.bf16.mxu0 %v375
  %529 = vmatpush2.bf16.msra.mxu0 %v374
  %530 = vmatprep.subr.bf16.mxu0 %v373
  %531 = vmatpush2.bf16.msra.mxu0 %v372
  %532 = vmatprep.subr.bf16.mxu0 %v371
  %533 = vmatpush2.bf16.msra.mxu0 %v370
  %534 = vmatprep.mubr.bf16.mxu0 %v130
  %535 = vmatmul.mubr.bf16.gmra.mxu0 %v129
  %v536 = vpop.f32.mrf.mxu0
  %v537 = vadd.f32 %v106, %v536
  %v538 = vpop.f32.mrf.mxu0
  %v539 = vadd.f32 %v110, %v538
  %v540 = vpop.f32.mrf.mxu0
  %v541 = vadd.f32 %v106, %v540
  %v542 = vpop.f32.mrf.mxu0
  %v543 = vadd.f32 %v110, %v542
  %544 = vdwg.mxu0
  %545 = vmatprep.subr.bf16.mxu0 %v401
  %546 = vmatpush1.bf16.msra.mxu0 %v400
  %547 = vmatprep.subr.bf16.mxu0 %v399
  %548 = vmatpush1.bf16.msra.mxu0 %v398
  %549 = vmatprep.subr.bf16.mxu0 %v397
  %550 = vmatpush1.bf16.msra.mxu0 %v396
  %551 = vmatprep.subr.bf16.mxu0 %v395
  %552 = vmatpush1.bf16.msra.mxu0 %v394
  %553 = vmatprep.subr.bf16.mxu0 %v393
  %554 = vmatpush1.bf16.msra.mxu0 %v392
  %555 = vmatprep.subr.bf16.mxu0 %v391
  %556 = vmatpush1.bf16.msra.mxu0 %v390
  %557 = vmatprep.subr.bf16.mxu0 %v389
  %558 = vmatpush1.bf16.msra.mxu0 %v388
  %559 = vmatprep.subr.bf16.mxu0 %v387
  %560 = vmatpush1.bf16.msra.mxu0 %v386
  %561 = vmatprep.subr.bf16.mxu0 %v417
  %562 = vmatpush2.bf16.msra.mxu0 %v416
  %563 = vmatprep.subr.bf16.mxu0 %v415
  %564 = vmatpush2.bf16.msra.mxu0 %v414
  %565 = vmatprep.subr.bf16.mxu0 %v413
  %566 = vmatpush2.bf16.msra.mxu0 %v412
  %567 = vmatprep.subr.bf16.mxu0 %v411
  %568 = vmatpush2.bf16.msra.mxu0 %v410
  %569 = vmatprep.subr.bf16.mxu0 %v409
  %570 = vmatpush2.bf16.msra.mxu0 %v408
  %571 = vmatprep.subr.bf16.mxu0 %v407
  %572 = vmatpush2.bf16.msra.mxu0 %v406
  %573 = vmatprep.subr.bf16.mxu0 %v405
  %574 = vmatpush2.bf16.msra.mxu0 %v404
  %575 = vmatprep.subr.bf16.mxu0 %v403
  %576 = vmatpush2.bf16.msra.mxu0 %v402
  %577 = vmatprep.mubr.bf16.mxu0 %v132
  %578 = vmatmul.mubr.bf16.gmra.mxu0 %v131
  %v579 = vpop.f32.mrf.mxu0
  %v580 = vadd.f32 %v537, %v579
  %v581 = vpop.f32.mrf.mxu0
  %v582 = vadd.f32 %v539, %v581
  %v583 = vpop.f32.mrf.mxu0
  %v584 = vadd.f32 %v541, %v583
  %v585 = vpop.f32.mrf.mxu0
  %v586 = vadd.f32 %v543, %v585
  %587 = vdwg.mxu0
  %588 = vmatprep.subr.bf16.mxu0 0
  %589 = vmatpush1.bf16.msra.mxu0 0
  %590 = vmatprep.subr.bf16.mxu0 0
  %591 = vmatpush1.bf16.msra.mxu0 0
  %592 = vmatprep.subr.bf16.mxu0 0
  %593 = vmatpush1.bf16.msra.mxu0 0
  %594 = vmatprep.subr.bf16.mxu0 0
  %595 = vmatpush1.bf16.msra.mxu0 0
  %596 = vmatprep.subr.bf16.mxu0 %v425
  %597 = vmatpush1.bf16.msra.mxu0 %v424
  %598 = vmatprep.subr.bf16.mxu0 %v423
  %599 = vmatpush1.bf16.msra.mxu0 %v422
  %600 = vmatprep.subr.bf16.mxu0 %v421
  %601 = vmatpush1.bf16.msra.mxu0 %v420
  %602 = vmatprep.subr.bf16.mxu0 %v419
  %603 = vmatpush1.bf16.msra.mxu0 %v418
  %604 = vmatprep.subr.bf16.mxu0 0
  %605 = vmatpush2.bf16.msra.mxu0 0
  %606 = vmatprep.subr.bf16.mxu0 0
  %607 = vmatpush2.bf16.msra.mxu0 0
  %608 = vmatprep.subr.bf16.mxu0 0
  %609 = vmatpush2.bf16.msra.mxu0 0
  %610 = vmatprep.subr.bf16.mxu0 0
  %611 = vmatpush2.bf16.msra.mxu0 0
  %612 = vmatprep.subr.bf16.mxu0 0
  %613 = vmatpush2.bf16.msra.mxu0 0
  %614 = vmatprep.subr.bf16.mxu0 0
  %615 = vmatpush2.bf16.msra.mxu0 0
  %616 = vmatprep.subr.bf16.mxu0 0
  %617 = vmatpush2.bf16.msra.mxu0 0
  %618 = vmatprep.subr.bf16.mxu0 0
  %619 = vmatpush2.bf16.msra.mxu0 0
  %620 = vmatprep.mubr.bf16.mxu0 0
  %621 = vmatmul.mubr.bf16.gmra.mxu0 %v500
  %v622 = vpop.f32.mrf.mxu0
  %v623 = vadd.f32 %v580, %v622
  %v624 = vpop.f32.mrf.mxu0
  %v625 = vadd.f32 %v582, %v624
  %v626 = vpop.f32.mrf.mxu0
  %v627 = vadd.f32 %v584, %v626
  %v628 = vpop.f32.mrf.mxu0
  %v629 = vadd.f32 %v586, %v628
  %630 = vdwg.mxu0
  %v631 = vxor.u32 %v623, 2147483648
  %v632 = vxor.u32 %v625, 2147483648
  %v633 = vxor.u32 %v627, 2147483648
  %v634 = vxor.u32 %v629, 2147483648
  %v635 = vmul.f32 %v631, 1.442695
  %v636 = vpow.pop %v635
  %v637 = vmul.f32 %v632, 1.442695
  %v638 = vpow.pop %v637
  %v639 = vmul.f32 %v633, 1.442695
  %v640 = vpow.pop %v639
  %v641 = vmul.f32 %v634, 1.442695
  %v642 = vpow.pop %v641
  %v643 = vadd.f32 %v636, 1.0
  %v644 = vadd.f32 %v638, 1.0
  %v645 = vadd.f32 %v640, 1.0
  %v646 = vadd.f32 %v642, 1.0
  %v647 = vrcp.pop %v643
  %v648 = vmul.f32 1.0, %v647
  %v649 = vrcp.pop %v644
  %v650 = vmul.f32 1.0, %v649
  %v651 = vrcp.pop %v645
  %v652 = vmul.f32 1.0, %v651
  %v653 = vrcp.pop %v646
  %v654 = vmul.f32 1.0, %v653
  %v655 = vld [vmem:[%s3] sm:$0x3]
  %v657 = vlaneseq
  %v658 = vshrl.u32 %v657, 7
  %v659 = vsub.s32 0, %v658
  %v660 = vrot.slane %v655, %v659
  %v661 = vlaneseq
  %v662 = vshrl.u32 %v661, 7
  %v663 = vsub.s32 1, %v662
  %v664 = vrot.slane %v655, %v663
  %v667 = vmul.f32 %v648, %v660
  %v668 = vmul.f32 %v650, %v664
  %v669 = vmul.f32 %v652, %v660
  %v670 = vmul.f32 %v654, %v664
  %v671 = vadd.f32 %v667, %v668
  %672 = vadd.xlane.f32.xlu0 %v671
  %v673 = vpop.xlane.xlu0 %672
  %v674 = vadd.f32 %v669, %v670
  %675 = vadd.xlane.f32.xlu0 %v674
  %v676 = vpop.xlane.xlu0 %675
  %v677 = vld [vmem:[#allocation2] sm:$0x1]
  %v679 = vlaneseq
  %v680 = vshrl.u32 %v679, 7
  %v681 = vsub.s32 0, %v680
  %v682 = vrot.slane %v677, %v681
  %v684 = vadd.f32 %v673, %v682
  %v685 = vadd.f32 %v676, %v682
  %v686 = vxor.u32 %v684, 2147483648
  %v687 = vxor.u32 %v685, 2147483648
  %v688 = vmul.f32 %v686, 1.442695
  %v689 = vpow.pop %v688
  %v690 = vmul.f32 %v687, 1.442695
  %v691 = vpow.pop %v690
  %v692 = vadd.f32 %v689, 1.0
  %v693 = vadd.f32 %v691, 1.0
  %v694 = vrcp.pop %v692
  %v695 = vmul.f32 1.0, %v694
  %v696 = vrcp.pop %v693
  %v697 = vmul.f32 1.0, %v696
  %vm698 = vcmask 7168
  %699 = vst.msk [vmem:[%s5] sm:$0xff] %vm698, %v695
  %700 = vst.msk [vmem:[%s5 + $0x8] sm:$0xff] %vm698, %v697
  // Predicated region
  $region22: #{discriminator_forward.5} parent=0 // pred_check
    _
  $region23: #{discriminator_forward.5} parent=0 // pred_check_branch
    %702 = sbr.rel (0) target = $region25
  $region24: #{discriminator_forward.5} parent=0 // pred_region
    _
  $region25: #{discriminator_forward.5} parent=0 // pred_fallthru
    _
  // Predicated region
  $region26: #{discriminator_forward.5} parent=0 // pred_check
    _
  $region27: #{discriminator_forward.5} parent=0 // pred_check_branch
    %704 = sbr.rel (0) target = $region29
  $region28: #{discriminator_forward.5} parent=0 // pred_region
    _
  $region29: #{discriminator_forward.5} parent=0 // pred_fallthru
    _

</llo_original>
